<compile_context>
chip_gen: v6e
topology: v6e:2x2x1
jax: 0.10.0
libtpu: 0.0.40
codegen_flags: <defaults>
</compile_context>

<pallas_src>
import jax
import jax.numpy as jnp
from jax import lax
from jax.experimental import pallas as pl
from jax.experimental.pallas import tpu as pltpu  # noqa: F401  (TPU backend assumed)

SEQ_LEN   = 16
D_MODEL   = 128
NUM_HEADS = 4
HEAD_DIM  = D_MODEL // NUM_HEADS
FF_DIM    = 256
N_LAYERS  = 2
BATCH     = 2
VOCAB     = 256
NEG_INF   = -1e30                    # stands in for -inf entries of the causal mask
BS        = SEQ_LEN * BATCH          # flattened rows, s-major: row = s*BATCH + b


def _layernorm(x, gamma, beta, eps=1e-5):
    mean = jnp.mean(x, axis=-1, keepdims=True)
    var = jnp.mean((x - mean) ** 2, axis=-1, keepdims=True)
    return (x - mean) * lax.rsqrt(var + eps) * gamma + beta


def fused_lm_kernel(x_ref,
                    ln1_g_ref, ln1_b_ref, wqkv_ref, bqkv_ref, wo_ref, bo_ref,
                    ln2_g_ref, ln2_b_ref, w1_ref, b1_ref, w2_ref, b2_ref,
                    dec_w_ref, dec_b_ref, out_ref):
    """Whole forward pass (2 pre-LN encoder layers + decoder) on (S*B, D) rows."""
    # Combined causal + same-batch mask, built once in vregs (rows are s-major):
    #   row r = s_q*BATCH + b,  col t = s_k*BATCH + b'  ->  valid iff b==b' and s_k<=s_q.
    r = lax.broadcasted_iota(jnp.int32, (BS, BS), 0)
    t = lax.broadcasted_iota(jnp.int32, (BS, BS), 1)
    valid = (r % BATCH == t % BATCH) & (t <= r)
    mask_bias = jnp.where(valid, 0.0, NEG_INF)

    scale = 1.0 / (HEAD_DIM ** 0.5)
    x = x_ref[...]                                               # (BS, D) f32

    for l in range(N_LAYERS):                                    # static unroll
        # ---- pre-LN multi-head self-attention block ----
        h = _layernorm(x, ln1_g_ref[l], ln1_b_ref[l])
        qkv = jnp.dot(h.astype(jnp.bfloat16), wqkv_ref[l],
                      preferred_element_type=jnp.float32) + bqkv_ref[l]   # (BS, 3D) f32
        wo_l = wo_ref[l]                                         # (D, D) bf16
        attn = jnp.zeros((BS, D_MODEL), jnp.float32)
        for hh in range(NUM_HEADS):                              # static unroll
            lo = hh * HEAD_DIM
            qh = qkv[:, lo:lo + HEAD_DIM]
            kh = qkv[:, D_MODEL + lo:D_MODEL + lo + HEAD_DIM]
            vh = qkv[:, 2 * D_MODEL + lo:2 * D_MODEL + lo + HEAD_DIM]
            # scores: qh @ kh^T over head_dim (MXU, bf16 in / f32 acc)
            s = lax.dot_general(qh.astype(jnp.bfloat16), kh.astype(jnp.bfloat16),
                                (((1,), (1,)), ((), ())),
                                preferred_element_type=jnp.float32)
            s = s * scale + mask_bias
            s = s - jnp.max(s, axis=-1, keepdims=True)
            p = jnp.exp(s)
            p = p * pl.reciprocal(jnp.sum(p, axis=-1, keepdims=True), approx=True)
            head = jnp.dot(p.astype(jnp.bfloat16), vh.astype(jnp.bfloat16),
                           preferred_element_type=jnp.float32)   # (BS, HD)
            # accumulate through this head's slice of the output projection (no concat)
            attn = attn + jnp.dot(head.astype(jnp.bfloat16),
                                  wo_l[lo:lo + HEAD_DIM, :],
                                  preferred_element_type=jnp.float32)
        x = x + attn + bo_ref[l]                                 # residual (dropout p=0)

        # ---- pre-LN feed-forward block (ReLU) ----
        h = _layernorm(x, ln2_g_ref[l], ln2_b_ref[l])
        ff = jnp.dot(h.astype(jnp.bfloat16), w1_ref[l],
                     preferred_element_type=jnp.float32) + b1_ref[l]
        ff = jnp.maximum(ff, 0.0)
        ff = jnp.dot(ff.astype(jnp.bfloat16), w2_ref[l],
                     preferred_element_type=jnp.float32) + b2_ref[l]
        x = x + ff                                               # residual (dropout p=0)

    # ---- prob_decoder: Linear(d_model -> 256) ----
    out_ref[...] = jnp.dot(x.astype(jnp.bfloat16), dec_w_ref[...],
                           preferred_element_type=jnp.float32) + dec_b_ref[...]


def init_params(key):
    ks = jax.random.split(key, 3 + N_LAYERS)

    def nrm(k, shape):
        return 0.02 * jax.random.normal(k, shape, jnp.float32)

    layers = []
    for l in range(N_LAYERS):
        lk = jax.random.split(ks[3 + l], 4)
        layers.append(dict(
            ln1_g=jnp.ones((1, D_MODEL), jnp.float32),
            ln1_b=jnp.zeros((1, D_MODEL), jnp.float32),
            wqkv=nrm(lk[0], (D_MODEL, 3 * D_MODEL)),
            bqkv=jnp.zeros((1, 3 * D_MODEL), jnp.float32),
            wo=nrm(lk[1], (D_MODEL, D_MODEL)),
            bo=jnp.zeros((1, D_MODEL), jnp.float32),
            ln2_g=jnp.ones((1, D_MODEL), jnp.float32),
            ln2_b=jnp.zeros((1, D_MODEL), jnp.float32),
            w1=nrm(lk[2], (D_MODEL, FF_DIM)),
            b1=jnp.zeros((1, FF_DIM), jnp.float32),
            w2=nrm(lk[3], (FF_DIM, D_MODEL)),
            b2=jnp.zeros((1, D_MODEL), jnp.float32),
        ))

    def stack(name):
        return jnp.stack([lyr[name] for lyr in layers], axis=0)   # (N_LAYERS, ...)

    params = dict(
        pos_enc=jax.random.normal(ks[0], (SEQ_LEN, 1, D_MODEL), jnp.float32),
        emb_table=nrm(ks[1], (VOCAB, D_MODEL)),
        dec_w=nrm(ks[2], (D_MODEL, VOCAB)),
        dec_b=jnp.zeros((1, VOCAB), jnp.float32),
    )
    for name in ("ln1_g", "ln1_b", "wqkv", "bqkv", "wo", "bo",
                 "ln2_g", "ln2_b", "w1", "b1", "w2", "b2"):
        params[name] = stack(name)
    return params


def torch_lm_forward(text_batch, params):
    """text_batch: (S, B) int32, seq-first like the PyTorch module. Returns (S, B, 256)."""
    S, B = text_batch.shape
    # Embedding lookup + shift-right + positional encoding (plain-JAX glue).
    emb = jnp.take(params["emb_table"], text_batch, axis=0)               # (S, B, D)
    zeros = jnp.zeros((1, B, D_MODEL), jnp.float32)
    emb = jnp.concatenate([zeros, emb[:-1]], axis=0)
    emb = emb + params["pos_enc"]
    # TODO(synk): dropout(p=cfg.dropout) — cfg.dropout=0.0 / eval mode so it is identity.

    # s-major flattening (row = s*B + b): free, contiguous reshape -> no transposes.
    x = emb.reshape(S * B, D_MODEL)

    bf16 = lambda a: a.astype(jnp.bfloat16)   # weights to bf16 (f32 accumulation in-kernel)
    args = (
        x,
        params["ln1_g"], params["ln1_b"],
        bf16(params["wqkv"]), params["bqkv"],
        bf16(params["wo"]), params["bo"],
        params["ln2_g"], params["ln2_b"],
        bf16(params["w1"]), params["b1"],
        bf16(params["w2"]), params["b2"],
        bf16(params["dec_w"]), params["dec_b"],
    )
    logits = pl.pallas_call(
        fused_lm_kernel,
        out_shape=jax.ShapeDtypeStruct((S * B, VOCAB), jnp.float32),
        # No grid: single program, all operands resident in VMEM (default full blocks).
    )(*args)
    return logits.reshape(S, B, VOCAB)        # free metadata reshape back to (S, B, 256)


if __name__ == "__main__":
    root = jax.random.PRNGKey(0)
    pkey, dkey = jax.random.split(root)
    params = init_params(pkey)
    text_batch = jax.random.randint(dkey, (SEQ_LEN, BATCH), 0, VOCAB, dtype=jnp.int32)

    forward = jax.jit(torch_lm_forward)
    out = forward(text_batch, params)
    out = jax.block_until_ready(out)
    assert out.shape == (SEQ_LEN, BATCH, VOCAB), out.shape
    assert jnp.all(jnp.isfinite(out))
    print("KERNEL_OK")
</pallas_src>

<mosaic_0001>
module attributes {stable_mosaic.version = 11 : i64} {
  func.func @fused_lm_kernel(%arg0: memref<32x128xf32, #tpu.memory_space<vmem>>, %arg1: memref<2x1x128xf32, #tpu.memory_space<vmem>>, %arg2: memref<2x1x128xf32, #tpu.memory_space<vmem>>, %arg3: memref<2x128x384xbf16, #tpu.memory_space<vmem>>, %arg4: memref<2x1x384xf32, #tpu.memory_space<vmem>>, %arg5: memref<2x128x128xbf16, #tpu.memory_space<vmem>>, %arg6: memref<2x1x128xf32, #tpu.memory_space<vmem>>, %arg7: memref<2x1x128xf32, #tpu.memory_space<vmem>>, %arg8: memref<2x1x128xf32, #tpu.memory_space<vmem>>, %arg9: memref<2x128x256xbf16, #tpu.memory_space<vmem>>, %arg10: memref<2x1x256xf32, #tpu.memory_space<vmem>>, %arg11: memref<2x256x128xbf16, #tpu.memory_space<vmem>>, %arg12: memref<2x1x128xf32, #tpu.memory_space<vmem>>, %arg13: memref<128x256xbf16, #tpu.memory_space<vmem>>, %arg14: memref<1x256xf32, #tpu.memory_space<vmem>>, %arg15: memref<32x256xf32, #tpu.memory_space<vmem>>) attributes {dimension_semantics = [], scalar_prefetch = 0 : i64, scratch_operands = 0 : i64, tpu.core_type = #tpu.core_type<tc>} {
    %0 = tpu.iota {dimensions = array<i32: 0>} : vector<32x32xi32>
    %1 = tpu.iota {dimensions = array<i32: 1>} : vector<32x32xi32>
    %c2_i32 = arith.constant 2 : i32
    %c0_i32 = arith.constant 0 : i32
    %2 = arith.cmpi eq, %c2_i32, %c0_i32 : i32
    %c1_i32 = arith.constant 1 : i32
    %3 = arith.select %2, %c1_i32, %c2_i32 : i32
    %4 = vector.broadcast %3 : i32 to vector<32x32xi32>
    %5 = arith.remsi %0, %4 : vector<32x32xi32>
    %c0_i32_0 = arith.constant 0 : i32
    %6 = vector.broadcast %c0_i32_0 : i32 to vector<32x32xi32>
    %7 = arith.cmpi ne, %5, %6 : vector<32x32xi32>
    %c0_i32_1 = arith.constant 0 : i32
    %8 = vector.broadcast %c0_i32_1 : i32 to vector<32x32xi32>
    %9 = arith.cmpi slt, %5, %8 : vector<32x32xi32>
    %c0_i32_2 = arith.constant 0 : i32
    %10 = arith.cmpi slt, %3, %c0_i32_2 : i32
    %11 = vector.broadcast %10 : i1 to vector<32x32xi1>
    %12 = vector.broadcast %11 : vector<32x32xi1> to vector<32x32xi1>
    %13 = arith.xori %9, %12 : vector<32x32xi1>
    %14 = arith.andi %13, %7 : vector<32x32xi1>
    %15 = vector.broadcast %3 : i32 to vector<32x32xi32>
    %16 = arith.addi %5, %15 : vector<32x32xi32>
    %17 = arith.select %14, %16, %5 : vector<32x32xi1>, vector<32x32xi32>
    %c2_i32_3 = arith.constant 2 : i32
    %c0_i32_4 = arith.constant 0 : i32
    %18 = arith.cmpi eq, %c2_i32_3, %c0_i32_4 : i32
    %c1_i32_5 = arith.constant 1 : i32
    %19 = arith.select %18, %c1_i32_5, %c2_i32_3 : i32
    %20 = vector.broadcast %19 : i32 to vector<32x32xi32>
    %21 = arith.remsi %1, %20 : vector<32x32xi32>
    %c0_i32_6 = arith.constant 0 : i32
    %22 = vector.broadcast %c0_i32_6 : i32 to vector<32x32xi32>
    %23 = arith.cmpi ne, %21, %22 : vector<32x32xi32>
    %c0_i32_7 = arith.constant 0 : i32
    %24 = vector.broadcast %c0_i32_7 : i32 to vector<32x32xi32>
    %25 = arith.cmpi slt, %21, %24 : vector<32x32xi32>
    %c0_i32_8 = arith.constant 0 : i32
    %26 = arith.cmpi slt, %19, %c0_i32_8 : i32
    %27 = vector.broadcast %26 : i1 to vector<32x32xi1>
    %28 = vector.broadcast %27 : vector<32x32xi1> to vector<32x32xi1>
    %29 = arith.xori %25, %28 : vector<32x32xi1>
    %30 = arith.andi %29, %23 : vector<32x32xi1>
    %31 = vector.broadcast %19 : i32 to vector<32x32xi32>
    %32 = arith.addi %21, %31 : vector<32x32xi32>
    %33 = arith.select %30, %32, %21 : vector<32x32xi1>, vector<32x32xi32>
    %34 = arith.cmpi eq, %17, %33 : vector<32x32xi32>
    %35 = arith.cmpi sle, %1, %0 : vector<32x32xi32>
    %36 = arith.andi %34, %35 : vector<32x32xi1>
    %cst = arith.constant 0.000000e+00 : f32
    %cst_9 = arith.constant -1.000000e+30 : f32
    %37 = vector.broadcast %cst : f32 to vector<32x32xf32>
    %38 = vector.broadcast %cst_9 : f32 to vector<32x32xf32>
    %39 = arith.select %36, %37, %38 : vector<32x32xi1>, vector<32x32xf32>
    %c0 = arith.constant 0 : index
    %c0_10 = arith.constant 0 : index
    %40 = vector.load %arg0[%c0, %c0_10] : memref<32x128xf32, #tpu.memory_space<vmem>>, vector<32x128xf32>
    %c0_11 = arith.constant 0 : index
    %c0_12 = arith.constant 0 : index
    %c0_13 = arith.constant 0 : index
    %41 = vector.load %arg1[%c0_11, %c0_12, %c0_13] : memref<2x1x128xf32, #tpu.memory_space<vmem>>, vector<1x1x128xf32>
    %42 = vector.shape_cast %41 : vector<1x1x128xf32> to vector<1x128xf32>
    %c0_14 = arith.constant 0 : index
    %c0_15 = arith.constant 0 : index
    %c0_16 = arith.constant 0 : index
    %43 = vector.load %arg2[%c0_14, %c0_15, %c0_16] : memref<2x1x128xf32, #tpu.memory_space<vmem>>, vector<1x1x128xf32>
    %44 = vector.shape_cast %43 : vector<1x1x128xf32> to vector<1x128xf32>
    %cst_17 = arith.constant dense<0.000000e+00> : vector<32xf32>
    %45 = vector.multi_reduction <add>, %40, %cst_17 [1] : vector<32x128xf32> to vector<32xf32>
    %46 = vector.shape_cast %45 : vector<32xf32> to vector<32x1xf32>
    %cst_18 = arith.constant 1.280000e+02 : f32
    %47 = vector.broadcast %cst_18 : f32 to vector<32x1xf32>
    %48 = arith.divf %46, %47 : vector<32x1xf32>
    %49 = vector.broadcast %48 : vector<32x1xf32> to vector<32x128xf32>
    %50 = arith.subf %40, %49 : vector<32x128xf32>
    %51 = arith.mulf %50, %50 : vector<32x128xf32>
    %cst_19 = arith.constant dense<0.000000e+00> : vector<32xf32>
    %52 = vector.multi_reduction <add>, %51, %cst_19 [1] : vector<32x128xf32> to vector<32xf32>
    %53 = vector.shape_cast %52 : vector<32xf32> to vector<32x1xf32>
    %cst_20 = arith.constant 1.280000e+02 : f32
    %54 = vector.broadcast %cst_20 : f32 to vector<32x1xf32>
    %55 = arith.divf %53, %54 : vector<32x1xf32>
    %56 = vector.broadcast %48 : vector<32x1xf32> to vector<32x128xf32>
    %57 = arith.subf %40, %56 : vector<32x128xf32>
    %cst_21 = arith.constant 9.99999974E-6 : f32
    %58 = vector.broadcast %cst_21 : f32 to vector<32x1xf32>
    %59 = arith.addf %55, %58 : vector<32x1xf32>
    %60 = math.rsqrt %59 : vector<32x1xf32>
    %61 = vector.broadcast %60 : vector<32x1xf32> to vector<32x128xf32>
    %62 = arith.mulf %57, %61 : vector<32x128xf32>
    %63 = vector.broadcast %42 : vector<1x128xf32> to vector<32x128xf32>
    %64 = arith.mulf %62, %63 : vector<32x128xf32>
    %65 = vector.broadcast %44 : vector<1x128xf32> to vector<32x128xf32>
    %66 = arith.addf %64, %65 : vector<32x128xf32>
    %67 = arith.truncf %66 : vector<32x128xf32> to vector<32x128xbf16>
    %c0_22 = arith.constant 0 : index
    %c0_23 = arith.constant 0 : index
    %c0_24 = arith.constant 0 : index
    %68 = vector.load %arg3[%c0_22, %c0_23, %c0_24] : memref<2x128x384xbf16, #tpu.memory_space<vmem>>, vector<1x128x384xbf16>
    %69 = vector.shape_cast %68 : vector<1x128x384xbf16> to vector<128x384xbf16>
    %cst_25 = arith.constant dense<0.000000e+00> : vector<32x384xf32>
    %70 = tpu.matmul %67, %69, %cst_25 {dimension_numbers = #tpu.dot_dimension_numbers<[1], [0], [0], [1], [0, 0, 1, 1], [], []>} : vector<32x128xbf16>, vector<128x384xbf16>, vector<32x384xf32> -> vector<32x384xf32>
    %c0_26 = arith.constant 0 : index
    %c0_27 = arith.constant 0 : index
    %c0_28 = arith.constant 0 : index
    %71 = vector.load %arg4[%c0_26, %c0_27, %c0_28] : memref<2x1x384xf32, #tpu.memory_space<vmem>>, vector<1x1x384xf32>
    %72 = vector.shape_cast %71 : vector<1x1x384xf32> to vector<1x384xf32>
    %73 = vector.broadcast %72 : vector<1x384xf32> to vector<32x384xf32>
    %74 = arith.addf %70, %73 : vector<32x384xf32>
    %c0_29 = arith.constant 0 : index
    %c0_30 = arith.constant 0 : index
    %c0_31 = arith.constant 0 : index
    %75 = vector.load %arg5[%c0_29, %c0_30, %c0_31] : memref<2x128x128xbf16, #tpu.memory_space<vmem>>, vector<1x128x128xbf16>
    %76 = vector.shape_cast %75 : vector<1x128x128xbf16> to vector<128x128xbf16>
    %cst_32 = arith.constant 0.000000e+00 : f32
    %77 = vector.broadcast %cst_32 : f32 to vector<32x128xf32>
    %78 = vector.extract_strided_slice %74 {offsets = [0, 0], sizes = [32, 32], strides = [1, 1]} : vector<32x384xf32> to vector<32x32xf32>
    %79 = vector.extract_strided_slice %74 {offsets = [0, 128], sizes = [32, 32], strides = [1, 1]} : vector<32x384xf32> to vector<32x32xf32>
    %80 = vector.extract_strided_slice %74 {offsets = [0, 256], sizes = [32, 32], strides = [1, 1]} : vector<32x384xf32> to vector<32x32xf32>
    %81 = arith.truncf %78 : vector<32x32xf32> to vector<32x32xbf16>
    %82 = arith.truncf %79 : vector<32x32xf32> to vector<32x32xbf16>
    %cst_33 = arith.constant dense<0.000000e+00> : vector<32x32xf32>
    %83 = tpu.matmul %81, %82, %cst_33 {dimension_numbers = #tpu.dot_dimension_numbers<[1], [1], [0], [0], [0, 0, 1, 0], [], []>} : vector<32x32xbf16>, vector<32x32xbf16>, vector<32x32xf32> -> vector<32x32xf32>
    %cst_34 = arith.constant 0.176776692 : f32
    %84 = vector.broadcast %cst_34 : f32 to vector<32x32xf32>
    %85 = arith.mulf %83, %84 : vector<32x32xf32>
    %86 = arith.addf %85, %39 : vector<32x32xf32>
    %cst_35 = arith.constant dense<0xFF800000> : vector<32xf32>
    %87 = vector.multi_reduction <maximumf>, %86, %cst_35 [1] : vector<32x32xf32> to vector<32xf32>
    %88 = vector.shape_cast %87 : vector<32xf32> to vector<32x1xf32>
    %89 = vector.broadcast %88 : vector<32x1xf32> to vector<32x32xf32>
    %90 = arith.subf %86, %89 : vector<32x32xf32>
    %91 = math.exp %90 : vector<32x32xf32>
    %cst_36 = arith.constant dense<0.000000e+00> : vector<32xf32>
    %92 = vector.multi_reduction <add>, %91, %cst_36 [1] : vector<32x32xf32> to vector<32xf32>
    %93 = vector.shape_cast %92 : vector<32xf32> to vector<32x1xf32>
    %94 = tpu.reciprocal %93 {approx = true} : vector<32x1xf32> -> vector<32x1xf32>
    %95 = vector.broadcast %94 : vector<32x1xf32> to vector<32x32xf32>
    %96 = arith.mulf %91, %95 : vector<32x32xf32>
    %97 = arith.truncf %96 : vector<32x32xf32> to vector<32x32xbf16>
    %98 = arith.truncf %80 : vector<32x32xf32> to vector<32x32xbf16>
    %cst_37 = arith.constant dense<0.000000e+00> : vector<32x32xf32>
    %99 = tpu.matmul %97, %98, %cst_37 {dimension_numbers = #tpu.dot_dimension_numbers<[1], [0], [0], [1], [0, 0, 1, 1], [], []>} : vector<32x32xbf16>, vector<32x32xbf16>, vector<32x32xf32> -> vector<32x32xf32>
    %100 = arith.truncf %99 : vector<32x32xf32> to vector<32x32xbf16>
    %101 = vector.extract_strided_slice %76 {offsets = [0, 0], sizes = [32, 128], strides = [1, 1]} : vector<128x128xbf16> to vector<32x128xbf16>
    %cst_38 = arith.constant dense<0.000000e+00> : vector<32x128xf32>
    %102 = tpu.matmul %100, %101, %cst_38 {dimension_numbers = #tpu.dot_dimension_numbers<[1], [0], [0], [1], [0, 0, 1, 1], [], []>} : vector<32x32xbf16>, vector<32x128xbf16>, vector<32x128xf32> -> vector<32x128xf32>
    %103 = arith.addf %77, %102 : vector<32x128xf32>
    %104 = vector.extract_strided_slice %74 {offsets = [0, 32], sizes = [32, 32], strides = [1, 1]} : vector<32x384xf32> to vector<32x32xf32>
    %105 = vector.extract_strided_slice %74 {offsets = [0, 160], sizes = [32, 32], strides = [1, 1]} : vector<32x384xf32> to vector<32x32xf32>
    %106 = vector.extract_strided_slice %74 {offsets = [0, 288], sizes = [32, 32], strides = [1, 1]} : vector<32x384xf32> to vector<32x32xf32>
    %107 = arith.truncf %104 : vector<32x32xf32> to vector<32x32xbf16>
    %108 = arith.truncf %105 : vector<32x32xf32> to vector<32x32xbf16>
    %cst_39 = arith.constant dense<0.000000e+00> : vector<32x32xf32>
    %109 = tpu.matmul %107, %108, %cst_39 {dimension_numbers = #tpu.dot_dimension_numbers<[1], [1], [0], [0], [0, 0, 1, 0], [], []>} : vector<32x32xbf16>, vector<32x32xbf16>, vector<32x32xf32> -> vector<32x32xf32>
    %cst_40 = arith.constant 0.176776692 : f32
    %110 = vector.broadcast %cst_40 : f32 to vector<32x32xf32>
    %111 = arith.mulf %109, %110 : vector<32x32xf32>
    %112 = arith.addf %111, %39 : vector<32x32xf32>
    %cst_41 = arith.constant dense<0xFF800000> : vector<32xf32>
    %113 = vector.multi_reduction <maximumf>, %112, %cst_41 [1] : vector<32x32xf32> to vector<32xf32>
    %114 = vector.shape_cast %113 : vector<32xf32> to vector<32x1xf32>
    %115 = vector.broadcast %114 : vector<32x1xf32> to vector<32x32xf32>
    %116 = arith.subf %112, %115 : vector<32x32xf32>
    %117 = math.exp %116 : vector<32x32xf32>
    %cst_42 = arith.constant dense<0.000000e+00> : vector<32xf32>
    %118 = vector.multi_reduction <add>, %117, %cst_42 [1] : vector<32x32xf32> to vector<32xf32>
    %119 = vector.shape_cast %118 : vector<32xf32> to vector<32x1xf32>
    %120 = tpu.reciprocal %119 {approx = true} : vector<32x1xf32> -> vector<32x1xf32>
    %121 = vector.broadcast %120 : vector<32x1xf32> to vector<32x32xf32>
    %122 = arith.mulf %117, %121 : vector<32x32xf32>
    %123 = arith.truncf %122 : vector<32x32xf32> to vector<32x32xbf16>
    %124 = arith.truncf %106 : vector<32x32xf32> to vector<32x32xbf16>
    %cst_43 = arith.constant dense<0.000000e+00> : vector<32x32xf32>
    %125 = tpu.matmul %123, %124, %cst_43 {dimension_numbers = #tpu.dot_dimension_numbers<[1], [0], [0], [1], [0, 0, 1, 1], [], []>} : vector<32x32xbf16>, vector<32x32xbf16>, vector<32x32xf32> -> vector<32x32xf32>
    %126 = arith.truncf %125 : vector<32x32xf32> to vector<32x32xbf16>
    %127 = vector.extract_strided_slice %76 {offsets = [32, 0], sizes = [32, 128], strides = [1, 1]} : vector<128x128xbf16> to vector<32x128xbf16>
    %cst_44 = arith.constant dense<0.000000e+00> : vector<32x128xf32>
    %128 = tpu.matmul %126, %127, %cst_44 {dimension_numbers = #tpu.dot_dimension_numbers<[1], [0], [0], [1], [0, 0, 1, 1], [], []>} : vector<32x32xbf16>, vector<32x128xbf16>, vector<32x128xf32> -> vector<32x128xf32>
    %129 = arith.addf %103, %128 : vector<32x128xf32>
    %130 = vector.extract_strided_slice %74 {offsets = [0, 64], sizes = [32, 32], strides = [1, 1]} : vector<32x384xf32> to vector<32x32xf32>
    %131 = vector.extract_strided_slice %74 {offsets = [0, 192], sizes = [32, 32], strides = [1, 1]} : vector<32x384xf32> to vector<32x32xf32>
    %132 = vector.extract_strided_slice %74 {offsets = [0, 320], sizes = [32, 32], strides = [1, 1]} : vector<32x384xf32> to vector<32x32xf32>
    %133 = arith.truncf %130 : vector<32x32xf32> to vector<32x32xbf16>
    %134 = arith.truncf %131 : vector<32x32xf32> to vector<32x32xbf16>
    %cst_45 = arith.constant dense<0.000000e+00> : vector<32x32xf32>
    %135 = tpu.matmul %133, %134, %cst_45 {dimension_numbers = #tpu.dot_dimension_numbers<[1], [1], [0], [0], [0, 0, 1, 0], [], []>} : vector<32x32xbf16>, vector<32x32xbf16>, vector<32x32xf32> -> vector<32x32xf32>
    %cst_46 = arith.constant 0.176776692 : f32
    %136 = vector.broadcast %cst_46 : f32 to vector<32x32xf32>
    %137 = arith.mulf %135, %136 : vector<32x32xf32>
    %138 = arith.addf %137, %39 : vector<32x32xf32>
    %cst_47 = arith.constant dense<0xFF800000> : vector<32xf32>
    %139 = vector.multi_reduction <maximumf>, %138, %cst_47 [1] : vector<32x32xf32> to vector<32xf32>
    %140 = vector.shape_cast %139 : vector<32xf32> to vector<32x1xf32>
    %141 = vector.broadcast %140 : vector<32x1xf32> to vector<32x32xf32>
    %142 = arith.subf %138, %141 : vector<32x32xf32>
    %143 = math.exp %142 : vector<32x32xf32>
    %cst_48 = arith.constant dense<0.000000e+00> : vector<32xf32>
    %144 = vector.multi_reduction <add>, %143, %cst_48 [1] : vector<32x32xf32> to vector<32xf32>
    %145 = vector.shape_cast %144 : vector<32xf32> to vector<32x1xf32>
    %146 = tpu.reciprocal %145 {approx = true} : vector<32x1xf32> -> vector<32x1xf32>
    %147 = vector.broadcast %146 : vector<32x1xf32> to vector<32x32xf32>
    %148 = arith.mulf %143, %147 : vector<32x32xf32>
    %149 = arith.truncf %148 : vector<32x32xf32> to vector<32x32xbf16>
    %150 = arith.truncf %132 : vector<32x32xf32> to vector<32x32xbf16>
    %cst_49 = arith.constant dense<0.000000e+00> : vector<32x32xf32>
    %151 = tpu.matmul %149, %150, %cst_49 {dimension_numbers = #tpu.dot_dimension_numbers<[1], [0], [0], [1], [0, 0, 1, 1], [], []>} : vector<32x32xbf16>, vector<32x32xbf16>, vector<32x32xf32> -> vector<32x32xf32>
    %152 = arith.truncf %151 : vector<32x32xf32> to vector<32x32xbf16>
    %153 = vector.extract_strided_slice %76 {offsets = [64, 0], sizes = [32, 128], strides = [1, 1]} : vector<128x128xbf16> to vector<32x128xbf16>
    %cst_50 = arith.constant dense<0.000000e+00> : vector<32x128xf32>
    %154 = tpu.matmul %152, %153, %cst_50 {dimension_numbers = #tpu.dot_dimension_numbers<[1], [0], [0], [1], [0, 0, 1, 1], [], []>} : vector<32x32xbf16>, vector<32x128xbf16>, vector<32x128xf32> -> vector<32x128xf32>
    %155 = arith.addf %129, %154 : vector<32x128xf32>
    %156 = vector.extract_strided_slice %74 {offsets = [0, 96], sizes = [32, 32], strides = [1, 1]} : vector<32x384xf32> to vector<32x32xf32>
    %157 = vector.extract_strided_slice %74 {offsets = [0, 224], sizes = [32, 32], strides = [1, 1]} : vector<32x384xf32> to vector<32x32xf32>
    %158 = vector.extract_strided_slice %74 {offsets = [0, 352], sizes = [32, 32], strides = [1, 1]} : vector<32x384xf32> to vector<32x32xf32>
    %159 = arith.truncf %156 : vector<32x32xf32> to vector<32x32xbf16>
    %160 = arith.truncf %157 : vector<32x32xf32> to vector<32x32xbf16>
    %cst_51 = arith.constant dense<0.000000e+00> : vector<32x32xf32>
    %161 = tpu.matmul %159, %160, %cst_51 {dimension_numbers = #tpu.dot_dimension_numbers<[1], [1], [0], [0], [0, 0, 1, 0], [], []>} : vector<32x32xbf16>, vector<32x32xbf16>, vector<32x32xf32> -> vector<32x32xf32>
    %cst_52 = arith.constant 0.176776692 : f32
    %162 = vector.broadcast %cst_52 : f32 to vector<32x32xf32>
    %163 = arith.mulf %161, %162 : vector<32x32xf32>
    %164 = arith.addf %163, %39 : vector<32x32xf32>
    %cst_53 = arith.constant dense<0xFF800000> : vector<32xf32>
    %165 = vector.multi_reduction <maximumf>, %164, %cst_53 [1] : vector<32x32xf32> to vector<32xf32>
    %166 = vector.shape_cast %165 : vector<32xf32> to vector<32x1xf32>
    %167 = vector.broadcast %166 : vector<32x1xf32> to vector<32x32xf32>
    %168 = arith.subf %164, %167 : vector<32x32xf32>
    %169 = math.exp %168 : vector<32x32xf32>
    %cst_54 = arith.constant dense<0.000000e+00> : vector<32xf32>
    %170 = vector.multi_reduction <add>, %169, %cst_54 [1] : vector<32x32xf32> to vector<32xf32>
    %171 = vector.shape_cast %170 : vector<32xf32> to vector<32x1xf32>
    %172 = tpu.reciprocal %171 {approx = true} : vector<32x1xf32> -> vector<32x1xf32>
    %173 = vector.broadcast %172 : vector<32x1xf32> to vector<32x32xf32>
    %174 = arith.mulf %169, %173 : vector<32x32xf32>
    %175 = arith.truncf %174 : vector<32x32xf32> to vector<32x32xbf16>
    %176 = arith.truncf %158 : vector<32x32xf32> to vector<32x32xbf16>
    %cst_55 = arith.constant dense<0.000000e+00> : vector<32x32xf32>
    %177 = tpu.matmul %175, %176, %cst_55 {dimension_numbers = #tpu.dot_dimension_numbers<[1], [0], [0], [1], [0, 0, 1, 1], [], []>} : vector<32x32xbf16>, vector<32x32xbf16>, vector<32x32xf32> -> vector<32x32xf32>
    %178 = arith.truncf %177 : vector<32x32xf32> to vector<32x32xbf16>
    %179 = vector.extract_strided_slice %76 {offsets = [96, 0], sizes = [32, 128], strides = [1, 1]} : vector<128x128xbf16> to vector<32x128xbf16>
    %cst_56 = arith.constant dense<0.000000e+00> : vector<32x128xf32>
    %180 = tpu.matmul %178, %179, %cst_56 {dimension_numbers = #tpu.dot_dimension_numbers<[1], [0], [0], [1], [0, 0, 1, 1], [], []>} : vector<32x32xbf16>, vector<32x128xbf16>, vector<32x128xf32> -> vector<32x128xf32>
    %181 = arith.addf %155, %180 : vector<32x128xf32>
    %182 = arith.addf %40, %181 : vector<32x128xf32>
    %c0_57 = arith.constant 0 : index
    %c0_58 = arith.constant 0 : index
    %c0_59 = arith.constant 0 : index
    %183 = vector.load %arg6[%c0_57, %c0_58, %c0_59] : memref<2x1x128xf32, #tpu.memory_space<vmem>>, vector<1x1x128xf32>
    %184 = vector.shape_cast %183 : vector<1x1x128xf32> to vector<1x128xf32>
    %185 = vector.broadcast %184 : vector<1x128xf32> to vector<32x128xf32>
    %186 = arith.addf %182, %185 : vector<32x128xf32>
    %c0_60 = arith.constant 0 : index
    %c0_61 = arith.constant 0 : index
    %c0_62 = arith.constant 0 : index
    %187 = vector.load %arg7[%c0_60, %c0_61, %c0_62] : memref<2x1x128xf32, #tpu.memory_space<vmem>>, vector<1x1x128xf32>
    %188 = vector.shape_cast %187 : vector<1x1x128xf32> to vector<1x128xf32>
    %c0_63 = arith.constant 0 : index
    %c0_64 = arith.constant 0 : index
    %c0_65 = arith.constant 0 : index
    %189 = vector.load %arg8[%c0_63, %c0_64, %c0_65] : memref<2x1x128xf32, #tpu.memory_space<vmem>>, vector<1x1x128xf32>
    %190 = vector.shape_cast %189 : vector<1x1x128xf32> to vector<1x128xf32>
    %cst_66 = arith.constant dense<0.000000e+00> : vector<32xf32>
    %191 = vector.multi_reduction <add>, %186, %cst_66 [1] : vector<32x128xf32> to vector<32xf32>
    %192 = vector.shape_cast %191 : vector<32xf32> to vector<32x1xf32>
    %cst_67 = arith.constant 1.280000e+02 : f32
    %193 = vector.broadcast %cst_67 : f32 to vector<32x1xf32>
    %194 = arith.divf %192, %193 : vector<32x1xf32>
    %195 = vector.broadcast %194 : vector<32x1xf32> to vector<32x128xf32>
    %196 = arith.subf %186, %195 : vector<32x128xf32>
    %197 = arith.mulf %196, %196 : vector<32x128xf32>
    %cst_68 = arith.constant dense<0.000000e+00> : vector<32xf32>
    %198 = vector.multi_reduction <add>, %197, %cst_68 [1] : vector<32x128xf32> to vector<32xf32>
    %199 = vector.shape_cast %198 : vector<32xf32> to vector<32x1xf32>
    %cst_69 = arith.constant 1.280000e+02 : f32
    %200 = vector.broadcast %cst_69 : f32 to vector<32x1xf32>
    %201 = arith.divf %199, %200 : vector<32x1xf32>
    %202 = vector.broadcast %194 : vector<32x1xf32> to vector<32x128xf32>
    %203 = arith.subf %186, %202 : vector<32x128xf32>
    %cst_70 = arith.constant 9.99999974E-6 : f32
    %204 = vector.broadcast %cst_70 : f32 to vector<32x1xf32>
    %205 = arith.addf %201, %204 : vector<32x1xf32>
    %206 = math.rsqrt %205 : vector<32x1xf32>
    %207 = vector.broadcast %206 : vector<32x1xf32> to vector<32x128xf32>
    %208 = arith.mulf %203, %207 : vector<32x128xf32>
    %209 = vector.broadcast %188 : vector<1x128xf32> to vector<32x128xf32>
    %210 = arith.mulf %208, %209 : vector<32x128xf32>
    %211 = vector.broadcast %190 : vector<1x128xf32> to vector<32x128xf32>
    %212 = arith.addf %210, %211 : vector<32x128xf32>
    %213 = arith.truncf %212 : vector<32x128xf32> to vector<32x128xbf16>
    %c0_71 = arith.constant 0 : index
    %c0_72 = arith.constant 0 : index
    %c0_73 = arith.constant 0 : index
    %214 = vector.load %arg9[%c0_71, %c0_72, %c0_73] : memref<2x128x256xbf16, #tpu.memory_space<vmem>>, vector<1x128x256xbf16>
    %215 = vector.shape_cast %214 : vector<1x128x256xbf16> to vector<128x256xbf16>
    %cst_74 = arith.constant dense<0.000000e+00> : vector<32x256xf32>
    %216 = tpu.matmul %213, %215, %cst_74 {dimension_numbers = #tpu.dot_dimension_numbers<[1], [0], [0], [1], [0, 0, 1, 1], [], []>} : vector<32x128xbf16>, vector<128x256xbf16>, vector<32x256xf32> -> vector<32x256xf32>
    %c0_75 = arith.constant 0 : index
    %c0_76 = arith.constant 0 : index
    %c0_77 = arith.constant 0 : index
    %217 = vector.load %arg10[%c0_75, %c0_76, %c0_77] : memref<2x1x256xf32, #tpu.memory_space<vmem>>, vector<1x1x256xf32>
    %218 = vector.shape_cast %217 : vector<1x1x256xf32> to vector<1x256xf32>
    %219 = vector.broadcast %218 : vector<1x256xf32> to vector<32x256xf32>
    %220 = arith.addf %216, %219 : vector<32x256xf32>
    %cst_78 = arith.constant 0.000000e+00 : f32
    %221 = vector.broadcast %cst_78 : f32 to vector<32x256xf32>
    %222 = arith.maximumf %220, %221 : vector<32x256xf32>
    %223 = arith.truncf %222 : vector<32x256xf32> to vector<32x256xbf16>
    %c0_79 = arith.constant 0 : index
    %c0_80 = arith.constant 0 : index
    %c0_81 = arith.constant 0 : index
    %224 = vector.load %arg11[%c0_79, %c0_80, %c0_81] : memref<2x256x128xbf16, #tpu.memory_space<vmem>>, vector<1x256x128xbf16>
    %225 = vector.shape_cast %224 : vector<1x256x128xbf16> to vector<256x128xbf16>
    %cst_82 = arith.constant dense<0.000000e+00> : vector<32x128xf32>
    %226 = tpu.matmul %223, %225, %cst_82 {dimension_numbers = #tpu.dot_dimension_numbers<[1], [0], [0], [1], [0, 0, 1, 1], [], []>} : vector<32x256xbf16>, vector<256x128xbf16>, vector<32x128xf32> -> vector<32x128xf32>
    %c0_83 = arith.constant 0 : index
    %c0_84 = arith.constant 0 : index
    %c0_85 = arith.constant 0 : index
    %227 = vector.load %arg12[%c0_83, %c0_84, %c0_85] : memref<2x1x128xf32, #tpu.memory_space<vmem>>, vector<1x1x128xf32>
    %228 = vector.shape_cast %227 : vector<1x1x128xf32> to vector<1x128xf32>
    %229 = vector.broadcast %228 : vector<1x128xf32> to vector<32x128xf32>
    %230 = arith.addf %226, %229 : vector<32x128xf32>
    %231 = arith.addf %186, %230 : vector<32x128xf32>
    %c1 = arith.constant 1 : index
    %c0_86 = arith.constant 0 : index
    %c0_87 = arith.constant 0 : index
    %232 = vector.load %arg1[%c1, %c0_86, %c0_87] : memref<2x1x128xf32, #tpu.memory_space<vmem>>, vector<1x1x128xf32>
    %233 = vector.shape_cast %232 : vector<1x1x128xf32> to vector<1x128xf32>
    %c1_88 = arith.constant 1 : index
    %c0_89 = arith.constant 0 : index
    %c0_90 = arith.constant 0 : index
    %234 = vector.load %arg2[%c1_88, %c0_89, %c0_90] : memref<2x1x128xf32, #tpu.memory_space<vmem>>, vector<1x1x128xf32>
    %235 = vector.shape_cast %234 : vector<1x1x128xf32> to vector<1x128xf32>
    %cst_91 = arith.constant dense<0.000000e+00> : vector<32xf32>
    %236 = vector.multi_reduction <add>, %231, %cst_91 [1] : vector<32x128xf32> to vector<32xf32>
    %237 = vector.shape_cast %236 : vector<32xf32> to vector<32x1xf32>
    %cst_92 = arith.constant 1.280000e+02 : f32
    %238 = vector.broadcast %cst_92 : f32 to vector<32x1xf32>
    %239 = arith.divf %237, %238 : vector<32x1xf32>
    %240 = vector.broadcast %239 : vector<32x1xf32> to vector<32x128xf32>
    %241 = arith.subf %231, %240 : vector<32x128xf32>
    %242 = arith.mulf %241, %241 : vector<32x128xf32>
    %cst_93 = arith.constant dense<0.000000e+00> : vector<32xf32>
    %243 = vector.multi_reduction <add>, %242, %cst_93 [1] : vector<32x128xf32> to vector<32xf32>
    %244 = vector.shape_cast %243 : vector<32xf32> to vector<32x1xf32>
    %cst_94 = arith.constant 1.280000e+02 : f32
    %245 = vector.broadcast %cst_94 : f32 to vector<32x1xf32>
    %246 = arith.divf %244, %245 : vector<32x1xf32>
    %247 = vector.broadcast %239 : vector<32x1xf32> to vector<32x128xf32>
    %248 = arith.subf %231, %247 : vector<32x128xf32>
    %cst_95 = arith.constant 9.99999974E-6 : f32
    %249 = vector.broadcast %cst_95 : f32 to vector<32x1xf32>
    %250 = arith.addf %246, %249 : vector<32x1xf32>
    %251 = math.rsqrt %250 : vector<32x1xf32>
    %252 = vector.broadcast %251 : vector<32x1xf32> to vector<32x128xf32>
    %253 = arith.mulf %248, %252 : vector<32x128xf32>
    %254 = vector.broadcast %233 : vector<1x128xf32> to vector<32x128xf32>
    %255 = arith.mulf %253, %254 : vector<32x128xf32>
    %256 = vector.broadcast %235 : vector<1x128xf32> to vector<32x128xf32>
    %257 = arith.addf %255, %256 : vector<32x128xf32>
    %258 = arith.truncf %257 : vector<32x128xf32> to vector<32x128xbf16>
    %c1_96 = arith.constant 1 : index
    %c0_97 = arith.constant 0 : index
    %c0_98 = arith.constant 0 : index
    %259 = vector.load %arg3[%c1_96, %c0_97, %c0_98] : memref<2x128x384xbf16, #tpu.memory_space<vmem>>, vector<1x128x384xbf16>
    %260 = vector.shape_cast %259 : vector<1x128x384xbf16> to vector<128x384xbf16>
    %cst_99 = arith.constant dense<0.000000e+00> : vector<32x384xf32>
    %261 = tpu.matmul %258, %260, %cst_99 {dimension_numbers = #tpu.dot_dimension_numbers<[1], [0], [0], [1], [0, 0, 1, 1], [], []>} : vector<32x128xbf16>, vector<128x384xbf16>, vector<32x384xf32> -> vector<32x384xf32>
    %c1_100 = arith.constant 1 : index
    %c0_101 = arith.constant 0 : index
    %c0_102 = arith.constant 0 : index
    %262 = vector.load %arg4[%c1_100, %c0_101, %c0_102] : memref<2x1x384xf32, #tpu.memory_space<vmem>>, vector<1x1x384xf32>
    %263 = vector.shape_cast %262 : vector<1x1x384xf32> to vector<1x384xf32>
    %264 = vector.broadcast %263 : vector<1x384xf32> to vector<32x384xf32>
    %265 = arith.addf %261, %264 : vector<32x384xf32>
    %c1_103 = arith.constant 1 : index
    %c0_104 = arith.constant 0 : index
    %c0_105 = arith.constant 0 : index
    %266 = vector.load %arg5[%c1_103, %c0_104, %c0_105] : memref<2x128x128xbf16, #tpu.memory_space<vmem>>, vector<1x128x128xbf16>
    %267 = vector.shape_cast %266 : vector<1x128x128xbf16> to vector<128x128xbf16>
    %cst_106 = arith.constant 0.000000e+00 : f32
    %268 = vector.broadcast %cst_106 : f32 to vector<32x128xf32>
    %269 = vector.extract_strided_slice %265 {offsets = [0, 0], sizes = [32, 32], strides = [1, 1]} : vector<32x384xf32> to vector<32x32xf32>
    %270 = vector.extract_strided_slice %265 {offsets = [0, 128], sizes = [32, 32], strides = [1, 1]} : vector<32x384xf32> to vector<32x32xf32>
    %271 = vector.extract_strided_slice %265 {offsets = [0, 256], sizes = [32, 32], strides = [1, 1]} : vector<32x384xf32> to vector<32x32xf32>
    %272 = arith.truncf %269 : vector<32x32xf32> to vector<32x32xbf16>
    %273 = arith.truncf %270 : vector<32x32xf32> to vector<32x32xbf16>
    %cst_107 = arith.constant dense<0.000000e+00> : vector<32x32xf32>
    %274 = tpu.matmul %272, %273, %cst_107 {dimension_numbers = #tpu.dot_dimension_numbers<[1], [1], [0], [0], [0, 0, 1, 0], [], []>} : vector<32x32xbf16>, vector<32x32xbf16>, vector<32x32xf32> -> vector<32x32xf32>
    %cst_108 = arith.constant 0.176776692 : f32
    %275 = vector.broadcast %cst_108 : f32 to vector<32x32xf32>
    %276 = arith.mulf %274, %275 : vector<32x32xf32>
    %277 = arith.addf %276, %39 : vector<32x32xf32>
    %cst_109 = arith.constant dense<0xFF800000> : vector<32xf32>
    %278 = vector.multi_reduction <maximumf>, %277, %cst_109 [1] : vector<32x32xf32> to vector<32xf32>
    %279 = vector.shape_cast %278 : vector<32xf32> to vector<32x1xf32>
    %280 = vector.broadcast %279 : vector<32x1xf32> to vector<32x32xf32>
    %281 = arith.subf %277, %280 : vector<32x32xf32>
    %282 = math.exp %281 : vector<32x32xf32>
    %cst_110 = arith.constant dense<0.000000e+00> : vector<32xf32>
    %283 = vector.multi_reduction <add>, %282, %cst_110 [1] : vector<32x32xf32> to vector<32xf32>
    %284 = vector.shape_cast %283 : vector<32xf32> to vector<32x1xf32>
    %285 = tpu.reciprocal %284 {approx = true} : vector<32x1xf32> -> vector<32x1xf32>
    %286 = vector.broadcast %285 : vector<32x1xf32> to vector<32x32xf32>
    %287 = arith.mulf %282, %286 : vector<32x32xf32>
    %288 = arith.truncf %287 : vector<32x32xf32> to vector<32x32xbf16>
    %289 = arith.truncf %271 : vector<32x32xf32> to vector<32x32xbf16>
    %cst_111 = arith.constant dense<0.000000e+00> : vector<32x32xf32>
    %290 = tpu.matmul %288, %289, %cst_111 {dimension_numbers = #tpu.dot_dimension_numbers<[1], [0], [0], [1], [0, 0, 1, 1], [], []>} : vector<32x32xbf16>, vector<32x32xbf16>, vector<32x32xf32> -> vector<32x32xf32>
    %291 = arith.truncf %290 : vector<32x32xf32> to vector<32x32xbf16>
    %292 = vector.extract_strided_slice %267 {offsets = [0, 0], sizes = [32, 128], strides = [1, 1]} : vector<128x128xbf16> to vector<32x128xbf16>
    %cst_112 = arith.constant dense<0.000000e+00> : vector<32x128xf32>
    %293 = tpu.matmul %291, %292, %cst_112 {dimension_numbers = #tpu.dot_dimension_numbers<[1], [0], [0], [1], [0, 0, 1, 1], [], []>} : vector<32x32xbf16>, vector<32x128xbf16>, vector<32x128xf32> -> vector<32x128xf32>
    %294 = arith.addf %268, %293 : vector<32x128xf32>
    %295 = vector.extract_strided_slice %265 {offsets = [0, 32], sizes = [32, 32], strides = [1, 1]} : vector<32x384xf32> to vector<32x32xf32>
    %296 = vector.extract_strided_slice %265 {offsets = [0, 160], sizes = [32, 32], strides = [1, 1]} : vector<32x384xf32> to vector<32x32xf32>
    %297 = vector.extract_strided_slice %265 {offsets = [0, 288], sizes = [32, 32], strides = [1, 1]} : vector<32x384xf32> to vector<32x32xf32>
    %298 = arith.truncf %295 : vector<32x32xf32> to vector<32x32xbf16>
    %299 = arith.truncf %296 : vector<32x32xf32> to vector<32x32xbf16>
    %cst_113 = arith.constant dense<0.000000e+00> : vector<32x32xf32>
    %300 = tpu.matmul %298, %299, %cst_113 {dimension_numbers = #tpu.dot_dimension_numbers<[1], [1], [0], [0], [0, 0, 1, 0], [], []>} : vector<32x32xbf16>, vector<32x32xbf16>, vector<32x32xf32> -> vector<32x32xf32>
    %cst_114 = arith.constant 0.176776692 : f32
    %301 = vector.broadcast %cst_114 : f32 to vector<32x32xf32>
    %302 = arith.mulf %300, %301 : vector<32x32xf32>
    %303 = arith.addf %302, %39 : vector<32x32xf32>
    %cst_115 = arith.constant dense<0xFF800000> : vector<32xf32>
    %304 = vector.multi_reduction <maximumf>, %303, %cst_115 [1] : vector<32x32xf32> to vector<32xf32>
    %305 = vector.shape_cast %304 : vector<32xf32> to vector<32x1xf32>
    %306 = vector.broadcast %305 : vector<32x1xf32> to vector<32x32xf32>
    %307 = arith.subf %303, %306 : vector<32x32xf32>
    %308 = math.exp %307 : vector<32x32xf32>
    %cst_116 = arith.constant dense<0.000000e+00> : vector<32xf32>
    %309 = vector.multi_reduction <add>, %308, %cst_116 [1] : vector<32x32xf32> to vector<32xf32>
    %310 = vector.shape_cast %309 : vector<32xf32> to vector<32x1xf32>
    %311 = tpu.reciprocal %310 {approx = true} : vector<32x1xf32> -> vector<32x1xf32>
    %312 = vector.broadcast %311 : vector<32x1xf32> to vector<32x32xf32>
    %313 = arith.mulf %308, %312 : vector<32x32xf32>
    %314 = arith.truncf %313 : vector<32x32xf32> to vector<32x32xbf16>
    %315 = arith.truncf %297 : vector<32x32xf32> to vector<32x32xbf16>
    %cst_117 = arith.constant dense<0.000000e+00> : vector<32x32xf32>
    %316 = tpu.matmul %314, %315, %cst_117 {dimension_numbers = #tpu.dot_dimension_numbers<[1], [0], [0], [1], [0, 0, 1, 1], [], []>} : vector<32x32xbf16>, vector<32x32xbf16>, vector<32x32xf32> -> vector<32x32xf32>
    %317 = arith.truncf %316 : vector<32x32xf32> to vector<32x32xbf16>
    %318 = vector.extract_strided_slice %267 {offsets = [32, 0], sizes = [32, 128], strides = [1, 1]} : vector<128x128xbf16> to vector<32x128xbf16>
    %cst_118 = arith.constant dense<0.000000e+00> : vector<32x128xf32>
    %319 = tpu.matmul %317, %318, %cst_118 {dimension_numbers = #tpu.dot_dimension_numbers<[1], [0], [0], [1], [0, 0, 1, 1], [], []>} : vector<32x32xbf16>, vector<32x128xbf16>, vector<32x128xf32> -> vector<32x128xf32>
    %320 = arith.addf %294, %319 : vector<32x128xf32>
    %321 = vector.extract_strided_slice %265 {offsets = [0, 64], sizes = [32, 32], strides = [1, 1]} : vector<32x384xf32> to vector<32x32xf32>
    %322 = vector.extract_strided_slice %265 {offsets = [0, 192], sizes = [32, 32], strides = [1, 1]} : vector<32x384xf32> to vector<32x32xf32>
    %323 = vector.extract_strided_slice %265 {offsets = [0, 320], sizes = [32, 32], strides = [1, 1]} : vector<32x384xf32> to vector<32x32xf32>
    %324 = arith.truncf %321 : vector<32x32xf32> to vector<32x32xbf16>
    %325 = arith.truncf %322 : vector<32x32xf32> to vector<32x32xbf16>
    %cst_119 = arith.constant dense<0.000000e+00> : vector<32x32xf32>
    %326 = tpu.matmul %324, %325, %cst_119 {dimension_numbers = #tpu.dot_dimension_numbers<[1], [1], [0], [0], [0, 0, 1, 0], [], []>} : vector<32x32xbf16>, vector<32x32xbf16>, vector<32x32xf32> -> vector<32x32xf32>
    %cst_120 = arith.constant 0.176776692 : f32
    %327 = vector.broadcast %cst_120 : f32 to vector<32x32xf32>
    %328 = arith.mulf %326, %327 : vector<32x32xf32>
    %329 = arith.addf %328, %39 : vector<32x32xf32>
    %cst_121 = arith.constant dense<0xFF800000> : vector<32xf32>
    %330 = vector.multi_reduction <maximumf>, %329, %cst_121 [1] : vector<32x32xf32> to vector<32xf32>
    %331 = vector.shape_cast %330 : vector<32xf32> to vector<32x1xf32>
    %332 = vector.broadcast %331 : vector<32x1xf32> to vector<32x32xf32>
    %333 = arith.subf %329, %332 : vector<32x32xf32>
    %334 = math.exp %333 : vector<32x32xf32>
    %cst_122 = arith.constant dense<0.000000e+00> : vector<32xf32>
    %335 = vector.multi_reduction <add>, %334, %cst_122 [1] : vector<32x32xf32> to vector<32xf32>
    %336 = vector.shape_cast %335 : vector<32xf32> to vector<32x1xf32>
    %337 = tpu.reciprocal %336 {approx = true} : vector<32x1xf32> -> vector<32x1xf32>
    %338 = vector.broadcast %337 : vector<32x1xf32> to vector<32x32xf32>
    %339 = arith.mulf %334, %338 : vector<32x32xf32>
    %340 = arith.truncf %339 : vector<32x32xf32> to vector<32x32xbf16>
    %341 = arith.truncf %323 : vector<32x32xf32> to vector<32x32xbf16>
    %cst_123 = arith.constant dense<0.000000e+00> : vector<32x32xf32>
    %342 = tpu.matmul %340, %341, %cst_123 {dimension_numbers = #tpu.dot_dimension_numbers<[1], [0], [0], [1], [0, 0, 1, 1], [], []>} : vector<32x32xbf16>, vector<32x32xbf16>, vector<32x32xf32> -> vector<32x32xf32>
    %343 = arith.truncf %342 : vector<32x32xf32> to vector<32x32xbf16>
    %344 = vector.extract_strided_slice %267 {offsets = [64, 0], sizes = [32, 128], strides = [1, 1]} : vector<128x128xbf16> to vector<32x128xbf16>
    %cst_124 = arith.constant dense<0.000000e+00> : vector<32x128xf32>
    %345 = tpu.matmul %343, %344, %cst_124 {dimension_numbers = #tpu.dot_dimension_numbers<[1], [0], [0], [1], [0, 0, 1, 1], [], []>} : vector<32x32xbf16>, vector<32x128xbf16>, vector<32x128xf32> -> vector<32x128xf32>
    %346 = arith.addf %320, %345 : vector<32x128xf32>
    %347 = vector.extract_strided_slice %265 {offsets = [0, 96], sizes = [32, 32], strides = [1, 1]} : vector<32x384xf32> to vector<32x32xf32>
    %348 = vector.extract_strided_slice %265 {offsets = [0, 224], sizes = [32, 32], strides = [1, 1]} : vector<32x384xf32> to vector<32x32xf32>
    %349 = vector.extract_strided_slice %265 {offsets = [0, 352], sizes = [32, 32], strides = [1, 1]} : vector<32x384xf32> to vector<32x32xf32>
    %350 = arith.truncf %347 : vector<32x32xf32> to vector<32x32xbf16>
    %351 = arith.truncf %348 : vector<32x32xf32> to vector<32x32xbf16>
    %cst_125 = arith.constant dense<0.000000e+00> : vector<32x32xf32>
    %352 = tpu.matmul %350, %351, %cst_125 {dimension_numbers = #tpu.dot_dimension_numbers<[1], [1], [0], [0], [0, 0, 1, 0], [], []>} : vector<32x32xbf16>, vector<32x32xbf16>, vector<32x32xf32> -> vector<32x32xf32>
    %cst_126 = arith.constant 0.176776692 : f32
    %353 = vector.broadcast %cst_126 : f32 to vector<32x32xf32>
    %354 = arith.mulf %352, %353 : vector<32x32xf32>
    %355 = arith.addf %354, %39 : vector<32x32xf32>
    %cst_127 = arith.constant dense<0xFF800000> : vector<32xf32>
    %356 = vector.multi_reduction <maximumf>, %355, %cst_127 [1] : vector<32x32xf32> to vector<32xf32>
    %357 = vector.shape_cast %356 : vector<32xf32> to vector<32x1xf32>
    %358 = vector.broadcast %357 : vector<32x1xf32> to vector<32x32xf32>
    %359 = arith.subf %355, %358 : vector<32x32xf32>
    %360 = math.exp %359 : vector<32x32xf32>
    %cst_128 = arith.constant dense<0.000000e+00> : vector<32xf32>
    %361 = vector.multi_reduction <add>, %360, %cst_128 [1] : vector<32x32xf32> to vector<32xf32>
    %362 = vector.shape_cast %361 : vector<32xf32> to vector<32x1xf32>
    %363 = tpu.reciprocal %362 {approx = true} : vector<32x1xf32> -> vector<32x1xf32>
    %364 = vector.broadcast %363 : vector<32x1xf32> to vector<32x32xf32>
    %365 = arith.mulf %360, %364 : vector<32x32xf32>
    %366 = arith.truncf %365 : vector<32x32xf32> to vector<32x32xbf16>
    %367 = arith.truncf %349 : vector<32x32xf32> to vector<32x32xbf16>
    %cst_129 = arith.constant dense<0.000000e+00> : vector<32x32xf32>
    %368 = tpu.matmul %366, %367, %cst_129 {dimension_numbers = #tpu.dot_dimension_numbers<[1], [0], [0], [1], [0, 0, 1, 1], [], []>} : vector<32x32xbf16>, vector<32x32xbf16>, vector<32x32xf32> -> vector<32x32xf32>
    %369 = arith.truncf %368 : vector<32x32xf32> to vector<32x32xbf16>
    %370 = vector.extract_strided_slice %267 {offsets = [96, 0], sizes = [32, 128], strides = [1, 1]} : vector<128x128xbf16> to vector<32x128xbf16>
    %cst_130 = arith.constant dense<0.000000e+00> : vector<32x128xf32>
    %371 = tpu.matmul %369, %370, %cst_130 {dimension_numbers = #tpu.dot_dimension_numbers<[1], [0], [0], [1], [0, 0, 1, 1], [], []>} : vector<32x32xbf16>, vector<32x128xbf16>, vector<32x128xf32> -> vector<32x128xf32>
    %372 = arith.addf %346, %371 : vector<32x128xf32>
    %373 = arith.addf %231, %372 : vector<32x128xf32>
    %c1_131 = arith.constant 1 : index
    %c0_132 = arith.constant 0 : index
    %c0_133 = arith.constant 0 : index
    %374 = vector.load %arg6[%c1_131, %c0_132, %c0_133] : memref<2x1x128xf32, #tpu.memory_space<vmem>>, vector<1x1x128xf32>
    %375 = vector.shape_cast %374 : vector<1x1x128xf32> to vector<1x128xf32>
    %376 = vector.broadcast %375 : vector<1x128xf32> to vector<32x128xf32>
    %377 = arith.addf %373, %376 : vector<32x128xf32>
    %c1_134 = arith.constant 1 : index
    %c0_135 = arith.constant 0 : index
    %c0_136 = arith.constant 0 : index
    %378 = vector.load %arg7[%c1_134, %c0_135, %c0_136] : memref<2x1x128xf32, #tpu.memory_space<vmem>>, vector<1x1x128xf32>
    %379 = vector.shape_cast %378 : vector<1x1x128xf32> to vector<1x128xf32>
    %c1_137 = arith.constant 1 : index
    %c0_138 = arith.constant 0 : index
    %c0_139 = arith.constant 0 : index
    %380 = vector.load %arg8[%c1_137, %c0_138, %c0_139] : memref<2x1x128xf32, #tpu.memory_space<vmem>>, vector<1x1x128xf32>
    %381 = vector.shape_cast %380 : vector<1x1x128xf32> to vector<1x128xf32>
    %cst_140 = arith.constant dense<0.000000e+00> : vector<32xf32>
    %382 = vector.multi_reduction <add>, %377, %cst_140 [1] : vector<32x128xf32> to vector<32xf32>
    %383 = vector.shape_cast %382 : vector<32xf32> to vector<32x1xf32>
    %cst_141 = arith.constant 1.280000e+02 : f32
    %384 = vector.broadcast %cst_141 : f32 to vector<32x1xf32>
    %385 = arith.divf %383, %384 : vector<32x1xf32>
    %386 = vector.broadcast %385 : vector<32x1xf32> to vector<32x128xf32>
    %387 = arith.subf %377, %386 : vector<32x128xf32>
    %388 = arith.mulf %387, %387 : vector<32x128xf32>
    %cst_142 = arith.constant dense<0.000000e+00> : vector<32xf32>
    %389 = vector.multi_reduction <add>, %388, %cst_142 [1] : vector<32x128xf32> to vector<32xf32>
    %390 = vector.shape_cast %389 : vector<32xf32> to vector<32x1xf32>
    %cst_143 = arith.constant 1.280000e+02 : f32
    %391 = vector.broadcast %cst_143 : f32 to vector<32x1xf32>
    %392 = arith.divf %390, %391 : vector<32x1xf32>
    %393 = vector.broadcast %385 : vector<32x1xf32> to vector<32x128xf32>
    %394 = arith.subf %377, %393 : vector<32x128xf32>
    %cst_144 = arith.constant 9.99999974E-6 : f32
    %395 = vector.broadcast %cst_144 : f32 to vector<32x1xf32>
    %396 = arith.addf %392, %395 : vector<32x1xf32>
    %397 = math.rsqrt %396 : vector<32x1xf32>
    %398 = vector.broadcast %397 : vector<32x1xf32> to vector<32x128xf32>
    %399 = arith.mulf %394, %398 : vector<32x128xf32>
    %400 = vector.broadcast %379 : vector<1x128xf32> to vector<32x128xf32>
    %401 = arith.mulf %399, %400 : vector<32x128xf32>
    %402 = vector.broadcast %381 : vector<1x128xf32> to vector<32x128xf32>
    %403 = arith.addf %401, %402 : vector<32x128xf32>
    %404 = arith.truncf %403 : vector<32x128xf32> to vector<32x128xbf16>
    %c1_145 = arith.constant 1 : index
    %c0_146 = arith.constant 0 : index
    %c0_147 = arith.constant 0 : index
    %405 = vector.load %arg9[%c1_145, %c0_146, %c0_147] : memref<2x128x256xbf16, #tpu.memory_space<vmem>>, vector<1x128x256xbf16>
    %406 = vector.shape_cast %405 : vector<1x128x256xbf16> to vector<128x256xbf16>
    %cst_148 = arith.constant dense<0.000000e+00> : vector<32x256xf32>
    %407 = tpu.matmul %404, %406, %cst_148 {dimension_numbers = #tpu.dot_dimension_numbers<[1], [0], [0], [1], [0, 0, 1, 1], [], []>} : vector<32x128xbf16>, vector<128x256xbf16>, vector<32x256xf32> -> vector<32x256xf32>
    %c1_149 = arith.constant 1 : index
    %c0_150 = arith.constant 0 : index
    %c0_151 = arith.constant 0 : index
    %408 = vector.load %arg10[%c1_149, %c0_150, %c0_151] : memref<2x1x256xf32, #tpu.memory_space<vmem>>, vector<1x1x256xf32>
    %409 = vector.shape_cast %408 : vector<1x1x256xf32> to vector<1x256xf32>
    %410 = vector.broadcast %409 : vector<1x256xf32> to vector<32x256xf32>
    %411 = arith.addf %407, %410 : vector<32x256xf32>
    %cst_152 = arith.constant 0.000000e+00 : f32
    %412 = vector.broadcast %cst_152 : f32 to vector<32x256xf32>
    %413 = arith.maximumf %411, %412 : vector<32x256xf32>
    %414 = arith.truncf %413 : vector<32x256xf32> to vector<32x256xbf16>
    %c1_153 = arith.constant 1 : index
    %c0_154 = arith.constant 0 : index
    %c0_155 = arith.constant 0 : index
    %415 = vector.load %arg11[%c1_153, %c0_154, %c0_155] : memref<2x256x128xbf16, #tpu.memory_space<vmem>>, vector<1x256x128xbf16>
    %416 = vector.shape_cast %415 : vector<1x256x128xbf16> to vector<256x128xbf16>
    %cst_156 = arith.constant dense<0.000000e+00> : vector<32x128xf32>
    %417 = tpu.matmul %414, %416, %cst_156 {dimension_numbers = #tpu.dot_dimension_numbers<[1], [0], [0], [1], [0, 0, 1, 1], [], []>} : vector<32x256xbf16>, vector<256x128xbf16>, vector<32x128xf32> -> vector<32x128xf32>
    %c1_157 = arith.constant 1 : index
    %c0_158 = arith.constant 0 : index
    %c0_159 = arith.constant 0 : index
    %418 = vector.load %arg12[%c1_157, %c0_158, %c0_159] : memref<2x1x128xf32, #tpu.memory_space<vmem>>, vector<1x1x128xf32>
    %419 = vector.shape_cast %418 : vector<1x1x128xf32> to vector<1x128xf32>
    %420 = vector.broadcast %419 : vector<1x128xf32> to vector<32x128xf32>
    %421 = arith.addf %417, %420 : vector<32x128xf32>
    %422 = arith.addf %377, %421 : vector<32x128xf32>
    %423 = arith.truncf %422 : vector<32x128xf32> to vector<32x128xbf16>
    %c0_160 = arith.constant 0 : index
    %c0_161 = arith.constant 0 : index
    %424 = vector.load %arg13[%c0_160, %c0_161] : memref<128x256xbf16, #tpu.memory_space<vmem>>, vector<128x256xbf16>
    %cst_162 = arith.constant dense<0.000000e+00> : vector<32x256xf32>
    %425 = tpu.matmul %423, %424, %cst_162 {dimension_numbers = #tpu.dot_dimension_numbers<[1], [0], [0], [1], [0, 0, 1, 1], [], []>} : vector<32x128xbf16>, vector<128x256xbf16>, vector<32x256xf32> -> vector<32x256xf32>
    %c0_163 = arith.constant 0 : index
    %c0_164 = arith.constant 0 : index
    %426 = vector.load %arg14[%c0_163, %c0_164] : memref<1x256xf32, #tpu.memory_space<vmem>>, vector<1x256xf32>
    %427 = vector.broadcast %426 : vector<1x256xf32> to vector<32x256xf32>
    %428 = arith.addf %425, %427 : vector<32x256xf32>
    %c0_165 = arith.constant 0 : index
    %c0_166 = arith.constant 0 : index
    %429 = vector.load %arg15[%c0_165, %c0_166] : memref<32x256xf32, #tpu.memory_space<vmem>>, vector<32x256xf32>
    tpu.vector_store %arg15[%c0_165, %c0_166], %428 {strides = array<i32>} : memref<32x256xf32, #tpu.memory_space<vmem>>, vector<32x256xf32>,
    return
  }
}

</mosaic_0001>

<llo_original>
// kernel: torch_lm_forward.1
$region0: #{torch_lm_forward.1}
  #allocation0 [shape = 'u32[]', space=smem, size = 0x4, offset = 0x4, fixed_abs, tag = 'smem constant byte address 0x4 - core index']
  #allocation1 [shape = 'u32[144,128]{1,0:T(1,128)}', space=vmem, size = 0x12000, scoped, tag = 'internal scratch']
  %s0 = inlined_call_operand.vmem [shape: f32[32,128], index: 0, kind: input, shape index: {}]
  %s1 = inlined_call_operand.vmem [shape: f32[2,1,128], index: 1, kind: input, shape index: {}]
  %s2 = inlined_call_operand.vmem [shape: f32[2,1,128], index: 2, kind: input, shape index: {}]
  %s3 = inlined_call_operand.vmem [shape: bf16[2,128,384], index: 3, kind: input, shape index: {}]
  %s4 = inlined_call_operand.vmem [shape: f32[2,1,384], index: 4, kind: input, shape index: {}]
  %s5 = inlined_call_operand.vmem [shape: bf16[2,128,128], index: 5, kind: input, shape index: {}]
  %s6 = inlined_call_operand.vmem [shape: f32[2,1,128], index: 6, kind: input, shape index: {}]
  %s7 = inlined_call_operand.vmem [shape: f32[2,1,128], index: 7, kind: input, shape index: {}]
  %s8 = inlined_call_operand.vmem [shape: f32[2,1,128], index: 8, kind: input, shape index: {}]
  %s9 = inlined_call_operand.vmem [shape: bf16[2,128,256], index: 9, kind: input, shape index: {}]
  %s10 = inlined_call_operand.vmem [shape: f32[2,1,256], index: 10, kind: input, shape index: {}]
  %s11 = inlined_call_operand.vmem [shape: bf16[2,256,128], index: 11, kind: input, shape index: {}]
  %s12 = inlined_call_operand.vmem [shape: f32[2,1,128], index: 12, kind: input, shape index: {}]
  %s13 = inlined_call_operand.vmem [shape: bf16[128,256], index: 13, kind: input, shape index: {}]
  %s14 = inlined_call_operand.vmem [shape: f32[1,256], index: 14, kind: input, shape index: {}]
  %s15 = inlined_call_operand.vmem [shape: f32[32,256], index: 15, kind: output, shape index: {}]
  %s16 = sld [smem:[#allocation0]]
  $region70: #{torch_lm_forward.1} parent=0
    _
  %s18 = ssub.s32 1, %s16
  %s19 = scalar_select 0, %s18, %s16
  // Predicated region
  $region2: #{torch_lm_forward.1} parent=0 // pred_check
    _
  $region3: #{torch_lm_forward.1} parent=0 // pred_check_branch
    %21 = sbr.rel (0) target = $region5
  $region4: #{torch_lm_forward.1} parent=0 // pred_region
    _
  $region5: #{torch_lm_forward.1} parent=0 // pred_fallthru
    _
  // Predicated region
  $region6: #{torch_lm_forward.1} parent=0 // pred_check
    _
  $region7: #{torch_lm_forward.1} parent=0 // pred_check_branch
    %23 = sbr.rel (0) target = $region9
  $region8: #{torch_lm_forward.1} parent=0 // pred_region
    _
  $region9: #{torch_lm_forward.1} parent=0 // pred_fallthru
    _
  // Predicated region
  $region10: #{torch_lm_forward.1} parent=0 // pred_check
    _
  $region11: #{torch_lm_forward.1} parent=0 // pred_check_branch
    %25 = sbr.rel (0) target = $region13
  $region12: #{torch_lm_forward.1} parent=0 // pred_region
    _
  $region13: #{torch_lm_forward.1} parent=0 // pred_fallthru
    _
  // Predicated region
  $region14: #{torch_lm_forward.1} parent=0 // pred_check
    _
  $region15: #{torch_lm_forward.1} parent=0 // pred_check_branch
    %27 = sbr.rel (0) target = $region17
  $region16: #{torch_lm_forward.1} parent=0 // pred_region
    _
  $region17: #{torch_lm_forward.1} parent=0 // pred_fallthru
    _
  // Predicated region
  $region18: #{torch_lm_forward.1} parent=0 // pred_check
    _
  $region19: #{torch_lm_forward.1} parent=0 // pred_check_branch
    %29 = sbr.rel (0) target = $region21
  $region20: #{torch_lm_forward.1} parent=0 // pred_region
    _
  $region21: #{torch_lm_forward.1} parent=0 // pred_fallthru
    _
  // Predicated region
  $region22: #{torch_lm_forward.1} parent=0 // pred_check
    _
  $region23: #{torch_lm_forward.1} parent=0 // pred_check_branch
    %31 = sbr.rel (0) target = $region25
  $region24: #{torch_lm_forward.1} parent=0 // pred_region
    _
  $region25: #{torch_lm_forward.1} parent=0 // pred_fallthru
    _
  // Predicated region
  $region26: #{torch_lm_forward.1} parent=0 // pred_check
    _
  $region27: #{torch_lm_forward.1} parent=0 // pred_check_branch
    %33 = sbr.rel (0) target = $region29
  $region28: #{torch_lm_forward.1} parent=0 // pred_region
    _
  $region29: #{torch_lm_forward.1} parent=0 // pred_fallthru
    _
  // Predicated region
  $region30: #{torch_lm_forward.1} parent=0 // pred_check
    _
  $region31: #{torch_lm_forward.1} parent=0 // pred_check_branch
    %35 = sbr.rel (0) target = $region33
  $region32: #{torch_lm_forward.1} parent=0 // pred_region
    _
  $region33: #{torch_lm_forward.1} parent=0 // pred_fallthru
    _
  // Predicated region
  $region34: #{torch_lm_forward.1} parent=0 // pred_check
    _
  $region35: #{torch_lm_forward.1} parent=0 // pred_check_branch
    %37 = sbr.rel (0) target = $region37
  $region36: #{torch_lm_forward.1} parent=0 // pred_region
    _
  $region37: #{torch_lm_forward.1} parent=0 // pred_fallthru
    _
  // Predicated region
  $region38: #{torch_lm_forward.1} parent=0 // pred_check
    _
  $region39: #{torch_lm_forward.1} parent=0 // pred_check_branch
    %39 = sbr.rel (0) target = $region41
  $region40: #{torch_lm_forward.1} parent=0 // pred_region
    _
  $region41: #{torch_lm_forward.1} parent=0 // pred_fallthru
    _
  // Predicated region
  $region42: #{torch_lm_forward.1} parent=0 // pred_check
    _
  $region43: #{torch_lm_forward.1} parent=0 // pred_check_branch
    %41 = sbr.rel (0) target = $region45
  $region44: #{torch_lm_forward.1} parent=0 // pred_region
    _
  $region45: #{torch_lm_forward.1} parent=0 // pred_fallthru
    _
  // Predicated region
  $region46: #{torch_lm_forward.1} parent=0 // pred_check
    _
  $region47: #{torch_lm_forward.1} parent=0 // pred_check_branch
    %43 = sbr.rel (0) target = $region49
  $region48: #{torch_lm_forward.1} parent=0 // pred_region
    _
  $region49: #{torch_lm_forward.1} parent=0 // pred_fallthru
    _
  // Predicated region
  $region50: #{torch_lm_forward.1} parent=0 // pred_check
    _
  $region51: #{torch_lm_forward.1} parent=0 // pred_check_branch
    %45 = sbr.rel (0) target = $region53
  $region52: #{torch_lm_forward.1} parent=0 // pred_region
    _
  $region53: #{torch_lm_forward.1} parent=0 // pred_fallthru
    _
  // Predicated region
  $region54: #{torch_lm_forward.1} parent=0 // pred_check
    _
  $region55: #{torch_lm_forward.1} parent=0 // pred_check_branch
    %47 = sbr.rel (0) target = $region57
  $region56: #{torch_lm_forward.1} parent=0 // pred_region
    _
  $region57: #{torch_lm_forward.1} parent=0 // pred_fallthru
    _
  // Predicated region
  $region58: #{torch_lm_forward.1} parent=0 // pred_check
    _
  $region59: #{torch_lm_forward.1} parent=0 // pred_check_branch
    %49 = sbr.rel (0) target = $region61
  $region60: #{torch_lm_forward.1} parent=0 // pred_region
    _
  $region61: #{torch_lm_forward.1} parent=0 // pred_fallthru
    _
  %v51 = vlaneseq
  %v52 = vshrl.u32 %v51, 7
  %v53 = vadd.s32 %v52, 8
  %v54 = vadd.s32 %v52, 16
  %v55 = vadd.s32 %v52, 24
  %v56 = vlaneseq
  %v57 = vand.u32 %v56, 127
  %vm58 = vcmp.lt.s32.totalorder %v52, 0
  %v59 = vsub.s32 0, %v52
  %v60 = vsel %vm58, %v59, %v52
  %v61 = vshrl.u32 %v60, 1
  %v62 = vand.u32 %v60, 1
  %v63 = vsub.s32 0, %v62
  %v64 = vsel %vm58, %v63, %v62
  %vm65 = vcmp.lt.s32.totalorder %v53, 0
  %v66 = vsub.s32 0, %v53
  %v67 = vsel %vm65, %v66, %v53
  %v68 = vshrl.u32 %v67, 1
  %v69 = vand.u32 %v67, 1
  %v70 = vsub.s32 0, %v69
  %v71 = vsel %vm65, %v70, %v69
  %vm72 = vcmp.lt.s32.totalorder %v54, 0
  %v73 = vsub.s32 0, %v54
  %v74 = vsel %vm72, %v73, %v54
  %v75 = vshrl.u32 %v74, 1
  %v76 = vand.u32 %v74, 1
  %v77 = vsub.s32 0, %v76
  %v78 = vsel %vm72, %v77, %v76
  %vm79 = vcmp.lt.s32.totalorder %v55, 0
  %v80 = vsub.s32 0, %v55
  %v81 = vsel %vm79, %v80, %v55
  %v82 = vshrl.u32 %v81, 1
  %v83 = vand.u32 %v81, 1
  %v84 = vsub.s32 0, %v83
  %v85 = vsel %vm79, %v84, %v83
  %vm86 = vcmp.ne.s32.totalorder %v64, 0
  %vm87 = vcmp.ne.s32.totalorder %v71, 0
  %vm88 = vcmp.ne.s32.totalorder %v78, 0
  %vm89 = vcmp.ne.s32.totalorder %v85, 0
  %vm90 = vcmp.lt.s32.totalorder %v64, 0
  %vm91 = vcmp.lt.s32.totalorder %v71, 0
  %vm92 = vcmp.lt.s32.totalorder %v78, 0
  %vm93 = vcmp.lt.s32.totalorder %v85, 0
  %vm94 = vmand %vm90, %vm86
  %vm95 = vmand %vm91, %vm87
  %vm96 = vmand %vm92, %vm88
  %vm97 = vmand %vm93, %vm89
  %v98 = vadd.s32 %v64, 2
  %v99 = vadd.s32 %v71, 2
  %v100 = vadd.s32 %v78, 2
  %v101 = vadd.s32 %v85, 2
  %v102 = vsel %vm94, %v98, %v64
  %v103 = vsel %vm95, %v99, %v71
  %v104 = vsel %vm96, %v100, %v78
  %v105 = vsel %vm97, %v101, %v85
  %vm106 = vcmp.lt.s32.totalorder %v57, 0
  %v107 = vsub.s32 0, %v57
  %v108 = vsel %vm106, %v107, %v57
  %v109 = vshrl.u32 %v108, 1
  %v110 = vand.u32 %v108, 1
  %v111 = vsub.s32 0, %v110
  %v112 = vsel %vm106, %v111, %v110
  %vm113 = vcmp.ne.s32.totalorder %v112, 0
  %vm114 = vcmp.lt.s32.totalorder %v112, 0
  %vm115 = vmand %vm114, %vm113
  %v116 = vadd.s32 %v112, 2
  %v117 = vsel %vm115, %v116, %v112
  %vm118 = vcmp.eq.s32.totalorder %v102, %v117
  %vm119 = vcmp.eq.s32.totalorder %v103, %v117
  %vm120 = vcmp.eq.s32.totalorder %v104, %v117
  %vm121 = vcmp.eq.s32.totalorder %v105, %v117
  %vm122 = vcmp.le.s32.totalorder %v57, %v52
  %vm123 = vcmp.le.s32.totalorder %v57, %v53
  %vm124 = vcmp.le.s32.totalorder %v57, %v54
  %vm125 = vcmp.le.s32.totalorder %v57, %v55
  %vm126 = vmand %vm118, %vm122
  %vm127 = vmand %vm119, %vm123
  %vm128 = vmand %vm120, %vm124
  %vm129 = vmand %vm121, %vm125
  %v130 = vsel %vm126, 0.0, -1e+30
  %v131 = vsel %vm127, 0.0, -1e+30
  %v132 = vsel %vm128, 0.0, -1e+30
  %v133 = vsel %vm129, 0.0, -1e+30
  %v134 = vld [vmem:[%s0] sm:$0xff]
  %v135 = vld [vmem:[%s0 + $0x8] sm:$0xff]
  %v136 = vld [vmem:[%s0 + $0x10] sm:$0xff]
  %v137 = vld [vmem:[%s0 + $0x18] sm:$0xff]
  %v138 = vld [vmem:[%s1] sm:$0x1]
  %v139 = vld [vmem:[%s2] sm:$0x1]
  %140 = vadd.xlane.f32.xlu0 %v134
  %v141 = vpop.xlane.xlu0 %140
  %142 = vadd.xlane.f32.xlu0 %v135
  %v143 = vpop.xlane.xlu0 %142
  %144 = vadd.xlane.f32.xlu0 %v136
  %v145 = vpop.xlane.xlu0 %144
  %146 = vadd.xlane.f32.xlu0 %v137
  %v147 = vpop.xlane.xlu0 %146
  %v148 = vrcp.pop 128.0
  %v149 = vmul.f32 %v141, %v148
  %v150 = vmul.f32 %v143, %v148
  %v151 = vmul.f32 %v145, %v148
  %v152 = vmul.f32 %v147, %v148
  %v153 = vsub.f32 %v134, %v149
  %v154 = vsub.f32 %v135, %v150
  %v155 = vsub.f32 %v136, %v151
  %v156 = vsub.f32 %v137, %v152
  %v157 = vmul.f32 %v153, %v153
  %v158 = vmul.f32 %v154, %v154
  %v159 = vmul.f32 %v155, %v155
  %v160 = vmul.f32 %v156, %v156
  %161 = vadd.xlane.f32.xlu0 %v157
  %v162 = vpop.xlane.xlu0 %161
  %163 = vadd.xlane.f32.xlu0 %v158
  %v164 = vpop.xlane.xlu0 %163
  %165 = vadd.xlane.f32.xlu0 %v159
  %v166 = vpop.xlane.xlu0 %165
  %167 = vadd.xlane.f32.xlu0 %v160
  %v168 = vpop.xlane.xlu0 %167
  %v169 = vmul.f32 %v162, %v148
  %v170 = vmul.f32 %v164, %v148
  %v171 = vmul.f32 %v166, %v148
  %v172 = vmul.f32 %v168, %v148
  %v173 = vadd.f32 %v169, 1e-05
  %v174 = vadd.f32 %v170, 1e-05
  %v175 = vadd.f32 %v171, 1e-05
  %v176 = vadd.f32 %v172, 1e-05
  %v177 = vrsqrt.pop %v173
  %v178 = vrsqrt.pop %v174
  %v179 = vrsqrt.pop %v175
  %v180 = vrsqrt.pop %v176
  %v181 = vmul.f32 %v153, %v177
  %v182 = vmul.f32 %v154, %v178
  %v183 = vmul.f32 %v155, %v179
  %v184 = vmul.f32 %v156, %v180
  %v186 = vlaneseq
  %v187 = vshrl.u32 %v186, 7
  %v188 = vsub.s32 0, %v187
  %v189 = vrot.slane %v138, %v188
  %v191 = vmul.f32 %v181, %v189
  %v192 = vmul.f32 %v182, %v189
  %v193 = vmul.f32 %v183, %v189
  %v194 = vmul.f32 %v184, %v189
  %v196 = vlaneseq
  %v197 = vshrl.u32 %v196, 7
  %v198 = vsub.s32 0, %v197
  %v199 = vrot.slane %v139, %v198
  %v201 = vadd.f32 %v191, %v199
  %v202 = vadd.f32 %v192, %v199
  %v203 = vadd.f32 %v193, %v199
  %v204 = vadd.f32 %v194, %v199
  %v205 = vpack.c.bf16 %v202, %v201
  %v206 = vpack.c.bf16 %v204, %v203
  %v207 = vld [vmem:[%s3] sm:$0xff]
  %v208 = vld [vmem:[%s3 + $0x8] sm:$0xf]
  %v209 = vld [vmem:[%s3 + $0xc] sm:$0xff]
  %v210 = vld [vmem:[%s3 + $0x14] sm:$0xf]
  %v211 = vld [vmem:[%s3 + $0x18] sm:$0xff]
  %v212 = vld [vmem:[%s3 + $0x20] sm:$0xf]
  %v213 = vld [vmem:[%s3 + $0x24] sm:$0xff]
  %v214 = vld [vmem:[%s3 + $0x2c] sm:$0xf]
  %v215 = vld [vmem:[%s3 + $0x30] sm:$0xff]
  %v216 = vld [vmem:[%s3 + $0x38] sm:$0xf]
  %v217 = vld [vmem:[%s3 + $0x3c] sm:$0xff]
  %v218 = vld [vmem:[%s3 + $0x44] sm:$0xf]
  %v219 = vld [vmem:[%s3 + $0x48] sm:$0xff]
  %v220 = vld [vmem:[%s3 + $0x50] sm:$0xf]
  %v221 = vld [vmem:[%s3 + $0x54] sm:$0xff]
  %v222 = vld [vmem:[%s3 + $0x5c] sm:$0xf]
  %v223 = vld [vmem:[%s3 + $0x60] sm:$0xff]
  %v224 = vld [vmem:[%s3 + $0x68] sm:$0xf]
  %v225 = vld [vmem:[%s3 + $0x6c] sm:$0xff]
  %v226 = vld [vmem:[%s3 + $0x74] sm:$0xf]
  %v227 = vld [vmem:[%s3 + $0x78] sm:$0xff]
  %v228 = vld [vmem:[%s3 + $0x80] sm:$0xf]
  %v229 = vld [vmem:[%s3 + $0x84] sm:$0xff]
  %v230 = vld [vmem:[%s3 + $0x8c] sm:$0xf]
  %v231 = vld [vmem:[%s3 + $0x90] sm:$0xff]
  %v232 = vld [vmem:[%s3 + $0x98] sm:$0xf]
  %v233 = vld [vmem:[%s3 + $0x9c] sm:$0xff]
  %v234 = vld [vmem:[%s3 + $0xa4] sm:$0xf]
  %v235 = vld [vmem:[%s3 + $0xa8] sm:$0xff]
  %v236 = vld [vmem:[%s3 + $0xb0] sm:$0xf]
  %v237 = vld [vmem:[%s3 + $0xb4] sm:$0xff]
  %v238 = vld [vmem:[%s3 + $0xbc] sm:$0xf]
  %v239 = vld [vmem:[%s4] sm:$0x7]
  %v241 = vlaneseq
  %v242 = vshrl.u32 %v241, 7
  %v243 = vsub.s32 0, %v242
  %v244 = vrot.slane %v239, %v243
  %v245 = vlaneseq
  %v246 = vshrl.u32 %v245, 7
  %v247 = vsub.s32 1, %v246
  %v248 = vrot.slane %v239, %v247
  %v249 = vlaneseq
  %v250 = vshrl.u32 %v249, 7
  %v251 = vsub.s32 2, %v250
  %v252 = vrot.slane %v239, %v251
  %v288 = vunpack.c.l.b16 %v207
  %v289 = vunpack.c.h.b16 %v207
  %v290 = vunpack.c.l.b16 %v208
  %v291 = vunpack.c.l.b16 %v209
  %v292 = vunpack.c.h.b16 %v209
  %v293 = vunpack.c.l.b16 %v210
  %v294 = vunpack.c.l.b16 %v211
  %v295 = vunpack.c.h.b16 %v211
  %v296 = vunpack.c.l.b16 %v212
  %v297 = vunpack.c.l.b16 %v213
  %v298 = vunpack.c.h.b16 %v213
  %v299 = vunpack.c.l.b16 %v214
  %v300 = vunpack.c.l.b16 %v215
  %v301 = vunpack.c.h.b16 %v215
  %v302 = vunpack.c.l.b16 %v216
  %v303 = vunpack.c.l.b16 %v217
  %v304 = vunpack.c.h.b16 %v217
  %v305 = vunpack.c.l.b16 %v218
  %v306 = vunpack.c.l.b16 %v219
  %v307 = vunpack.c.h.b16 %v219
  %v308 = vunpack.c.l.b16 %v220
  %v309 = vunpack.c.l.b16 %v221
  %v310 = vunpack.c.h.b16 %v221
  %v311 = vunpack.c.l.b16 %v222
  %v312 = vunpack.c.l.b16 %v223
  %v313 = vunpack.c.h.b16 %v223
  %v314 = vunpack.c.l.b16 %v224
  %v315 = vunpack.c.l.b16 %v225
  %v316 = vunpack.c.h.b16 %v225
  %v317 = vunpack.c.l.b16 %v226
  %v318 = vunpack.c.l.b16 %v227
  %v319 = vunpack.c.h.b16 %v227
  %v320 = vunpack.c.l.b16 %v228
  %v321 = vunpack.c.l.b16 %v229
  %v322 = vunpack.c.h.b16 %v229
  %v323 = vunpack.c.l.b16 %v230
  %v324 = vunpack.c.l.b16 %v231
  %v325 = vunpack.c.h.b16 %v231
  %v326 = vunpack.c.l.b16 %v232
  %v327 = vunpack.c.l.b16 %v233
  %v328 = vunpack.c.h.b16 %v233
  %v329 = vunpack.c.l.b16 %v234
  %v330 = vunpack.c.l.b16 %v235
  %v331 = vunpack.c.h.b16 %v235
  %v332 = vunpack.c.l.b16 %v236
  %v333 = vunpack.c.l.b16 %v237
  %v334 = vunpack.c.h.b16 %v237
  %v335 = vunpack.c.l.b16 %v238
  %v336 = vpack.c.b16 %v291, %v288
  %v337 = vpack.c.b16 %v292, %v289
  %v338 = vpack.c.b16 %v293, %v290
  %v339 = vpack.c.b16 %v297, %v294
  %v340 = vpack.c.b16 %v298, %v295
  %v341 = vpack.c.b16 %v299, %v296
  %v342 = vpack.c.b16 %v303, %v300
  %v343 = vpack.c.b16 %v304, %v301
  %v344 = vpack.c.b16 %v305, %v302
  %v345 = vpack.c.b16 %v309, %v306
  %v346 = vpack.c.b16 %v310, %v307
  %v347 = vpack.c.b16 %v311, %v308
  %v348 = vpack.c.b16 %v315, %v312
  %v349 = vpack.c.b16 %v316, %v313
  %v350 = vpack.c.b16 %v317, %v314
  %v351 = vpack.c.b16 %v321, %v318
  %v352 = vpack.c.b16 %v322, %v319
  %v353 = vpack.c.b16 %v323, %v320
  %v354 = vpack.c.b16 %v327, %v324
  %v355 = vpack.c.b16 %v328, %v325
  %v356 = vpack.c.b16 %v329, %v326
  %v357 = vpack.c.b16 %v333, %v330
  %v358 = vpack.c.b16 %v334, %v331
  %v359 = vpack.c.b16 %v335, %v332
  %384 = vmatprep.subr.bf16.mxu0 %v358
  %385 = vmatpush1.bf16.msra.mxu0 %v357
  %386 = vmatprep.subr.bf16.mxu0 %v355
  %387 = vmatpush1.bf16.msra.mxu0 %v354
  %388 = vmatprep.subr.bf16.mxu0 %v352
  %389 = vmatpush1.bf16.msra.mxu0 %v351
  %390 = vmatprep.subr.bf16.mxu0 %v349
  %391 = vmatpush1.bf16.msra.mxu0 %v348
  %392 = vmatprep.subr.bf16.mxu0 %v346
  %393 = vmatpush1.bf16.msra.mxu0 %v345
  %394 = vmatprep.subr.bf16.mxu0 %v343
  %395 = vmatpush1.bf16.msra.mxu0 %v342
  %396 = vmatprep.subr.bf16.mxu0 %v340
  %397 = vmatpush1.bf16.msra.mxu0 %v339
  %398 = vmatprep.subr.bf16.mxu0 %v337
  %399 = vmatpush1.bf16.msra.mxu0 %v336
  %400 = vmatprep.subr.bf16.mxu0 0
  %401 = vmatpush2.bf16.msra.mxu0 0
  %402 = vmatprep.subr.bf16.mxu0 0
  %403 = vmatpush2.bf16.msra.mxu0 0
  %404 = vmatprep.subr.bf16.mxu0 0
  %405 = vmatpush2.bf16.msra.mxu0 0
  %406 = vmatprep.subr.bf16.mxu0 0
  %407 = vmatpush2.bf16.msra.mxu0 0
  %408 = vmatprep.subr.bf16.mxu0 0
  %409 = vmatpush2.bf16.msra.mxu0 0
  %410 = vmatprep.subr.bf16.mxu0 0
  %411 = vmatpush2.bf16.msra.mxu0 0
  %412 = vmatprep.subr.bf16.mxu0 0
  %413 = vmatpush2.bf16.msra.mxu0 0
  %414 = vmatprep.subr.bf16.mxu0 0
  %415 = vmatpush2.bf16.msra.mxu0 0
  %416 = vmatprep.mubr.bf16.mxu0 0
  %417 = vmatmul.mubr.bf16.gmra.mxu0 %v205
  %v418 = vpop.f32.mrf.mxu0
  %v419 = vadd.f32 %v244, %v418
  %v420 = vpop.f32.mrf.mxu0
  %v421 = vadd.f32 %v248, %v420
  %v422 = vpop.f32.mrf.mxu0
  %v423 = vadd.f32 %v244, %v422
  %v424 = vpop.f32.mrf.mxu0
  %v425 = vadd.f32 %v248, %v424
  %426 = vmatprep.mubr.bf16.mxu0 0
  %427 = vmatmul.mubr.bf16.gmra.mxu0 %v206
  %v428 = vpop.f32.mrf.mxu0
  %v429 = vadd.f32 %v244, %v428
  %v430 = vpop.f32.mrf.mxu0
  %v431 = vadd.f32 %v248, %v430
  %v432 = vpop.f32.mrf.mxu0
  %v433 = vadd.f32 %v244, %v432
  %v434 = vpop.f32.mrf.mxu0
  %v435 = vadd.f32 %v248, %v434
  %436 = vdwg.mxu0
  %437 = vmatprep.subr.bf16.mxu0 0
  %438 = vmatpush1.bf16.msra.mxu0 %v359
  %439 = vmatprep.subr.bf16.mxu0 0
  %440 = vmatpush1.bf16.msra.mxu0 %v356
  %441 = vmatprep.subr.bf16.mxu0 0
  %442 = vmatpush1.bf16.msra.mxu0 %v353
  %443 = vmatprep.subr.bf16.mxu0 0
  %444 = vmatpush1.bf16.msra.mxu0 %v350
  %445 = vmatprep.subr.bf16.mxu0 0
  %446 = vmatpush1.bf16.msra.mxu0 %v347
  %447 = vmatprep.subr.bf16.mxu0 0
  %448 = vmatpush1.bf16.msra.mxu0 %v344
  %449 = vmatprep.subr.bf16.mxu0 0
  %450 = vmatpush1.bf16.msra.mxu0 %v341
  %451 = vmatprep.subr.bf16.mxu0 0
  %452 = vmatpush1.bf16.msra.mxu0 %v338
  %453 = vmatprep.subr.bf16.mxu0 0
  %454 = vmatpush2.bf16.msra.mxu0 0
  %455 = vmatprep.subr.bf16.mxu0 0
  %456 = vmatpush2.bf16.msra.mxu0 0
  %457 = vmatprep.subr.bf16.mxu0 0
  %458 = vmatpush2.bf16.msra.mxu0 0
  %459 = vmatprep.subr.bf16.mxu0 0
  %460 = vmatpush2.bf16.msra.mxu0 0
  %461 = vmatprep.subr.bf16.mxu0 0
  %462 = vmatpush2.bf16.msra.mxu0 0
  %463 = vmatprep.subr.bf16.mxu0 0
  %464 = vmatpush2.bf16.msra.mxu0 0
  %465 = vmatprep.subr.bf16.mxu0 0
  %466 = vmatpush2.bf16.msra.mxu0 0
  %467 = vmatprep.subr.bf16.mxu0 0
  %468 = vmatpush2.bf16.msra.mxu0 0
  %469 = vmatprep.mubr.bf16.mxu0 0
  %470 = vmatmul.mubr.bf16.gmra.mxu0 %v205
  %v471 = vpop.f32.mrf.mxu0
  %v472 = vadd.f32 %v252, %v471
  %v473 = vpop.f32.mrf.mxu0
  %v474 = vpop.f32.mrf.mxu0
  %v475 = vadd.f32 %v252, %v474
  %v476 = vpop.f32.mrf.mxu0
  %477 = vmatprep.mubr.bf16.mxu0 0
  %478 = vmatmul.mubr.bf16.gmra.mxu0 %v206
  %v479 = vpop.f32.mrf.mxu0
  %v480 = vadd.f32 %v252, %v479
  %v481 = vpop.f32.mrf.mxu0
  %v482 = vpop.f32.mrf.mxu0
  %v483 = vadd.f32 %v252, %v482
  %v484 = vpop.f32.mrf.mxu0
  %485 = vdwg.mxu0
  %v486 = vld [vmem:[%s5] sm:$0xf]
  %v487 = vld [vmem:[%s5 + $0x4] sm:$0xf]
  %v488 = vld [vmem:[%s5 + $0x8] sm:$0xf]
  %v489 = vld [vmem:[%s5 + $0xc] sm:$0xf]
  %v490 = vld [vmem:[%s5 + $0x10] sm:$0xf]
  %v491 = vld [vmem:[%s5 + $0x14] sm:$0xf]
  %v492 = vld [vmem:[%s5 + $0x18] sm:$0xf]
  %v493 = vld [vmem:[%s5 + $0x1c] sm:$0xf]
  %v494 = vld [vmem:[%s5 + $0x20] sm:$0xf]
  %v495 = vld [vmem:[%s5 + $0x24] sm:$0xf]
  %v496 = vld [vmem:[%s5 + $0x28] sm:$0xf]
  %v497 = vld [vmem:[%s5 + $0x2c] sm:$0xf]
  %v498 = vld [vmem:[%s5 + $0x30] sm:$0xf]
  %v499 = vld [vmem:[%s5 + $0x34] sm:$0xf]
  %v500 = vld [vmem:[%s5 + $0x38] sm:$0xf]
  %v501 = vld [vmem:[%s5 + $0x3c] sm:$0xf]
  %v502 = vpack.c.bf16 %v423, %v419
  %v503 = vpack.c.bf16 %v433, %v429
  %v504 = vpack.c.bf16 %v425, %v421
  %v505 = vpack.c.bf16 %v435, %v431
  %vm506 = vcmask 261120
  %v508 = vsel %vm506, %v502, 0
  %v511 = vsel %vm506, %v503, 0
  %v514 = vsel %vm506, %v504, 0
  %v517 = vsel %vm506, %v505, 0
  %519 = vmatprep.subr.bf16.mxu0 0
  %520 = vmatpush1.bf16.xpose.msra.mxu0 0
  %521 = vmatprep.subr.bf16.mxu0 0
  %522 = vmatpush1.bf16.xpose.msra.mxu0 0
  %523 = vmatprep.subr.bf16.mxu0 0
  %524 = vmatpush1.bf16.xpose.msra.mxu0 0
  %525 = vmatprep.subr.bf16.mxu0 0
  %526 = vmatpush1.bf16.xpose.msra.mxu0 0
  %527 = vmatprep.subr.bf16.mxu0 0
  %528 = vmatpush1.bf16.xpose.msra.mxu0 0
  %529 = vmatprep.subr.bf16.mxu0 0
  %530 = vmatpush1.bf16.xpose.msra.mxu0 0
  %531 = vmatprep.subr.bf16.mxu0 0
  %532 = vmatpush1.bf16.xpose.msra.mxu0 %v517
  %533 = vmatprep.subr.bf16.mxu0 0
  %534 = vmatpush1.bf16.xpose.msra.mxu0 %v514
  %535 = vmatprep.subr.bf16.mxu0 0
  %536 = vmatpush2.bf16.xpose.msra.mxu0 0
  %537 = vmatprep.subr.bf16.mxu0 0
  %538 = vmatpush2.bf16.xpose.msra.mxu0 0
  %539 = vmatprep.subr.bf16.mxu0 0
  %540 = vmatpush2.bf16.xpose.msra.mxu0 0
  %541 = vmatprep.subr.bf16.mxu0 0
  %542 = vmatpush2.bf16.xpose.msra.mxu0 0
  %543 = vmatprep.subr.bf16.mxu0 0
  %544 = vmatpush2.bf16.xpose.msra.mxu0 0
  %545 = vmatprep.subr.bf16.mxu0 0
  %546 = vmatpush2.bf16.xpose.msra.mxu0 0
  %547 = vmatprep.subr.bf16.mxu0 0
  %548 = vmatpush2.bf16.xpose.msra.mxu0 0
  %549 = vmatprep.subr.bf16.mxu0 0
  %550 = vmatpush2.bf16.xpose.msra.mxu0 0
  %551 = vmatprep.mubr.bf16.mxu0 0
  %552 = vmatmul.mubr.bf16.gmra.mxu0 %v508
  %v553 = vpop.f32.mrf.mxu0
  %v554 = vadd.f32 0.0, %v553
  %v555 = vpop.f32.mrf.mxu0
  %v556 = vpop.f32.mrf.mxu0
  %v557 = vadd.f32 0.0, %v556
  %v558 = vpop.f32.mrf.mxu0
  %559 = vmatprep.mubr.bf16.mxu0 0
  %560 = vmatmul.mubr.bf16.gmra.mxu0 %v511
  %v561 = vpop.f32.mrf.mxu0
  %v562 = vadd.f32 0.0, %v561
  %v563 = vpop.f32.mrf.mxu0
  %v564 = vpop.f32.mrf.mxu0
  %v565 = vadd.f32 0.0, %v564
  %v566 = vpop.f32.mrf.mxu0
  %567 = vdwg.mxu0
  %v568 = vmul.f32 %v554, 0.17677669
  %v569 = vmul.f32 %v557, 0.17677669
  %v570 = vmul.f32 %v562, 0.17677669
  %v571 = vmul.f32 %v565, 0.17677669
  %v572 = vadd.f32 %v568, %v130
  %v573 = vadd.f32 %v569, %v131
  %v574 = vadd.f32 %v570, %v132
  %v575 = vadd.f32 %v571, %v133
  %v576 = vsel %vm506, %v572, -inf
  %577 = vmax.xlane.f32.xlu0 %v576
  %v578 = vpop.xlane.xlu0 %577
  %v579 = vsel %vm506, %v573, -inf
  %580 = vmax.xlane.f32.xlu0 %v579
  %v581 = vpop.xlane.xlu0 %580
  %v582 = vsel %vm506, %v574, -inf
  %583 = vmax.xlane.f32.xlu0 %v582
  %v584 = vpop.xlane.xlu0 %583
  %v585 = vsel %vm506, %v575, -inf
  %586 = vmax.xlane.f32.xlu0 %v585
  %v587 = vpop.xlane.xlu0 %586
  %v588 = vsub.f32 %v572, %v578
  %v589 = vsub.f32 %v573, %v581
  %v590 = vsub.f32 %v574, %v584
  %v591 = vsub.f32 %v575, %v587
  %v592 = vmul.f32 %v588, 1.442695
  %v593 = vpow.pop %v592
  %v594 = vmul.f32 %v589, 1.442695
  %v595 = vpow.pop %v594
  %v596 = vmul.f32 %v590, 1.442695
  %v597 = vpow.pop %v596
  %v598 = vmul.f32 %v591, 1.442695
  %v599 = vpow.pop %v598
  %v600 = vsel %vm506, %v593, 0.0
  %601 = vadd.xlane.f32.xlu0 %v600
  %v602 = vpop.xlane.xlu0 %601
  %v603 = vsel %vm506, %v595, 0.0
  %604 = vadd.xlane.f32.xlu0 %v603
  %v605 = vpop.xlane.xlu0 %604
  %v606 = vsel %vm506, %v597, 0.0
  %607 = vadd.xlane.f32.xlu0 %v606
  %v608 = vpop.xlane.xlu0 %607
  %v609 = vsel %vm506, %v599, 0.0
  %610 = vadd.xlane.f32.xlu0 %v609
  %v611 = vpop.xlane.xlu0 %610
  %v612 = vrcp.pop %v602
  %v613 = vrcp.pop %v605
  %v614 = vrcp.pop %v608
  %v615 = vrcp.pop %v611
  %v616 = vmul.f32 %v593, %v612
  %v617 = vmul.f32 %v595, %v613
  %v618 = vmul.f32 %v597, %v614
  %v619 = vmul.f32 %v599, %v615
  %v620 = vpack.c.bf16 %v617, %v616
  %v621 = vpack.c.bf16 %v619, %v618
  %v622 = vpack.c.bf16 %v475, %v472
  %v623 = vpack.c.bf16 %v483, %v480
  %v625 = vsel %vm506, %v620, 0
  %v628 = vsel %vm506, %v621, 0
  %630 = vmatprep.subr.bf16.mxu0 0
  %631 = vmatpush1.bf16.msra.mxu0 0
  %632 = vmatprep.subr.bf16.mxu0 0
  %633 = vmatpush1.bf16.msra.mxu0 0
  %634 = vmatprep.subr.bf16.mxu0 0
  %635 = vmatpush1.bf16.msra.mxu0 0
  %636 = vmatprep.subr.bf16.mxu0 0
  %637 = vmatpush1.bf16.msra.mxu0 0
  %638 = vmatprep.subr.bf16.mxu0 0
  %639 = vmatpush1.bf16.msra.mxu0 0
  %640 = vmatprep.subr.bf16.mxu0 0
  %641 = vmatpush1.bf16.msra.mxu0 0
  %642 = vmatprep.subr.bf16.mxu0 0
  %643 = vmatpush1.bf16.msra.mxu0 %v623
  %644 = vmatprep.subr.bf16.mxu0 0
  %645 = vmatpush1.bf16.msra.mxu0 %v622
  %646 = vmatprep.subr.bf16.mxu0 0
  %647 = vmatpush2.bf16.msra.mxu0 0
  %648 = vmatprep.subr.bf16.mxu0 0
  %649 = vmatpush2.bf16.msra.mxu0 0
  %650 = vmatprep.subr.bf16.mxu0 0
  %651 = vmatpush2.bf16.msra.mxu0 0
  %652 = vmatprep.subr.bf16.mxu0 0
  %653 = vmatpush2.bf16.msra.mxu0 0
  %654 = vmatprep.subr.bf16.mxu0 0
  %655 = vmatpush2.bf16.msra.mxu0 0
  %656 = vmatprep.subr.bf16.mxu0 0
  %657 = vmatpush2.bf16.msra.mxu0 0
  %658 = vmatprep.subr.bf16.mxu0 0
  %659 = vmatpush2.bf16.msra.mxu0 0
  %660 = vmatprep.subr.bf16.mxu0 0
  %661 = vmatpush2.bf16.msra.mxu0 0
  %662 = vmatprep.mubr.bf16.mxu0 0
  %663 = vmatmul.mubr.bf16.gmra.mxu0 %v625
  %v664 = vpop.f32.mrf.mxu0
  %v665 = vadd.f32 0.0, %v664
  %v666 = vpop.f32.mrf.mxu0
  %v667 = vpop.f32.mrf.mxu0
  %v668 = vadd.f32 0.0, %v667
  %v669 = vpop.f32.mrf.mxu0
  %670 = vmatprep.mubr.bf16.mxu0 0
  %671 = vmatmul.mubr.bf16.gmra.mxu0 %v628
  %v672 = vpop.f32.mrf.mxu0
  %v673 = vadd.f32 0.0, %v672
  %v674 = vpop.f32.mrf.mxu0
  %v675 = vpop.f32.mrf.mxu0
  %v676 = vadd.f32 0.0, %v675
  %v677 = vpop.f32.mrf.mxu0
  %678 = vdwg.mxu0
  %v679 = vpack.c.bf16 %v668, %v665
  %v680 = vpack.c.bf16 %v676, %v673
  %683 = vrot.lane.b32.xlu0 %v502, 96
  %v684 = vpop.permute.xlu0 %683
  %685 = vrot.lane.b32.xlu0 %v503, 96
  %v686 = vpop.permute.xlu0 %685
  %689 = vrot.lane.b32.xlu0 %v504, 96
  %v690 = vpop.permute.xlu0 %689
  %691 = vrot.lane.b32.xlu0 %v505, 96
  %v692 = vpop.permute.xlu0 %691
  %v694 = vsel %vm506, %v684, 0
  %v697 = vsel %vm506, %v686, 0
  %v700 = vsel %vm506, %v690, 0
  %v703 = vsel %vm506, %v692, 0
  %705 = vmatprep.subr.bf16.mxu0 0
  %706 = vmatpush1.bf16.xpose.msra.mxu0 0
  %707 = vmatprep.subr.bf16.mxu0 0
  %708 = vmatpush1.bf16.xpose.msra.mxu0 0
  %709 = vmatprep.subr.bf16.mxu0 0
  %710 = vmatpush1.bf16.xpose.msra.mxu0 0
  %711 = vmatprep.subr.bf16.mxu0 0
  %712 = vmatpush1.bf16.xpose.msra.mxu0 0
  %713 = vmatprep.subr.bf16.mxu0 0
  %714 = vmatpush1.bf16.xpose.msra.mxu0 0
  %715 = vmatprep.subr.bf16.mxu0 0
  %716 = vmatpush1.bf16.xpose.msra.mxu0 0
  %717 = vmatprep.subr.bf16.mxu0 0
  %718 = vmatpush1.bf16.xpose.msra.mxu0 %v703
  %719 = vmatprep.subr.bf16.mxu0 0
  %720 = vmatpush1.bf16.xpose.msra.mxu0 %v700
  %721 = vmatprep.subr.bf16.mxu0 0
  %722 = vmatpush2.bf16.xpose.msra.mxu0 0
  %723 = vmatprep.subr.bf16.mxu0 0
  %724 = vmatpush2.bf16.xpose.msra.mxu0 0
  %725 = vmatprep.subr.bf16.mxu0 0
  %726 = vmatpush2.bf16.xpose.msra.mxu0 0
  %727 = vmatprep.subr.bf16.mxu0 0
  %728 = vmatpush2.bf16.xpose.msra.mxu0 0
  %729 = vmatprep.subr.bf16.mxu0 0
  %730 = vmatpush2.bf16.xpose.msra.mxu0 0
  %731 = vmatprep.subr.bf16.mxu0 0
  %732 = vmatpush2.bf16.xpose.msra.mxu0 0
  %733 = vmatprep.subr.bf16.mxu0 0
  %734 = vmatpush2.bf16.xpose.msra.mxu0 0
  %735 = vmatprep.subr.bf16.mxu0 0
  %736 = vmatpush2.bf16.xpose.msra.mxu0 0
  %737 = vmatprep.mubr.bf16.mxu0 0
  %738 = vmatmul.mubr.bf16.gmra.mxu0 %v694
  %v739 = vpop.f32.mrf.mxu0
  %v740 = vadd.f32 0.0, %v739
  %v741 = vpop.f32.mrf.mxu0
  %v742 = vpop.f32.mrf.mxu0
  %v743 = vadd.f32 0.0, %v742
  %v744 = vpop.f32.mrf.mxu0
  %745 = vmatprep.mubr.bf16.mxu0 0
  %746 = vmatmul.mubr.bf16.gmra.mxu0 %v697
  %v747 = vpop.f32.mrf.mxu0
  %v748 = vadd.f32 0.0, %v747
  %v749 = vpop.f32.mrf.mxu0
  %v750 = vpop.f32.mrf.mxu0
  %v751 = vadd.f32 0.0, %v750
  %v752 = vpop.f32.mrf.mxu0
  %753 = vdwg.mxu0
  %v754 = vmul.f32 %v740, 0.17677669
  %v755 = vmul.f32 %v743, 0.17677669
  %v756 = vmul.f32 %v748, 0.17677669
  %v757 = vmul.f32 %v751, 0.17677669
  %v758 = vadd.f32 %v754, %v130
  %v759 = vadd.f32 %v755, %v131
  %v760 = vadd.f32 %v756, %v132
  %v761 = vadd.f32 %v757, %v133
  %v762 = vsel %vm506, %v758, -inf
  %763 = vmax.xlane.f32.xlu0 %v762
  %v764 = vpop.xlane.xlu0 %763
  %v765 = vsel %vm506, %v759, -inf
  %766 = vmax.xlane.f32.xlu0 %v765
  %v767 = vpop.xlane.xlu0 %766
  %v768 = vsel %vm506, %v760, -inf
  %769 = vmax.xlane.f32.xlu0 %v768
  %v770 = vpop.xlane.xlu0 %769
  %v771 = vsel %vm506, %v761, -inf
  %772 = vmax.xlane.f32.xlu0 %v771
  %v773 = vpop.xlane.xlu0 %772
  %v774 = vsub.f32 %v758, %v764
  %v775 = vsub.f32 %v759, %v767
  %v776 = vsub.f32 %v760, %v770
  %v777 = vsub.f32 %v761, %v773
  %v778 = vmul.f32 %v774, 1.442695
  %v779 = vpow.pop %v778
  %v780 = vmul.f32 %v775, 1.442695
  %v781 = vpow.pop %v780
  %v782 = vmul.f32 %v776, 1.442695
  %v783 = vpow.pop %v782
  %v784 = vmul.f32 %v777, 1.442695
  %v785 = vpow.pop %v784
  %v786 = vsel %vm506, %v779, 0.0
  %787 = vadd.xlane.f32.xlu0 %v786
  %v788 = vpop.xlane.xlu0 %787
  %v789 = vsel %vm506, %v781, 0.0
  %790 = vadd.xlane.f32.xlu0 %v789
  %v791 = vpop.xlane.xlu0 %790
  %v792 = vsel %vm506, %v783, 0.0
  %793 = vadd.xlane.f32.xlu0 %v792
  %v794 = vpop.xlane.xlu0 %793
  %v795 = vsel %vm506, %v785, 0.0
  %796 = vadd.xlane.f32.xlu0 %v795
  %v797 = vpop.xlane.xlu0 %796
  %v798 = vrcp.pop %v788
  %v799 = vrcp.pop %v791
  %v800 = vrcp.pop %v794
  %v801 = vrcp.pop %v797
  %v802 = vmul.f32 %v779, %v798
  %v803 = vmul.f32 %v781, %v799
  %v804 = vmul.f32 %v783, %v800
  %v805 = vmul.f32 %v785, %v801
  %v806 = vpack.c.bf16 %v803, %v802
  %v807 = vpack.c.bf16 %v805, %v804
  %810 = vrot.lane.b32.xlu0 %v622, 96
  %v811 = vpop.permute.xlu0 %810
  %812 = vrot.lane.b32.xlu0 %v623, 96
  %v813 = vpop.permute.xlu0 %812
  %v817 = vsel %vm506, %v806, 0
  %v820 = vsel %vm506, %v807, 0
  %822 = vmatprep.subr.bf16.mxu0 0
  %823 = vmatpush1.bf16.msra.mxu0 0
  %824 = vmatprep.subr.bf16.mxu0 0
  %825 = vmatpush1.bf16.msra.mxu0 0
  %826 = vmatprep.subr.bf16.mxu0 0
  %827 = vmatpush1.bf16.msra.mxu0 0
  %828 = vmatprep.subr.bf16.mxu0 0
  %829 = vmatpush1.bf16.msra.mxu0 0
  %830 = vmatprep.subr.bf16.mxu0 0
  %831 = vmatpush1.bf16.msra.mxu0 0
  %832 = vmatprep.subr.bf16.mxu0 0
  %833 = vmatpush1.bf16.msra.mxu0 0
  %834 = vmatprep.subr.bf16.mxu0 0
  %835 = vmatpush1.bf16.msra.mxu0 %v813
  %836 = vmatprep.subr.bf16.mxu0 0
  %837 = vmatpush1.bf16.msra.mxu0 %v811
  %838 = vmatprep.subr.bf16.mxu0 0
  %839 = vmatpush2.bf16.msra.mxu0 0
  %840 = vmatprep.subr.bf16.mxu0 0
  %841 = vmatpush2.bf16.msra.mxu0 0
  %842 = vmatprep.subr.bf16.mxu0 0
  %843 = vmatpush2.bf16.msra.mxu0 0
  %844 = vmatprep.subr.bf16.mxu0 0
  %845 = vmatpush2.bf16.msra.mxu0 0
  %846 = vmatprep.subr.bf16.mxu0 0
  %847 = vmatpush2.bf16.msra.mxu0 0
  %848 = vmatprep.subr.bf16.mxu0 0
  %849 = vmatpush2.bf16.msra.mxu0 0
  %850 = vmatprep.subr.bf16.mxu0 0
  %851 = vmatpush2.bf16.msra.mxu0 0
  %852 = vmatprep.subr.bf16.mxu0 0
  %853 = vmatpush2.bf16.msra.mxu0 0
  %854 = vmatprep.mubr.bf16.mxu0 0
  %855 = vmatmul.mubr.bf16.gmra.mxu0 %v817
  %v856 = vpop.f32.mrf.mxu0
  %v857 = vadd.f32 0.0, %v856
  %v858 = vpop.f32.mrf.mxu0
  %v859 = vpop.f32.mrf.mxu0
  %v860 = vadd.f32 0.0, %v859
  %v861 = vpop.f32.mrf.mxu0
  %862 = vmatprep.mubr.bf16.mxu0 0
  %863 = vmatmul.mubr.bf16.gmra.mxu0 %v820
  %v864 = vpop.f32.mrf.mxu0
  %v865 = vadd.f32 0.0, %v864
  %v866 = vpop.f32.mrf.mxu0
  %v867 = vpop.f32.mrf.mxu0
  %v868 = vadd.f32 0.0, %v867
  %v869 = vpop.f32.mrf.mxu0
  %870 = vdwg.mxu0
  %v871 = vpack.c.bf16 %v860, %v857
  %v872 = vpack.c.bf16 %v868, %v865
  %v877 = vunpack.c.l.b16 %v490
  %v878 = vunpack.c.l.b16 %v491
  %v879 = vunpack.c.l.b16 %v492
  %v880 = vunpack.c.l.b16 %v493
  %v881 = vpack.c.b16 %v878, %v877
  %v882 = vpack.c.b16 %v880, %v879
  %v886 = vsel %vm506, %v871, 0
  %v889 = vsel %vm506, %v872, 0
  %891 = vmatprep.subr.bf16.mxu0 0
  %892 = vmatpush1.bf16.msra.mxu0 0
  %893 = vmatprep.subr.bf16.mxu0 0
  %894 = vmatpush1.bf16.msra.mxu0 0
  %895 = vmatprep.subr.bf16.mxu0 0
  %896 = vmatpush1.bf16.msra.mxu0 0
  %897 = vmatprep.subr.bf16.mxu0 0
  %898 = vmatpush1.bf16.msra.mxu0 0
  %899 = vmatprep.subr.bf16.mxu0 0
  %900 = vmatpush1.bf16.msra.mxu0 0
  %901 = vmatprep.subr.bf16.mxu0 0
  %902 = vmatpush1.bf16.msra.mxu0 0
  %903 = vmatprep.subr.bf16.mxu0 0
  %904 = vmatpush1.bf16.msra.mxu0 %v882
  %905 = vmatprep.subr.bf16.mxu0 0
  %906 = vmatpush1.bf16.msra.mxu0 %v881
  %907 = vmatprep.subr.bf16.mxu0 0
  %908 = vmatpush2.bf16.msra.mxu0 0
  %909 = vmatprep.subr.bf16.mxu0 0
  %910 = vmatpush2.bf16.msra.mxu0 0
  %911 = vmatprep.subr.bf16.mxu0 0
  %912 = vmatpush2.bf16.msra.mxu0 0
  %913 = vmatprep.subr.bf16.mxu0 0
  %914 = vmatpush2.bf16.msra.mxu0 0
  %915 = vmatprep.subr.bf16.mxu0 0
  %916 = vmatpush2.bf16.msra.mxu0 0
  %917 = vmatprep.subr.bf16.mxu0 0
  %918 = vmatpush2.bf16.msra.mxu0 0
  %919 = vmatprep.subr.bf16.mxu0 0
  %920 = vmatpush2.bf16.msra.mxu0 0
  %921 = vmatprep.subr.bf16.mxu0 0
  %922 = vmatpush2.bf16.msra.mxu0 0
  %923 = vmatprep.mubr.bf16.mxu0 0
  %924 = vmatmul.mubr.bf16.gmra.mxu0 %v886
  %v925 = vpop.f32.mrf.mxu0
  %v926 = vadd.f32 0.0, %v925
  %v927 = vpop.f32.mrf.mxu0
  %v928 = vpop.f32.mrf.mxu0
  %v929 = vadd.f32 0.0, %v928
  %v930 = vpop.f32.mrf.mxu0
  %931 = vmatprep.mubr.bf16.mxu0 0
  %932 = vmatmul.mubr.bf16.gmra.mxu0 %v889
  %v933 = vpop.f32.mrf.mxu0
  %v934 = vadd.f32 0.0, %v933
  %v935 = vpop.f32.mrf.mxu0
  %v936 = vpop.f32.mrf.mxu0
  %v937 = vadd.f32 0.0, %v936
  %v938 = vpop.f32.mrf.mxu0
  %939 = vdwg.mxu0
  %v944 = vunpack.c.l.b16 %v486
  %v945 = vunpack.c.l.b16 %v487
  %v946 = vunpack.c.l.b16 %v488
  %v947 = vunpack.c.l.b16 %v489
  %v948 = vpack.c.b16 %v945, %v944
  %v949 = vpack.c.b16 %v947, %v946
  %v953 = vsel %vm506, %v679, 0
  %v956 = vsel %vm506, %v680, 0
  %958 = vmatprep.subr.bf16.mxu0 0
  %959 = vmatpush1.bf16.msra.mxu0 0
  %960 = vmatprep.subr.bf16.mxu0 0
  %961 = vmatpush1.bf16.msra.mxu0 0
  %962 = vmatprep.subr.bf16.mxu0 0
  %963 = vmatpush1.bf16.msra.mxu0 0
  %964 = vmatprep.subr.bf16.mxu0 0
  %965 = vmatpush1.bf16.msra.mxu0 0
  %966 = vmatprep.subr.bf16.mxu0 0
  %967 = vmatpush1.bf16.msra.mxu0 0
  %968 = vmatprep.subr.bf16.mxu0 0
  %969 = vmatpush1.bf16.msra.mxu0 0
  %970 = vmatprep.subr.bf16.mxu0 0
  %971 = vmatpush1.bf16.msra.mxu0 %v949
  %972 = vmatprep.subr.bf16.mxu0 0
  %973 = vmatpush1.bf16.msra.mxu0 %v948
  %974 = vmatprep.subr.bf16.mxu0 0
  %975 = vmatpush2.bf16.msra.mxu0 0
  %976 = vmatprep.subr.bf16.mxu0 0
  %977 = vmatpush2.bf16.msra.mxu0 0
  %978 = vmatprep.subr.bf16.mxu0 0
  %979 = vmatpush2.bf16.msra.mxu0 0
  %980 = vmatprep.subr.bf16.mxu0 0
  %981 = vmatpush2.bf16.msra.mxu0 0
  %982 = vmatprep.subr.bf16.mxu0 0
  %983 = vmatpush2.bf16.msra.mxu0 0
  %984 = vmatprep.subr.bf16.mxu0 0
  %985 = vmatpush2.bf16.msra.mxu0 0
  %986 = vmatprep.subr.bf16.mxu0 0
  %987 = vmatpush2.bf16.msra.mxu0 0
  %988 = vmatprep.subr.bf16.mxu0 0
  %989 = vmatpush2.bf16.msra.mxu0 0
  %990 = vmatprep.mubr.bf16.mxu0 0
  %991 = vmatmul.mubr.bf16.gmra.mxu0 %v953
  %v992 = vpop.f32.mrf.mxu0
  %v993 = vadd.f32 %v926, %v992
  %v994 = vpop.f32.mrf.mxu0
  %v995 = vpop.f32.mrf.mxu0
  %v996 = vadd.f32 %v929, %v995
  %v997 = vpop.f32.mrf.mxu0
  %998 = vmatprep.mubr.bf16.mxu0 0
  %999 = vmatmul.mubr.bf16.gmra.mxu0 %v956
  %v1000 = vpop.f32.mrf.mxu0
  %v1001 = vadd.f32 %v934, %v1000
  %v1002 = vpop.f32.mrf.mxu0
  %v1003 = vpop.f32.mrf.mxu0
  %v1004 = vadd.f32 %v937, %v1003
  %v1005 = vpop.f32.mrf.mxu0
  %1006 = vdwg.mxu0
  %1007 = vrot.lane.b32.xlu0 %v502, 64
  %v1008 = vpop.permute.xlu0 %1007
  %1009 = vrot.lane.b32.xlu0 %v503, 64
  %v1010 = vpop.permute.xlu0 %1009
  %1011 = vrot.lane.b32.xlu0 %v504, 64
  %v1012 = vpop.permute.xlu0 %1011
  %1013 = vrot.lane.b32.xlu0 %v505, 64
  %v1014 = vpop.permute.xlu0 %1013
  %v1016 = vsel %vm506, %v1008, 0
  %v1019 = vsel %vm506, %v1010, 0
  %v1022 = vsel %vm506, %v1012, 0
  %v1025 = vsel %vm506, %v1014, 0
  %1027 = vmatprep.subr.bf16.mxu0 0
  %1028 = vmatpush1.bf16.xpose.msra.mxu0 0
  %1029 = vmatprep.subr.bf16.mxu0 0
  %1030 = vmatpush1.bf16.xpose.msra.mxu0 0
  %1031 = vmatprep.subr.bf16.mxu0 0
  %1032 = vmatpush1.bf16.xpose.msra.mxu0 0
  %1033 = vmatprep.subr.bf16.mxu0 0
  %1034 = vmatpush1.bf16.xpose.msra.mxu0 0
  %1035 = vmatprep.subr.bf16.mxu0 0
  %1036 = vmatpush1.bf16.xpose.msra.mxu0 0
  %1037 = vmatprep.subr.bf16.mxu0 0
  %1038 = vmatpush1.bf16.xpose.msra.mxu0 0
  %1039 = vmatprep.subr.bf16.mxu0 0
  %1040 = vmatpush1.bf16.xpose.msra.mxu0 %v1025
  %1041 = vmatprep.subr.bf16.mxu0 0
  %1042 = vmatpush1.bf16.xpose.msra.mxu0 %v1022
  %1043 = vmatprep.subr.bf16.mxu0 0
  %1044 = vmatpush2.bf16.xpose.msra.mxu0 0
  %1045 = vmatprep.subr.bf16.mxu0 0
  %1046 = vmatpush2.bf16.xpose.msra.mxu0 0
  %1047 = vmatprep.subr.bf16.mxu0 0
  %1048 = vmatpush2.bf16.xpose.msra.mxu0 0
  %1049 = vmatprep.subr.bf16.mxu0 0
  %1050 = vmatpush2.bf16.xpose.msra.mxu0 0
  %1051 = vmatprep.subr.bf16.mxu0 0
  %1052 = vmatpush2.bf16.xpose.msra.mxu0 0
  %1053 = vmatprep.subr.bf16.mxu0 0
  %1054 = vmatpush2.bf16.xpose.msra.mxu0 0
  %1055 = vmatprep.subr.bf16.mxu0 0
  %1056 = vmatpush2.bf16.xpose.msra.mxu0 0
  %1057 = vmatprep.subr.bf16.mxu0 0
  %1058 = vmatpush2.bf16.xpose.msra.mxu0 0
  %1059 = vmatprep.mubr.bf16.mxu0 0
  %1060 = vmatmul.mubr.bf16.gmra.mxu0 %v1016
  %v1061 = vpop.f32.mrf.mxu0
  %v1062 = vadd.f32 0.0, %v1061
  %v1063 = vpop.f32.mrf.mxu0
  %v1064 = vpop.f32.mrf.mxu0
  %v1065 = vadd.f32 0.0, %v1064
  %v1066 = vpop.f32.mrf.mxu0
  %1067 = vmatprep.mubr.bf16.mxu0 0
  %1068 = vmatmul.mubr.bf16.gmra.mxu0 %v1019
  %v1069 = vpop.f32.mrf.mxu0
  %v1070 = vadd.f32 0.0, %v1069
  %v1071 = vpop.f32.mrf.mxu0
  %v1072 = vpop.f32.mrf.mxu0
  %v1073 = vadd.f32 0.0, %v1072
  %v1074 = vpop.f32.mrf.mxu0
  %1075 = vdwg.mxu0
  %v1076 = vmul.f32 %v1062, 0.17677669
  %v1077 = vmul.f32 %v1065, 0.17677669
  %v1078 = vmul.f32 %v1070, 0.17677669
  %v1079 = vmul.f32 %v1073, 0.17677669
  %v1080 = vadd.f32 %v1076, %v130
  %v1081 = vadd.f32 %v1077, %v131
  %v1082 = vadd.f32 %v1078, %v132
  %v1083 = vadd.f32 %v1079, %v133
  %v1084 = vsel %vm506, %v1080, -inf
  %1085 = vmax.xlane.f32.xlu0 %v1084
  %v1086 = vpop.xlane.xlu0 %1085
  %v1087 = vsel %vm506, %v1081, -inf
  %1088 = vmax.xlane.f32.xlu0 %v1087
  %v1089 = vpop.xlane.xlu0 %1088
  %v1090 = vsel %vm506, %v1082, -inf
  %1091 = vmax.xlane.f32.xlu0 %v1090
  %v1092 = vpop.xlane.xlu0 %1091
  %v1093 = vsel %vm506, %v1083, -inf
  %1094 = vmax.xlane.f32.xlu0 %v1093
  %v1095 = vpop.xlane.xlu0 %1094
  %v1096 = vsub.f32 %v1080, %v1086
  %v1097 = vsub.f32 %v1081, %v1089
  %v1098 = vsub.f32 %v1082, %v1092
  %v1099 = vsub.f32 %v1083, %v1095
  %v1100 = vmul.f32 %v1096, 1.442695
  %v1101 = vpow.pop %v1100
  %v1102 = vmul.f32 %v1097, 1.442695
  %v1103 = vpow.pop %v1102
  %v1104 = vmul.f32 %v1098, 1.442695
  %v1105 = vpow.pop %v1104
  %v1106 = vmul.f32 %v1099, 1.442695
  %v1107 = vpow.pop %v1106
  %v1108 = vsel %vm506, %v1101, 0.0
  %1109 = vadd.xlane.f32.xlu0 %v1108
  %v1110 = vpop.xlane.xlu0 %1109
  %v1111 = vsel %vm506, %v1103, 0.0
  %1112 = vadd.xlane.f32.xlu0 %v1111
  %v1113 = vpop.xlane.xlu0 %1112
  %v1114 = vsel %vm506, %v1105, 0.0
  %1115 = vadd.xlane.f32.xlu0 %v1114
  %v1116 = vpop.xlane.xlu0 %1115
  %v1117 = vsel %vm506, %v1107, 0.0
  %1118 = vadd.xlane.f32.xlu0 %v1117
  %v1119 = vpop.xlane.xlu0 %1118
  %v1120 = vrcp.pop %v1110
  %v1121 = vrcp.pop %v1113
  %v1122 = vrcp.pop %v1116
  %v1123 = vrcp.pop %v1119
  %v1124 = vmul.f32 %v1101, %v1120
  %v1125 = vmul.f32 %v1103, %v1121
  %v1126 = vmul.f32 %v1105, %v1122
  %v1127 = vmul.f32 %v1107, %v1123
  %v1128 = vpack.c.bf16 %v1125, %v1124
  %v1129 = vpack.c.bf16 %v1127, %v1126
  %1130 = vrot.lane.b32.xlu0 %v622, 64
  %v1131 = vpop.permute.xlu0 %1130
  %1132 = vrot.lane.b32.xlu0 %v623, 64
  %v1133 = vpop.permute.xlu0 %1132
  %v1137 = vsel %vm506, %v1128, 0
  %v1140 = vsel %vm506, %v1129, 0
  %1142 = vmatprep.subr.bf16.mxu0 0
  %1143 = vmatpush1.bf16.msra.mxu0 0
  %1144 = vmatprep.subr.bf16.mxu0 0
  %1145 = vmatpush1.bf16.msra.mxu0 0
  %1146 = vmatprep.subr.bf16.mxu0 0
  %1147 = vmatpush1.bf16.msra.mxu0 0
  %1148 = vmatprep.subr.bf16.mxu0 0
  %1149 = vmatpush1.bf16.msra.mxu0 0
  %1150 = vmatprep.subr.bf16.mxu0 0
  %1151 = vmatpush1.bf16.msra.mxu0 0
  %1152 = vmatprep.subr.bf16.mxu0 0
  %1153 = vmatpush1.bf16.msra.mxu0 0
  %1154 = vmatprep.subr.bf16.mxu0 0
  %1155 = vmatpush1.bf16.msra.mxu0 %v1133
  %1156 = vmatprep.subr.bf16.mxu0 0
  %1157 = vmatpush1.bf16.msra.mxu0 %v1131
  %1158 = vmatprep.subr.bf16.mxu0 0
  %1159 = vmatpush2.bf16.msra.mxu0 0
  %1160 = vmatprep.subr.bf16.mxu0 0
  %1161 = vmatpush2.bf16.msra.mxu0 0
  %1162 = vmatprep.subr.bf16.mxu0 0
  %1163 = vmatpush2.bf16.msra.mxu0 0
  %1164 = vmatprep.subr.bf16.mxu0 0
  %1165 = vmatpush2.bf16.msra.mxu0 0
  %1166 = vmatprep.subr.bf16.mxu0 0
  %1167 = vmatpush2.bf16.msra.mxu0 0
  %1168 = vmatprep.subr.bf16.mxu0 0
  %1169 = vmatpush2.bf16.msra.mxu0 0
  %1170 = vmatprep.subr.bf16.mxu0 0
  %1171 = vmatpush2.bf16.msra.mxu0 0
  %1172 = vmatprep.subr.bf16.mxu0 0
  %1173 = vmatpush2.bf16.msra.mxu0 0
  %1174 = vmatprep.mubr.bf16.mxu0 0
  %1175 = vmatmul.mubr.bf16.gmra.mxu0 %v1137
  %v1176 = vpop.f32.mrf.mxu0
  %v1177 = vadd.f32 0.0, %v1176
  %v1178 = vpop.f32.mrf.mxu0
  %v1179 = vpop.f32.mrf.mxu0
  %v1180 = vadd.f32 0.0, %v1179
  %v1181 = vpop.f32.mrf.mxu0
  %1182 = vmatprep.mubr.bf16.mxu0 0
  %1183 = vmatmul.mubr.bf16.gmra.mxu0 %v1140
  %v1184 = vpop.f32.mrf.mxu0
  %v1185 = vadd.f32 0.0, %v1184
  %v1186 = vpop.f32.mrf.mxu0
  %v1187 = vpop.f32.mrf.mxu0
  %v1188 = vadd.f32 0.0, %v1187
  %v1189 = vpop.f32.mrf.mxu0
  %1190 = vdwg.mxu0
  %v1191 = vpack.c.bf16 %v1180, %v1177
  %v1192 = vpack.c.bf16 %v1188, %v1185
  %v1197 = vunpack.c.l.b16 %v494
  %v1198 = vunpack.c.l.b16 %v495
  %v1199 = vunpack.c.l.b16 %v496
  %v1200 = vunpack.c.l.b16 %v497
  %v1201 = vpack.c.b16 %v1198, %v1197
  %v1202 = vpack.c.b16 %v1200, %v1199
  %v1206 = vsel %vm506, %v1191, 0
  %v1209 = vsel %vm506, %v1192, 0
  %1211 = vmatprep.subr.bf16.mxu0 0
  %1212 = vmatpush1.bf16.msra.mxu0 0
  %1213 = vmatprep.subr.bf16.mxu0 0
  %1214 = vmatpush1.bf16.msra.mxu0 0
  %1215 = vmatprep.subr.bf16.mxu0 0
  %1216 = vmatpush1.bf16.msra.mxu0 0
  %1217 = vmatprep.subr.bf16.mxu0 0
  %1218 = vmatpush1.bf16.msra.mxu0 0
  %1219 = vmatprep.subr.bf16.mxu0 0
  %1220 = vmatpush1.bf16.msra.mxu0 0
  %1221 = vmatprep.subr.bf16.mxu0 0
  %1222 = vmatpush1.bf16.msra.mxu0 0
  %1223 = vmatprep.subr.bf16.mxu0 0
  %1224 = vmatpush1.bf16.msra.mxu0 %v1202
  %1225 = vmatprep.subr.bf16.mxu0 0
  %1226 = vmatpush1.bf16.msra.mxu0 %v1201
  %1227 = vmatprep.subr.bf16.mxu0 0
  %1228 = vmatpush2.bf16.msra.mxu0 0
  %1229 = vmatprep.subr.bf16.mxu0 0
  %1230 = vmatpush2.bf16.msra.mxu0 0
  %1231 = vmatprep.subr.bf16.mxu0 0
  %1232 = vmatpush2.bf16.msra.mxu0 0
  %1233 = vmatprep.subr.bf16.mxu0 0
  %1234 = vmatpush2.bf16.msra.mxu0 0
  %1235 = vmatprep.subr.bf16.mxu0 0
  %1236 = vmatpush2.bf16.msra.mxu0 0
  %1237 = vmatprep.subr.bf16.mxu0 0
  %1238 = vmatpush2.bf16.msra.mxu0 0
  %1239 = vmatprep.subr.bf16.mxu0 0
  %1240 = vmatpush2.bf16.msra.mxu0 0
  %1241 = vmatprep.subr.bf16.mxu0 0
  %1242 = vmatpush2.bf16.msra.mxu0 0
  %1243 = vmatprep.mubr.bf16.mxu0 0
  %1244 = vmatmul.mubr.bf16.gmra.mxu0 %v1206
  %v1245 = vpop.f32.mrf.mxu0
  %v1246 = vadd.f32 0.0, %v1245
  %v1247 = vpop.f32.mrf.mxu0
  %v1248 = vpop.f32.mrf.mxu0
  %v1249 = vadd.f32 0.0, %v1248
  %v1250 = vpop.f32.mrf.mxu0
  %1251 = vmatprep.mubr.bf16.mxu0 0
  %1252 = vmatmul.mubr.bf16.gmra.mxu0 %v1209
  %v1253 = vpop.f32.mrf.mxu0
  %v1254 = vadd.f32 0.0, %v1253
  %v1255 = vpop.f32.mrf.mxu0
  %v1256 = vpop.f32.mrf.mxu0
  %v1257 = vadd.f32 0.0, %v1256
  %v1258 = vpop.f32.mrf.mxu0
  %1259 = vdwg.mxu0
  %v1260 = vadd.f32 %v993, %v1246
  %v1261 = vadd.f32 %v996, %v1249
  %v1262 = vadd.f32 %v1001, %v1254
  %v1263 = vadd.f32 %v1004, %v1257
  %1264 = vrot.lane.b32.xlu0 %v502, 32
  %v1265 = vpop.permute.xlu0 %1264
  %1266 = vrot.lane.b32.xlu0 %v503, 32
  %v1267 = vpop.permute.xlu0 %1266
  %1268 = vrot.lane.b32.xlu0 %v504, 32
  %v1269 = vpop.permute.xlu0 %1268
  %1270 = vrot.lane.b32.xlu0 %v505, 32
  %v1271 = vpop.permute.xlu0 %1270
  %v1273 = vsel %vm506, %v1265, 0
  %v1276 = vsel %vm506, %v1267, 0
  %v1279 = vsel %vm506, %v1269, 0
  %v1282 = vsel %vm506, %v1271, 0
  %1284 = vmatprep.subr.bf16.mxu0 0
  %1285 = vmatpush1.bf16.xpose.msra.mxu0 0
  %1286 = vmatprep.subr.bf16.mxu0 0
  %1287 = vmatpush1.bf16.xpose.msra.mxu0 0
  %1288 = vmatprep.subr.bf16.mxu0 0
  %1289 = vmatpush1.bf16.xpose.msra.mxu0 0
  %1290 = vmatprep.subr.bf16.mxu0 0
  %1291 = vmatpush1.bf16.xpose.msra.mxu0 0
  %1292 = vmatprep.subr.bf16.mxu0 0
  %1293 = vmatpush1.bf16.xpose.msra.mxu0 0
  %1294 = vmatprep.subr.bf16.mxu0 0
  %1295 = vmatpush1.bf16.xpose.msra.mxu0 0
  %1296 = vmatprep.subr.bf16.mxu0 0
  %1297 = vmatpush1.bf16.xpose.msra.mxu0 %v1282
  %1298 = vmatprep.subr.bf16.mxu0 0
  %1299 = vmatpush1.bf16.xpose.msra.mxu0 %v1279
  %1300 = vmatprep.subr.bf16.mxu0 0
  %1301 = vmatpush2.bf16.xpose.msra.mxu0 0
  %1302 = vmatprep.subr.bf16.mxu0 0
  %1303 = vmatpush2.bf16.xpose.msra.mxu0 0
  %1304 = vmatprep.subr.bf16.mxu0 0
  %1305 = vmatpush2.bf16.xpose.msra.mxu0 0
  %1306 = vmatprep.subr.bf16.mxu0 0
  %1307 = vmatpush2.bf16.xpose.msra.mxu0 0
  %1308 = vmatprep.subr.bf16.mxu0 0
  %1309 = vmatpush2.bf16.xpose.msra.mxu0 0
  %1310 = vmatprep.subr.bf16.mxu0 0
  %1311 = vmatpush2.bf16.xpose.msra.mxu0 0
  %1312 = vmatprep.subr.bf16.mxu0 0
  %1313 = vmatpush2.bf16.xpose.msra.mxu0 0
  %1314 = vmatprep.subr.bf16.mxu0 0
  %1315 = vmatpush2.bf16.xpose.msra.mxu0 0
  %1316 = vmatprep.mubr.bf16.mxu0 0
  %1317 = vmatmul.mubr.bf16.gmra.mxu0 %v1273
  %v1318 = vpop.f32.mrf.mxu0
  %v1319 = vadd.f32 0.0, %v1318
  %v1320 = vpop.f32.mrf.mxu0
  %v1321 = vpop.f32.mrf.mxu0
  %v1322 = vadd.f32 0.0, %v1321
  %v1323 = vpop.f32.mrf.mxu0
  %1324 = vmatprep.mubr.bf16.mxu0 0
  %1325 = vmatmul.mubr.bf16.gmra.mxu0 %v1276
  %v1326 = vpop.f32.mrf.mxu0
  %v1327 = vadd.f32 0.0, %v1326
  %v1328 = vpop.f32.mrf.mxu0
  %v1329 = vpop.f32.mrf.mxu0
  %v1330 = vadd.f32 0.0, %v1329
  %v1331 = vpop.f32.mrf.mxu0
  %1332 = vdwg.mxu0
  %v1333 = vmul.f32 %v1319, 0.17677669
  %v1334 = vmul.f32 %v1322, 0.17677669
  %v1335 = vmul.f32 %v1327, 0.17677669
  %v1336 = vmul.f32 %v1330, 0.17677669
  %v1337 = vadd.f32 %v1333, %v130
  %v1338 = vadd.f32 %v1334, %v131
  %v1339 = vadd.f32 %v1335, %v132
  %v1340 = vadd.f32 %v1336, %v133
  %v1341 = vsel %vm506, %v1337, -inf
  %1342 = vmax.xlane.f32.xlu0 %v1341
  %v1343 = vpop.xlane.xlu0 %1342
  %v1344 = vsel %vm506, %v1338, -inf
  %1345 = vmax.xlane.f32.xlu0 %v1344
  %v1346 = vpop.xlane.xlu0 %1345
  %v1347 = vsel %vm506, %v1339, -inf
  %1348 = vmax.xlane.f32.xlu0 %v1347
  %v1349 = vpop.xlane.xlu0 %1348
  %v1350 = vsel %vm506, %v1340, -inf
  %1351 = vmax.xlane.f32.xlu0 %v1350
  %v1352 = vpop.xlane.xlu0 %1351
  %v1353 = vsub.f32 %v1337, %v1343
  %v1354 = vsub.f32 %v1338, %v1346
  %v1355 = vsub.f32 %v1339, %v1349
  %v1356 = vsub.f32 %v1340, %v1352
  %v1357 = vmul.f32 %v1353, 1.442695
  %v1358 = vpow.pop %v1357
  %v1359 = vmul.f32 %v1354, 1.442695
  %v1360 = vpow.pop %v1359
  %v1361 = vmul.f32 %v1355, 1.442695
  %v1362 = vpow.pop %v1361
  %v1363 = vmul.f32 %v1356, 1.442695
  %v1364 = vpow.pop %v1363
  %v1365 = vsel %vm506, %v1358, 0.0
  %1366 = vadd.xlane.f32.xlu0 %v1365
  %v1367 = vpop.xlane.xlu0 %1366
  %v1368 = vsel %vm506, %v1360, 0.0
  %1369 = vadd.xlane.f32.xlu0 %v1368
  %v1370 = vpop.xlane.xlu0 %1369
  %v1371 = vsel %vm506, %v1362, 0.0
  %1372 = vadd.xlane.f32.xlu0 %v1371
  %v1373 = vpop.xlane.xlu0 %1372
  %v1374 = vsel %vm506, %v1364, 0.0
  %1375 = vadd.xlane.f32.xlu0 %v1374
  %v1376 = vpop.xlane.xlu0 %1375
  %v1377 = vrcp.pop %v1367
  %v1378 = vrcp.pop %v1370
  %v1379 = vrcp.pop %v1373
  %v1380 = vrcp.pop %v1376
  %v1381 = vmul.f32 %v1358, %v1377
  %v1382 = vmul.f32 %v1360, %v1378
  %v1383 = vmul.f32 %v1362, %v1379
  %v1384 = vmul.f32 %v1364, %v1380
  %v1385 = vpack.c.bf16 %v1382, %v1381
  %v1386 = vpack.c.bf16 %v1384, %v1383
  %1387 = vrot.lane.b32.xlu0 %v622, 32
  %v1388 = vpop.permute.xlu0 %1387
  %1389 = vrot.lane.b32.xlu0 %v623, 32
  %v1390 = vpop.permute.xlu0 %1389
  %v1394 = vsel %vm506, %v1385, 0
  %v1397 = vsel %vm506, %v1386, 0
  %1399 = vmatprep.subr.bf16.mxu0 0
  %1400 = vmatpush1.bf16.msra.mxu0 0
  %1401 = vmatprep.subr.bf16.mxu0 0
  %1402 = vmatpush1.bf16.msra.mxu0 0
  %1403 = vmatprep.subr.bf16.mxu0 0
  %1404 = vmatpush1.bf16.msra.mxu0 0
  %1405 = vmatprep.subr.bf16.mxu0 0
  %1406 = vmatpush1.bf16.msra.mxu0 0
  %1407 = vmatprep.subr.bf16.mxu0 0
  %1408 = vmatpush1.bf16.msra.mxu0 0
  %1409 = vmatprep.subr.bf16.mxu0 0
  %1410 = vmatpush1.bf16.msra.mxu0 0
  %1411 = vmatprep.subr.bf16.mxu0 0
  %1412 = vmatpush1.bf16.msra.mxu0 %v1390
  %1413 = vmatprep.subr.bf16.mxu0 0
  %1414 = vmatpush1.bf16.msra.mxu0 %v1388
  %1415 = vmatprep.subr.bf16.mxu0 0
  %1416 = vmatpush2.bf16.msra.mxu0 0
  %1417 = vmatprep.subr.bf16.mxu0 0
  %1418 = vmatpush2.bf16.msra.mxu0 0
  %1419 = vmatprep.subr.bf16.mxu0 0
  %1420 = vmatpush2.bf16.msra.mxu0 0
  %1421 = vmatprep.subr.bf16.mxu0 0
  %1422 = vmatpush2.bf16.msra.mxu0 0
  %1423 = vmatprep.subr.bf16.mxu0 0
  %1424 = vmatpush2.bf16.msra.mxu0 0
  %1425 = vmatprep.subr.bf16.mxu0 0
  %1426 = vmatpush2.bf16.msra.mxu0 0
  %1427 = vmatprep.subr.bf16.mxu0 0
  %1428 = vmatpush2.bf16.msra.mxu0 0
  %1429 = vmatprep.subr.bf16.mxu0 0
  %1430 = vmatpush2.bf16.msra.mxu0 0
  %1431 = vmatprep.mubr.bf16.mxu0 0
  %1432 = vmatmul.mubr.bf16.gmra.mxu0 %v1394
  %v1433 = vpop.f32.mrf.mxu0
  %v1434 = vadd.f32 0.0, %v1433
  %v1435 = vpop.f32.mrf.mxu0
  %v1436 = vpop.f32.mrf.mxu0
  %v1437 = vadd.f32 0.0, %v1436
  %v1438 = vpop.f32.mrf.mxu0
  %1439 = vmatprep.mubr.bf16.mxu0 0
  %1440 = vmatmul.mubr.bf16.gmra.mxu0 %v1397
  %v1441 = vpop.f32.mrf.mxu0
  %v1442 = vadd.f32 0.0, %v1441
  %v1443 = vpop.f32.mrf.mxu0
  %v1444 = vpop.f32.mrf.mxu0
  %v1445 = vadd.f32 0.0, %v1444
  %v1446 = vpop.f32.mrf.mxu0
  %1447 = vdwg.mxu0
  %v1448 = vpack.c.bf16 %v1437, %v1434
  %v1449 = vpack.c.bf16 %v1445, %v1442
  %v1454 = vunpack.c.l.b16 %v498
  %v1455 = vunpack.c.l.b16 %v499
  %v1456 = vunpack.c.l.b16 %v500
  %v1457 = vunpack.c.l.b16 %v501
  %v1458 = vpack.c.b16 %v1455, %v1454
  %v1459 = vpack.c.b16 %v1457, %v1456
  %v1463 = vsel %vm506, %v1448, 0
  %v1466 = vsel %vm506, %v1449, 0
  %1468 = vmatprep.subr.bf16.mxu0 0
  %1469 = vmatpush1.bf16.msra.mxu0 0
  %1470 = vmatprep.subr.bf16.mxu0 0
  %1471 = vmatpush1.bf16.msra.mxu0 0
  %1472 = vmatprep.subr.bf16.mxu0 0
  %1473 = vmatpush1.bf16.msra.mxu0 0
  %1474 = vmatprep.subr.bf16.mxu0 0
  %1475 = vmatpush1.bf16.msra.mxu0 0
  %1476 = vmatprep.subr.bf16.mxu0 0
  %1477 = vmatpush1.bf16.msra.mxu0 0
  %1478 = vmatprep.subr.bf16.mxu0 0
  %1479 = vmatpush1.bf16.msra.mxu0 0
  %1480 = vmatprep.subr.bf16.mxu0 0
  %1481 = vmatpush1.bf16.msra.mxu0 %v1459
  %1482 = vmatprep.subr.bf16.mxu0 0
  %1483 = vmatpush1.bf16.msra.mxu0 %v1458
  %1484 = vmatprep.subr.bf16.mxu0 0
  %1485 = vmatpush2.bf16.msra.mxu0 0
  %1486 = vmatprep.subr.bf16.mxu0 0
  %1487 = vmatpush2.bf16.msra.mxu0 0
  %1488 = vmatprep.subr.bf16.mxu0 0
  %1489 = vmatpush2.bf16.msra.mxu0 0
  %1490 = vmatprep.subr.bf16.mxu0 0
  %1491 = vmatpush2.bf16.msra.mxu0 0
  %1492 = vmatprep.subr.bf16.mxu0 0
  %1493 = vmatpush2.bf16.msra.mxu0 0
  %1494 = vmatprep.subr.bf16.mxu0 0
  %1495 = vmatpush2.bf16.msra.mxu0 0
  %1496 = vmatprep.subr.bf16.mxu0 0
  %1497 = vmatpush2.bf16.msra.mxu0 0
  %1498 = vmatprep.subr.bf16.mxu0 0
  %1499 = vmatpush2.bf16.msra.mxu0 0
  %1500 = vmatprep.mubr.bf16.mxu0 0
  %1501 = vmatmul.mubr.bf16.gmra.mxu0 %v1463
  %v1502 = vpop.f32.mrf.mxu0
  %v1503 = vadd.f32 0.0, %v1502
  %v1504 = vpop.f32.mrf.mxu0
  %v1505 = vpop.f32.mrf.mxu0
  %v1506 = vadd.f32 0.0, %v1505
  %v1507 = vpop.f32.mrf.mxu0
  %1508 = vmatprep.mubr.bf16.mxu0 0
  %1509 = vmatmul.mubr.bf16.gmra.mxu0 %v1466
  %v1510 = vpop.f32.mrf.mxu0
  %v1511 = vadd.f32 0.0, %v1510
  %v1512 = vpop.f32.mrf.mxu0
  %v1513 = vpop.f32.mrf.mxu0
  %v1514 = vadd.f32 0.0, %v1513
  %v1515 = vpop.f32.mrf.mxu0
  %1516 = vdwg.mxu0
  %v1517 = vadd.f32 %v1260, %v1503
  %v1518 = vadd.f32 %v1261, %v1506
  %v1519 = vadd.f32 %v1262, %v1511
  %v1520 = vadd.f32 %v1263, %v1514
  %v1521 = vadd.f32 %v134, %v1517
  %v1522 = vadd.f32 %v135, %v1518
  %v1523 = vadd.f32 %v136, %v1519
  %v1524 = vadd.f32 %v137, %v1520
  %v1525 = vld [vmem:[%s6] sm:$0x1]
  %v1527 = vlaneseq
  %v1528 = vshrl.u32 %v1527, 7
  %v1529 = vsub.s32 0, %v1528
  %v1530 = vrot.slane %v1525, %v1529
  %v1532 = vadd.f32 %v1521, %v1530
  %v1533 = vadd.f32 %v1522, %v1530
  %v1534 = vadd.f32 %v1523, %v1530
  %v1535 = vadd.f32 %v1524, %v1530
  %v1536 = vld [vmem:[%s7] sm:$0x1]
  %v1537 = vld [vmem:[%s8] sm:$0x1]
  %1538 = vadd.xlane.f32.xlu0 %v1532
  %v1539 = vpop.xlane.xlu0 %1538
  %1540 = vadd.xlane.f32.xlu0 %v1533
  %v1541 = vpop.xlane.xlu0 %1540
  %1542 = vadd.xlane.f32.xlu0 %v1534
  %v1543 = vpop.xlane.xlu0 %1542
  %1544 = vadd.xlane.f32.xlu0 %v1535
  %v1545 = vpop.xlane.xlu0 %1544
  %v1546 = vmul.f32 %v1539, %v148
  %v1547 = vmul.f32 %v1541, %v148
  %v1548 = vmul.f32 %v1543, %v148
  %v1549 = vmul.f32 %v1545, %v148
  %v1550 = vsub.f32 %v1532, %v1546
  %v1551 = vsub.f32 %v1533, %v1547
  %v1552 = vsub.f32 %v1534, %v1548
  %v1553 = vsub.f32 %v1535, %v1549
  %v1554 = vmul.f32 %v1550, %v1550
  %v1555 = vmul.f32 %v1551, %v1551
  %v1556 = vmul.f32 %v1552, %v1552
  %v1557 = vmul.f32 %v1553, %v1553
  %1558 = vadd.xlane.f32.xlu0 %v1554
  %v1559 = vpop.xlane.xlu0 %1558
  %1560 = vadd.xlane.f32.xlu0 %v1555
  %v1561 = vpop.xlane.xlu0 %1560
  %1562 = vadd.xlane.f32.xlu0 %v1556
  %v1563 = vpop.xlane.xlu0 %1562
  %1564 = vadd.xlane.f32.xlu0 %v1557
  %v1565 = vpop.xlane.xlu0 %1564
  %v1566 = vmul.f32 %v1559, %v148
  %v1567 = vmul.f32 %v1561, %v148
  %v1568 = vmul.f32 %v1563, %v148
  %v1569 = vmul.f32 %v1565, %v148
  %v1570 = vadd.f32 %v1566, 1e-05
  %v1571 = vadd.f32 %v1567, 1e-05
  %v1572 = vadd.f32 %v1568, 1e-05
  %v1573 = vadd.f32 %v1569, 1e-05
  %v1574 = vrsqrt.pop %v1570
  %v1575 = vrsqrt.pop %v1571
  %v1576 = vrsqrt.pop %v1572
  %v1577 = vrsqrt.pop %v1573
  %v1578 = vmul.f32 %v1550, %v1574
  %v1579 = vmul.f32 %v1551, %v1575
  %v1580 = vmul.f32 %v1552, %v1576
  %v1581 = vmul.f32 %v1553, %v1577
  %v1583 = vlaneseq
  %v1584 = vshrl.u32 %v1583, 7
  %v1585 = vsub.s32 0, %v1584
  %v1586 = vrot.slane %v1536, %v1585
  %v1588 = vmul.f32 %v1578, %v1586
  %v1589 = vmul.f32 %v1579, %v1586
  %v1590 = vmul.f32 %v1580, %v1586
  %v1591 = vmul.f32 %v1581, %v1586
  %v1593 = vlaneseq
  %v1594 = vshrl.u32 %v1593, 7
  %v1595 = vsub.s32 0, %v1594
  %v1596 = vrot.slane %v1537, %v1595
  %v1598 = vadd.f32 %v1588, %v1596
  %v1599 = vadd.f32 %v1589, %v1596
  %v1600 = vadd.f32 %v1590, %v1596
  %v1601 = vadd.f32 %v1591, %v1596
  %v1602 = vpack.c.bf16 %v1599, %v1598
  %v1603 = vpack.c.bf16 %v1601, %v1600
  %v1604 = vld [vmem:[%s9] sm:$0xff]
  %v1605 = vld [vmem:[%s9 + $0x8] sm:$0xff]
  %v1606 = vld [vmem:[%s9 + $0x10] sm:$0xff]
  %v1607 = vld [vmem:[%s9 + $0x18] sm:$0xff]
  %v1608 = vld [vmem:[%s9 + $0x20] sm:$0xff]
  %v1609 = vld [vmem:[%s9 + $0x28] sm:$0xff]
  %v1610 = vld [vmem:[%s9 + $0x30] sm:$0xff]
  %v1611 = vld [vmem:[%s9 + $0x38] sm:$0xff]
  %v1612 = vld [vmem:[%s9 + $0x40] sm:$0xff]
  %v1613 = vld [vmem:[%s9 + $0x48] sm:$0xff]
  %v1614 = vld [vmem:[%s9 + $0x50] sm:$0xff]
  %v1615 = vld [vmem:[%s9 + $0x58] sm:$0xff]
  %v1616 = vld [vmem:[%s9 + $0x60] sm:$0xff]
  %v1617 = vld [vmem:[%s9 + $0x68] sm:$0xff]
  %v1618 = vld [vmem:[%s9 + $0x70] sm:$0xff]
  %v1619 = vld [vmem:[%s9 + $0x78] sm:$0xff]
  %v1620 = vld [vmem:[%s10] sm:$0x3]
  %v1622 = vlaneseq
  %v1623 = vshrl.u32 %v1622, 7
  %v1624 = vsub.s32 0, %v1623
  %v1625 = vrot.slane %v1620, %v1624
  %v1626 = vlaneseq
  %v1627 = vshrl.u32 %v1626, 7
  %v1628 = vsub.s32 1, %v1627
  %v1629 = vrot.slane %v1620, %v1628
  %v1648 = vunpack.c.l.b16 %v1604
  %v1649 = vunpack.c.h.b16 %v1604
  %v1650 = vunpack.c.l.b16 %v1605
  %v1651 = vunpack.c.h.b16 %v1605
  %v1652 = vunpack.c.l.b16 %v1606
  %v1653 = vunpack.c.h.b16 %v1606
  %v1654 = vunpack.c.l.b16 %v1607
  %v1655 = vunpack.c.h.b16 %v1607
  %v1656 = vunpack.c.l.b16 %v1608
  %v1657 = vunpack.c.h.b16 %v1608
  %v1658 = vunpack.c.l.b16 %v1609
  %v1659 = vunpack.c.h.b16 %v1609
  %v1660 = vunpack.c.l.b16 %v1610
  %v1661 = vunpack.c.h.b16 %v1610
  %v1662 = vunpack.c.l.b16 %v1611
  %v1663 = vunpack.c.h.b16 %v1611
  %v1664 = vunpack.c.l.b16 %v1612
  %v1665 = vunpack.c.h.b16 %v1612
  %v1666 = vunpack.c.l.b16 %v1613
  %v1667 = vunpack.c.h.b16 %v1613
  %v1668 = vunpack.c.l.b16 %v1614
  %v1669 = vunpack.c.h.b16 %v1614
  %v1670 = vunpack.c.l.b16 %v1615
  %v1671 = vunpack.c.h.b16 %v1615
  %v1672 = vunpack.c.l.b16 %v1616
  %v1673 = vunpack.c.h.b16 %v1616
  %v1674 = vunpack.c.l.b16 %v1617
  %v1675 = vunpack.c.h.b16 %v1617
  %v1676 = vunpack.c.l.b16 %v1618
  %v1677 = vunpack.c.h.b16 %v1618
  %v1678 = vunpack.c.l.b16 %v1619
  %v1679 = vunpack.c.h.b16 %v1619
  %v1680 = vpack.c.b16 %v1650, %v1648
  %v1681 = vpack.c.b16 %v1651, %v1649
  %v1682 = vpack.c.b16 %v1654, %v1652
  %v1683 = vpack.c.b16 %v1655, %v1653
  %v1684 = vpack.c.b16 %v1658, %v1656
  %v1685 = vpack.c.b16 %v1659, %v1657
  %v1686 = vpack.c.b16 %v1662, %v1660
  %v1687 = vpack.c.b16 %v1663, %v1661
  %v1688 = vpack.c.b16 %v1666, %v1664
  %v1689 = vpack.c.b16 %v1667, %v1665
  %v1690 = vpack.c.b16 %v1670, %v1668
  %v1691 = vpack.c.b16 %v1671, %v1669
  %v1692 = vpack.c.b16 %v1674, %v1672
  %v1693 = vpack.c.b16 %v1675, %v1673
  %v1694 = vpack.c.b16 %v1678, %v1676
  %v1695 = vpack.c.b16 %v1679, %v1677
  %1712 = vmatprep.subr.bf16.mxu0 %v1695
  %1713 = vmatpush1.bf16.msra.mxu0 %v1694
  %1714 = vmatprep.subr.bf16.mxu0 %v1693
  %1715 = vmatpush1.bf16.msra.mxu0 %v1692
  %1716 = vmatprep.subr.bf16.mxu0 %v1691
  %1717 = vmatpush1.bf16.msra.mxu0 %v1690
  %1718 = vmatprep.subr.bf16.mxu0 %v1689
  %1719 = vmatpush1.bf16.msra.mxu0 %v1688
  %1720 = vmatprep.subr.bf16.mxu0 %v1687
  %1721 = vmatpush1.bf16.msra.mxu0 %v1686
  %1722 = vmatprep.subr.bf16.mxu0 %v1685
  %1723 = vmatpush1.bf16.msra.mxu0 %v1684
  %1724 = vmatprep.subr.bf16.mxu0 %v1683
  %1725 = vmatpush1.bf16.msra.mxu0 %v1682
  %1726 = vmatprep.subr.bf16.mxu0 %v1681
  %1727 = vmatpush1.bf16.msra.mxu0 %v1680
  %1728 = vmatprep.subr.bf16.mxu0 0
  %1729 = vmatpush2.bf16.msra.mxu0 0
  %1730 = vmatprep.subr.bf16.mxu0 0
  %1731 = vmatpush2.bf16.msra.mxu0 0
  %1732 = vmatprep.subr.bf16.mxu0 0
  %1733 = vmatpush2.bf16.msra.mxu0 0
  %1734 = vmatprep.subr.bf16.mxu0 0
  %1735 = vmatpush2.bf16.msra.mxu0 0
  %1736 = vmatprep.subr.bf16.mxu0 0
  %1737 = vmatpush2.bf16.msra.mxu0 0
  %1738 = vmatprep.subr.bf16.mxu0 0
  %1739 = vmatpush2.bf16.msra.mxu0 0
  %1740 = vmatprep.subr.bf16.mxu0 0
  %1741 = vmatpush2.bf16.msra.mxu0 0
  %1742 = vmatprep.subr.bf16.mxu0 0
  %1743 = vmatpush2.bf16.msra.mxu0 0
  %1744 = vmatprep.mubr.bf16.mxu0 0
  %1745 = vmatmul.mubr.bf16.gmra.mxu0 %v1602
  %v1746 = vpop.f32.mrf.mxu0
  %v1747 = vadd.f32 %v1625, %v1746
  %v1748 = vpop.f32.mrf.mxu0
  %v1749 = vadd.f32 %v1629, %v1748
  %v1750 = vpop.f32.mrf.mxu0
  %v1751 = vadd.f32 %v1625, %v1750
  %v1752 = vpop.f32.mrf.mxu0
  %v1753 = vadd.f32 %v1629, %v1752
  %1754 = vmatprep.mubr.bf16.mxu0 0
  %1755 = vmatmul.mubr.bf16.gmra.mxu0 %v1603
  %v1756 = vpop.f32.mrf.mxu0
  %v1757 = vadd.f32 %v1625, %v1756
  %v1758 = vpop.f32.mrf.mxu0
  %v1759 = vadd.f32 %v1629, %v1758
  %v1760 = vpop.f32.mrf.mxu0
  %v1761 = vadd.f32 %v1625, %v1760
  %v1762 = vpop.f32.mrf.mxu0
  %v1763 = vadd.f32 %v1629, %v1762
  %1764 = vdwg.mxu0
  %v1765 = vmax.f32 %v1747, 0.0
  %v1766 = vmax.f32 %v1749, 0.0
  %v1767 = vmax.f32 %v1751, 0.0
  %v1768 = vmax.f32 %v1753, 0.0
  %v1769 = vmax.f32 %v1757, 0.0
  %v1770 = vmax.f32 %v1759, 0.0
  %v1771 = vmax.f32 %v1761, 0.0
  %v1772 = vmax.f32 %v1763, 0.0
  %v1773 = vpack.c.bf16 %v1767, %v1765
  %v1774 = vpack.c.bf16 %v1768, %v1766
  %v1775 = vpack.c.bf16 %v1771, %v1769
  %v1776 = vpack.c.bf16 %v1772, %v1770
  %v1777 = vld [vmem:[%s11] sm:$0xf]
  %v1778 = vld [vmem:[%s11 + $0x4] sm:$0xf]
  %v1779 = vld [vmem:[%s11 + $0x8] sm:$0xf]
  %v1780 = vld [vmem:[%s11 + $0xc] sm:$0xf]
  %v1781 = vld [vmem:[%s11 + $0x10] sm:$0xf]
  %v1782 = vld [vmem:[%s11 + $0x14] sm:$0xf]
  %v1783 = vld [vmem:[%s11 + $0x18] sm:$0xf]
  %v1784 = vld [vmem:[%s11 + $0x1c] sm:$0xf]
  %v1785 = vld [vmem:[%s11 + $0x20] sm:$0xf]
  %v1786 = vld [vmem:[%s11 + $0x24] sm:$0xf]
  %v1787 = vld [vmem:[%s11 + $0x28] sm:$0xf]
  %v1788 = vld [vmem:[%s11 + $0x2c] sm:$0xf]
  %v1789 = vld [vmem:[%s11 + $0x30] sm:$0xf]
  %v1790 = vld [vmem:[%s11 + $0x34] sm:$0xf]
  %v1791 = vld [vmem:[%s11 + $0x38] sm:$0xf]
  %v1792 = vld [vmem:[%s11 + $0x3c] sm:$0xf]
  %v1793 = vld [vmem:[%s11 + $0x40] sm:$0xf]
  %v1794 = vld [vmem:[%s11 + $0x44] sm:$0xf]
  %v1795 = vld [vmem:[%s11 + $0x48] sm:$0xf]
  %v1796 = vld [vmem:[%s11 + $0x4c] sm:$0xf]
  %v1797 = vld [vmem:[%s11 + $0x50] sm:$0xf]
  %v1798 = vld [vmem:[%s11 + $0x54] sm:$0xf]
  %v1799 = vld [vmem:[%s11 + $0x58] sm:$0xf]
  %v1800 = vld [vmem:[%s11 + $0x5c] sm:$0xf]
  %v1801 = vld [vmem:[%s11 + $0x60] sm:$0xf]
  %v1802 = vld [vmem:[%s11 + $0x64] sm:$0xf]
  %v1803 = vld [vmem:[%s11 + $0x68] sm:$0xf]
  %v1804 = vld [vmem:[%s11 + $0x6c] sm:$0xf]
  %v1805 = vld [vmem:[%s11 + $0x70] sm:$0xf]
  %v1806 = vld [vmem:[%s11 + $0x74] sm:$0xf]
  %v1807 = vld [vmem:[%s11 + $0x78] sm:$0xf]
  %v1808 = vld [vmem:[%s11 + $0x7c] sm:$0xf]
  %v1809 = vld [vmem:[%s12] sm:$0x1]
  %v1811 = vlaneseq
  %v1812 = vshrl.u32 %v1811, 7
  %v1813 = vsub.s32 0, %v1812
  %v1814 = vrot.slane %v1809, %v1813
  %v1848 = vunpack.c.l.b16 %v1777
  %v1849 = vunpack.c.l.b16 %v1778
  %v1850 = vunpack.c.l.b16 %v1779
  %v1851 = vunpack.c.l.b16 %v1780
  %v1852 = vunpack.c.l.b16 %v1781
  %v1853 = vunpack.c.l.b16 %v1782
  %v1854 = vunpack.c.l.b16 %v1783
  %v1855 = vunpack.c.l.b16 %v1784
  %v1856 = vunpack.c.l.b16 %v1785
  %v1857 = vunpack.c.l.b16 %v1786
  %v1858 = vunpack.c.l.b16 %v1787
  %v1859 = vunpack.c.l.b16 %v1788
  %v1860 = vunpack.c.l.b16 %v1789
  %v1861 = vunpack.c.l.b16 %v1790
  %v1862 = vunpack.c.l.b16 %v1791
  %v1863 = vunpack.c.l.b16 %v1792
  %v1864 = vunpack.c.l.b16 %v1793
  %v1865 = vunpack.c.l.b16 %v1794
  %v1866 = vunpack.c.l.b16 %v1795
  %v1867 = vunpack.c.l.b16 %v1796
  %v1868 = vunpack.c.l.b16 %v1797
  %v1869 = vunpack.c.l.b16 %v1798
  %v1870 = vunpack.c.l.b16 %v1799
  %v1871 = vunpack.c.l.b16 %v1800
  %v1872 = vunpack.c.l.b16 %v1801
  %v1873 = vunpack.c.l.b16 %v1802
  %v1874 = vunpack.c.l.b16 %v1803
  %v1875 = vunpack.c.l.b16 %v1804
  %v1876 = vunpack.c.l.b16 %v1805
  %v1877 = vunpack.c.l.b16 %v1806
  %v1878 = vunpack.c.l.b16 %v1807
  %v1879 = vunpack.c.l.b16 %v1808
  %v1880 = vpack.c.b16 %v1849, %v1848
  %v1881 = vpack.c.b16 %v1851, %v1850
  %v1882 = vpack.c.b16 %v1853, %v1852
  %v1883 = vpack.c.b16 %v1855, %v1854
  %v1884 = vpack.c.b16 %v1857, %v1856
  %v1885 = vpack.c.b16 %v1859, %v1858
  %v1886 = vpack.c.b16 %v1861, %v1860
  %v1887 = vpack.c.b16 %v1863, %v1862
  %v1888 = vpack.c.b16 %v1865, %v1864
  %v1889 = vpack.c.b16 %v1867, %v1866
  %v1890 = vpack.c.b16 %v1869, %v1868
  %v1891 = vpack.c.b16 %v1871, %v1870
  %v1892 = vpack.c.b16 %v1873, %v1872
  %v1893 = vpack.c.b16 %v1875, %v1874
  %v1894 = vpack.c.b16 %v1877, %v1876
  %v1895 = vpack.c.b16 %v1879, %v1878
  %1912 = vmatprep.subr.bf16.mxu0 0
  %1913 = vmatpush1.bf16.msra.mxu0 %v1887
  %1914 = vmatprep.subr.bf16.mxu0 0
  %1915 = vmatpush1.bf16.msra.mxu0 %v1886
  %1916 = vmatprep.subr.bf16.mxu0 0
  %1917 = vmatpush1.bf16.msra.mxu0 %v1885
  %1918 = vmatprep.subr.bf16.mxu0 0
  %1919 = vmatpush1.bf16.msra.mxu0 %v1884
  %1920 = vmatprep.subr.bf16.mxu0 0
  %1921 = vmatpush1.bf16.msra.mxu0 %v1883
  %1922 = vmatprep.subr.bf16.mxu0 0
  %1923 = vmatpush1.bf16.msra.mxu0 %v1882
  %1924 = vmatprep.subr.bf16.mxu0 0
  %1925 = vmatpush1.bf16.msra.mxu0 %v1881
  %1926 = vmatprep.subr.bf16.mxu0 0
  %1927 = vmatpush1.bf16.msra.mxu0 %v1880
  %1928 = vmatprep.subr.bf16.mxu0 0
  %1929 = vmatpush2.bf16.msra.mxu0 %v1895
  %1930 = vmatprep.subr.bf16.mxu0 0
  %1931 = vmatpush2.bf16.msra.mxu0 %v1894
  %1932 = vmatprep.subr.bf16.mxu0 0
  %1933 = vmatpush2.bf16.msra.mxu0 %v1893
  %1934 = vmatprep.subr.bf16.mxu0 0
  %1935 = vmatpush2.bf16.msra.mxu0 %v1892
  %1936 = vmatprep.subr.bf16.mxu0 0
  %1937 = vmatpush2.bf16.msra.mxu0 %v1891
  %1938 = vmatprep.subr.bf16.mxu0 0
  %1939 = vmatpush2.bf16.msra.mxu0 %v1890
  %1940 = vmatprep.subr.bf16.mxu0 0
  %1941 = vmatpush2.bf16.msra.mxu0 %v1889
  %1942 = vmatprep.subr.bf16.mxu0 0
  %1943 = vmatpush2.bf16.msra.mxu0 %v1888
  %1944 = vmatprep.mubr.bf16.mxu0 %v1774
  %1945 = vmatmul.mubr.bf16.gmra.mxu0 %v1773
  %v1946 = vpop.f32.mrf.mxu0
  %v1947 = vadd.f32 %v1814, %v1946
  %v1948 = vpop.f32.mrf.mxu0
  %v1949 = vpop.f32.mrf.mxu0
  %v1950 = vadd.f32 %v1814, %v1949
  %v1951 = vpop.f32.mrf.mxu0
  %1952 = vmatprep.mubr.bf16.mxu0 %v1776
  %1953 = vmatmul.mubr.bf16.gmra.mxu0 %v1775
  %v1954 = vpop.f32.mrf.mxu0
  %v1955 = vadd.f32 %v1814, %v1954
  %v1956 = vpop.f32.mrf.mxu0
  %v1957 = vpop.f32.mrf.mxu0
  %v1958 = vadd.f32 %v1814, %v1957
  %v1959 = vpop.f32.mrf.mxu0
  %1960 = vdwg.mxu0
  %v1961 = vadd.f32 %v1532, %v1947
  %v1962 = vadd.f32 %v1533, %v1950
  %v1963 = vadd.f32 %v1534, %v1955
  %v1964 = vadd.f32 %v1535, %v1958
  %s1965 = scalar_lea.vmem %s1, 1
  %v1966 = vld [vmem:[%s1965] sm:$0x1]
  %s1967 = scalar_lea.vmem %s2, 1
  %v1968 = vld [vmem:[%s1967] sm:$0x1]
  %1969 = vadd.xlane.f32.xlu0 %v1961
  %v1970 = vpop.xlane.xlu0 %1969
  %1971 = vadd.xlane.f32.xlu0 %v1962
  %v1972 = vpop.xlane.xlu0 %1971
  %1973 = vadd.xlane.f32.xlu0 %v1963
  %v1974 = vpop.xlane.xlu0 %1973
  %1975 = vadd.xlane.f32.xlu0 %v1964
  %v1976 = vpop.xlane.xlu0 %1975
  %v1977 = vmul.f32 %v1970, %v148
  %v1978 = vmul.f32 %v1972, %v148
  %v1979 = vmul.f32 %v1974, %v148
  %v1980 = vmul.f32 %v1976, %v148
  %v1981 = vsub.f32 %v1961, %v1977
  %v1982 = vsub.f32 %v1962, %v1978
  %v1983 = vsub.f32 %v1963, %v1979
  %v1984 = vsub.f32 %v1964, %v1980
  %v1985 = vmul.f32 %v1981, %v1981
  %v1986 = vmul.f32 %v1982, %v1982
  %v1987 = vmul.f32 %v1983, %v1983
  %v1988 = vmul.f32 %v1984, %v1984
  %1989 = vadd.xlane.f32.xlu0 %v1985
  %v1990 = vpop.xlane.xlu0 %1989
  %1991 = vadd.xlane.f32.xlu0 %v1986
  %v1992 = vpop.xlane.xlu0 %1991
  %1993 = vadd.xlane.f32.xlu0 %v1987
  %v1994 = vpop.xlane.xlu0 %1993
  %1995 = vadd.xlane.f32.xlu0 %v1988
  %v1996 = vpop.xlane.xlu0 %1995
  %v1997 = vmul.f32 %v1990, %v148
  %v1998 = vmul.f32 %v1992, %v148
  %v1999 = vmul.f32 %v1994, %v148
  %v2000 = vmul.f32 %v1996, %v148
  %v2001 = vadd.f32 %v1997, 1e-05
  %v2002 = vadd.f32 %v1998, 1e-05
  %v2003 = vadd.f32 %v1999, 1e-05
  %v2004 = vadd.f32 %v2000, 1e-05
  %v2005 = vrsqrt.pop %v2001
  %v2006 = vrsqrt.pop %v2002
  %v2007 = vrsqrt.pop %v2003
  %v2008 = vrsqrt.pop %v2004
  %v2009 = vmul.f32 %v1981, %v2005
  %v2010 = vmul.f32 %v1982, %v2006
  %v2011 = vmul.f32 %v1983, %v2007
  %v2012 = vmul.f32 %v1984, %v2008
  %v2014 = vlaneseq
  %v2015 = vshrl.u32 %v2014, 7
  %v2016 = vsub.s32 0, %v2015
  %v2017 = vrot.slane %v1966, %v2016
  %v2019 = vmul.f32 %v2009, %v2017
  %v2020 = vmul.f32 %v2010, %v2017
  %v2021 = vmul.f32 %v2011, %v2017
  %v2022 = vmul.f32 %v2012, %v2017
  %v2024 = vlaneseq
  %v2025 = vshrl.u32 %v2024, 7
  %v2026 = vsub.s32 0, %v2025
  %v2027 = vrot.slane %v1968, %v2026
  %v2029 = vadd.f32 %v2019, %v2027
  %v2030 = vadd.f32 %v2020, %v2027
  %v2031 = vadd.f32 %v2021, %v2027
  %v2032 = vadd.f32 %v2022, %v2027
  %v2033 = vpack.c.bf16 %v2030, %v2029
  %v2034 = vpack.c.bf16 %v2032, %v2031
  %s2035 = scalar_lea.vmem %s3, 192
  %v2036 = vld [vmem:[%s2035] sm:$0xff]
  %v2037 = vld [vmem:[%s2035 + $0x8] sm:$0xf]
  %v2038 = vld [vmem:[%s2035 + $0xc] sm:$0xff]
  %v2039 = vld [vmem:[%s2035 + $0x14] sm:$0xf]
  %v2040 = vld [vmem:[%s2035 + $0x18] sm:$0xff]
  %v2041 = vld [vmem:[%s2035 + $0x20] sm:$0xf]
  %v2042 = vld [vmem:[%s2035 + $0x24] sm:$0xff]
  %v2043 = vld [vmem:[%s2035 + $0x2c] sm:$0xf]
  %v2044 = vld [vmem:[%s2035 + $0x30] sm:$0xff]
  %v2045 = vld [vmem:[%s2035 + $0x38] sm:$0xf]
  %v2046 = vld [vmem:[%s2035 + $0x3c] sm:$0xff]
  %v2047 = vld [vmem:[%s2035 + $0x44] sm:$0xf]
  %v2048 = vld [vmem:[%s2035 + $0x48] sm:$0xff]
  %v2049 = vld [vmem:[%s2035 + $0x50] sm:$0xf]
  %v2050 = vld [vmem:[%s2035 + $0x54] sm:$0xff]
  %v2051 = vld [vmem:[%s2035 + $0x5c] sm:$0xf]
  %v2052 = vld [vmem:[%s2035 + $0x60] sm:$0xff]
  %v2053 = vld [vmem:[%s2035 + $0x68] sm:$0xf]
  %v2054 = vld [vmem:[%s2035 + $0x6c] sm:$0xff]
  %v2055 = vld [vmem:[%s2035 + $0x74] sm:$0xf]
  %v2056 = vld [vmem:[%s2035 + $0x78] sm:$0xff]
  %v2057 = vld [vmem:[%s2035 + $0x80] sm:$0xf]
  %v2058 = vld [vmem:[%s2035 + $0x84] sm:$0xff]
  %v2059 = vld [vmem:[%s2035 + $0x8c] sm:$0xf]
  %v2060 = vld [vmem:[%s2035 + $0x90] sm:$0xff]
  %v2061 = vld [vmem:[%s2035 + $0x98] sm:$0xf]
  %v2062 = vld [vmem:[%s2035 + $0x9c] sm:$0xff]
  %v2063 = vld [vmem:[%s2035 + $0xa4] sm:$0xf]
  %v2064 = vld [vmem:[%s2035 + $0xa8] sm:$0xff]
  %v2065 = vld [vmem:[%s2035 + $0xb0] sm:$0xf]
  %v2066 = vld [vmem:[%s2035 + $0xb4] sm:$0xff]
  %v2067 = vld [vmem:[%s2035 + $0xbc] sm:$0xf]
  %s2068 = scalar_lea.vmem %s4, 3
  %v2069 = vld [vmem:[%s2068] sm:$0x7]
  %v2071 = vlaneseq
  %v2072 = vshrl.u32 %v2071, 7
  %v2073 = vsub.s32 0, %v2072
  %v2074 = vrot.slane %v2069, %v2073
  %v2075 = vlaneseq
  %v2076 = vshrl.u32 %v2075, 7
  %v2077 = vsub.s32 1, %v2076
  %v2078 = vrot.slane %v2069, %v2077
  %v2079 = vlaneseq
  %v2080 = vshrl.u32 %v2079, 7
  %v2081 = vsub.s32 2, %v2080
  %v2082 = vrot.slane %v2069, %v2081
  %v2118 = vunpack.c.l.b16 %v2036
  %v2119 = vunpack.c.h.b16 %v2036
  %v2120 = vunpack.c.l.b16 %v2037
  %v2121 = vunpack.c.l.b16 %v2038
  %v2122 = vunpack.c.h.b16 %v2038
  %v2123 = vunpack.c.l.b16 %v2039
  %v2124 = vunpack.c.l.b16 %v2040
  %v2125 = vunpack.c.h.b16 %v2040
  %v2126 = vunpack.c.l.b16 %v2041
  %v2127 = vunpack.c.l.b16 %v2042
  %v2128 = vunpack.c.h.b16 %v2042
  %v2129 = vunpack.c.l.b16 %v2043
  %v2130 = vunpack.c.l.b16 %v2044
  %v2131 = vunpack.c.h.b16 %v2044
  %v2132 = vunpack.c.l.b16 %v2045
  %v2133 = vunpack.c.l.b16 %v2046
  %v2134 = vunpack.c.h.b16 %v2046
  %v2135 = vunpack.c.l.b16 %v2047
  %v2136 = vunpack.c.l.b16 %v2048
  %v2137 = vunpack.c.h.b16 %v2048
  %v2138 = vunpack.c.l.b16 %v2049
  %v2139 = vunpack.c.l.b16 %v2050
  %v2140 = vunpack.c.h.b16 %v2050
  %v2141 = vunpack.c.l.b16 %v2051
  %v2142 = vunpack.c.l.b16 %v2052
  %v2143 = vunpack.c.h.b16 %v2052
  %v2144 = vunpack.c.l.b16 %v2053
  %v2145 = vunpack.c.l.b16 %v2054
  %v2146 = vunpack.c.h.b16 %v2054
  %v2147 = vunpack.c.l.b16 %v2055
  %v2148 = vunpack.c.l.b16 %v2056
  %v2149 = vunpack.c.h.b16 %v2056
  %v2150 = vunpack.c.l.b16 %v2057
  %v2151 = vunpack.c.l.b16 %v2058
  %v2152 = vunpack.c.h.b16 %v2058
  %v2153 = vunpack.c.l.b16 %v2059
  %v2154 = vunpack.c.l.b16 %v2060
  %v2155 = vunpack.c.h.b16 %v2060
  %v2156 = vunpack.c.l.b16 %v2061
  %v2157 = vunpack.c.l.b16 %v2062
  %v2158 = vunpack.c.h.b16 %v2062
  %v2159 = vunpack.c.l.b16 %v2063
  %v2160 = vunpack.c.l.b16 %v2064
  %v2161 = vunpack.c.h.b16 %v2064
  %v2162 = vunpack.c.l.b16 %v2065
  %v2163 = vunpack.c.l.b16 %v2066
  %v2164 = vunpack.c.h.b16 %v2066
  %v2165 = vunpack.c.l.b16 %v2067
  %v2166 = vpack.c.b16 %v2121, %v2118
  %v2167 = vpack.c.b16 %v2122, %v2119
  %v2168 = vpack.c.b16 %v2123, %v2120
  %v2169 = vpack.c.b16 %v2127, %v2124
  %v2170 = vpack.c.b16 %v2128, %v2125
  %v2171 = vpack.c.b16 %v2129, %v2126
  %v2172 = vpack.c.b16 %v2133, %v2130
  %v2173 = vpack.c.b16 %v2134, %v2131
  %v2174 = vpack.c.b16 %v2135, %v2132
  %v2175 = vpack.c.b16 %v2139, %v2136
  %v2176 = vpack.c.b16 %v2140, %v2137
  %v2177 = vpack.c.b16 %v2141, %v2138
  %v2178 = vpack.c.b16 %v2145, %v2142
  %v2179 = vpack.c.b16 %v2146, %v2143
  %v2180 = vpack.c.b16 %v2147, %v2144
  %v2181 = vpack.c.b16 %v2151, %v2148
  %v2182 = vpack.c.b16 %v2152, %v2149
  %v2183 = vpack.c.b16 %v2153, %v2150
  %v2184 = vpack.c.b16 %v2157, %v2154
  %v2185 = vpack.c.b16 %v2158, %v2155
  %v2186 = vpack.c.b16 %v2159, %v2156
  %v2187 = vpack.c.b16 %v2163, %v2160
  %v2188 = vpack.c.b16 %v2164, %v2161
  %v2189 = vpack.c.b16 %v2165, %v2162
  %2214 = vmatprep.subr.bf16.mxu0 %v2188
  %2215 = vmatpush1.bf16.msra.mxu0 %v2187
  %2216 = vmatprep.subr.bf16.mxu0 %v2185
  %2217 = vmatpush1.bf16.msra.mxu0 %v2184
  %2218 = vmatprep.subr.bf16.mxu0 %v2182
  %2219 = vmatpush1.bf16.msra.mxu0 %v2181
  %2220 = vmatprep.subr.bf16.mxu0 %v2179
  %2221 = vmatpush1.bf16.msra.mxu0 %v2178
  %2222 = vmatprep.subr.bf16.mxu0 %v2176
  %2223 = vmatpush1.bf16.msra.mxu0 %v2175
  %2224 = vmatprep.subr.bf16.mxu0 %v2173
  %2225 = vmatpush1.bf16.msra.mxu0 %v2172
  %2226 = vmatprep.subr.bf16.mxu0 %v2170
  %2227 = vmatpush1.bf16.msra.mxu0 %v2169
  %2228 = vmatprep.subr.bf16.mxu0 %v2167
  %2229 = vmatpush1.bf16.msra.mxu0 %v2166
  %2230 = vmatprep.subr.bf16.mxu0 0
  %2231 = vmatpush2.bf16.msra.mxu0 0
  %2232 = vmatprep.subr.bf16.mxu0 0
  %2233 = vmatpush2.bf16.msra.mxu0 0
  %2234 = vmatprep.subr.bf16.mxu0 0
  %2235 = vmatpush2.bf16.msra.mxu0 0
  %2236 = vmatprep.subr.bf16.mxu0 0
  %2237 = vmatpush2.bf16.msra.mxu0 0
  %2238 = vmatprep.subr.bf16.mxu0 0
  %2239 = vmatpush2.bf16.msra.mxu0 0
  %2240 = vmatprep.subr.bf16.mxu0 0
  %2241 = vmatpush2.bf16.msra.mxu0 0
  %2242 = vmatprep.subr.bf16.mxu0 0
  %2243 = vmatpush2.bf16.msra.mxu0 0
  %2244 = vmatprep.subr.bf16.mxu0 0
  %2245 = vmatpush2.bf16.msra.mxu0 0
  %2246 = vmatprep.mubr.bf16.mxu0 0
  %2247 = vmatmul.mubr.bf16.gmra.mxu0 %v2033
  %v2248 = vpop.f32.mrf.mxu0
  %v2249 = vadd.f32 %v2074, %v2248
  %v2250 = vpop.f32.mrf.mxu0
  %v2251 = vadd.f32 %v2078, %v2250
  %v2252 = vpop.f32.mrf.mxu0
  %v2253 = vadd.f32 %v2074, %v2252
  %v2254 = vpop.f32.mrf.mxu0
  %v2255 = vadd.f32 %v2078, %v2254
  %2256 = vmatprep.mubr.bf16.mxu0 0
  %2257 = vmatmul.mubr.bf16.gmra.mxu0 %v2034
  %v2258 = vpop.f32.mrf.mxu0
  %v2259 = vadd.f32 %v2074, %v2258
  %v2260 = vpop.f32.mrf.mxu0
  %v2261 = vadd.f32 %v2078, %v2260
  %v2262 = vpop.f32.mrf.mxu0
  %v2263 = vadd.f32 %v2074, %v2262
  %v2264 = vpop.f32.mrf.mxu0
  %v2265 = vadd.f32 %v2078, %v2264
  %2266 = vdwg.mxu0
  %2267 = vmatprep.subr.bf16.mxu0 0
  %2268 = vmatpush1.bf16.msra.mxu0 %v2189
  %2269 = vmatprep.subr.bf16.mxu0 0
  %2270 = vmatpush1.bf16.msra.mxu0 %v2186
  %2271 = vmatprep.subr.bf16.mxu0 0
  %2272 = vmatpush1.bf16.msra.mxu0 %v2183
  %2273 = vmatprep.subr.bf16.mxu0 0
  %2274 = vmatpush1.bf16.msra.mxu0 %v2180
  %2275 = vmatprep.subr.bf16.mxu0 0
  %2276 = vmatpush1.bf16.msra.mxu0 %v2177
  %2277 = vmatprep.subr.bf16.mxu0 0
  %2278 = vmatpush1.bf16.msra.mxu0 %v2174
  %2279 = vmatprep.subr.bf16.mxu0 0
  %2280 = vmatpush1.bf16.msra.mxu0 %v2171
  %2281 = vmatprep.subr.bf16.mxu0 0
  %2282 = vmatpush1.bf16.msra.mxu0 %v2168
  %2283 = vmatprep.subr.bf16.mxu0 0
  %2284 = vmatpush2.bf16.msra.mxu0 0
  %2285 = vmatprep.subr.bf16.mxu0 0
  %2286 = vmatpush2.bf16.msra.mxu0 0
  %2287 = vmatprep.subr.bf16.mxu0 0
  %2288 = vmatpush2.bf16.msra.mxu0 0
  %2289 = vmatprep.subr.bf16.mxu0 0
  %2290 = vmatpush2.bf16.msra.mxu0 0
  %2291 = vmatprep.subr.bf16.mxu0 0
  %2292 = vmatpush2.bf16.msra.mxu0 0
  %2293 = vmatprep.subr.bf16.mxu0 0
  %2294 = vmatpush2.bf16.msra.mxu0 0
  %2295 = vmatprep.subr.bf16.mxu0 0
  %2296 = vmatpush2.bf16.msra.mxu0 0
  %2297 = vmatprep.subr.bf16.mxu0 0
  %2298 = vmatpush2.bf16.msra.mxu0 0
  %2299 = vmatprep.mubr.bf16.mxu0 0
  %2300 = vmatmul.mubr.bf16.gmra.mxu0 %v2033
  %v2301 = vpop.f32.mrf.mxu0
  %v2302 = vadd.f32 %v2082, %v2301
  %v2303 = vpop.f32.mrf.mxu0
  %v2304 = vpop.f32.mrf.mxu0
  %v2305 = vadd.f32 %v2082, %v2304
  %v2306 = vpop.f32.mrf.mxu0
  %2307 = vmatprep.mubr.bf16.mxu0 0
  %2308 = vmatmul.mubr.bf16.gmra.mxu0 %v2034
  %v2309 = vpop.f32.mrf.mxu0
  %v2310 = vadd.f32 %v2082, %v2309
  %v2311 = vpop.f32.mrf.mxu0
  %v2312 = vpop.f32.mrf.mxu0
  %v2313 = vadd.f32 %v2082, %v2312
  %v2314 = vpop.f32.mrf.mxu0
  %2315 = vdwg.mxu0
  %s2316 = scalar_lea.vmem %s5, 64
  %v2317 = vld [vmem:[%s2316] sm:$0xf]
  %v2318 = vld [vmem:[%s2316 + $0x4] sm:$0xf]
  %v2319 = vld [vmem:[%s2316 + $0x8] sm:$0xf]
  %v2320 = vld [vmem:[%s2316 + $0xc] sm:$0xf]
  %v2321 = vld [vmem:[%s2316 + $0x10] sm:$0xf]
  %v2322 = vld [vmem:[%s2316 + $0x14] sm:$0xf]
  %v2323 = vld [vmem:[%s2316 + $0x18] sm:$0xf]
  %v2324 = vld [vmem:[%s2316 + $0x1c] sm:$0xf]
  %v2325 = vld [vmem:[%s2316 + $0x20] sm:$0xf]
  %v2326 = vld [vmem:[%s2316 + $0x24] sm:$0xf]
  %v2327 = vld [vmem:[%s2316 + $0x28] sm:$0xf]
  %v2328 = vld [vmem:[%s2316 + $0x2c] sm:$0xf]
  %v2329 = vld [vmem:[%s2316 + $0x30] sm:$0xf]
  %v2330 = vld [vmem:[%s2316 + $0x34] sm:$0xf]
  %v2331 = vld [vmem:[%s2316 + $0x38] sm:$0xf]
  %v2332 = vld [vmem:[%s2316 + $0x3c] sm:$0xf]
  %v2333 = vpack.c.bf16 %v2253, %v2249
  %v2334 = vpack.c.bf16 %v2263, %v2259
  %v2335 = vpack.c.bf16 %v2255, %v2251
  %v2336 = vpack.c.bf16 %v2265, %v2261
  %v2338 = vsel %vm506, %v2333, 0
  %v2341 = vsel %vm506, %v2334, 0
  %v2344 = vsel %vm506, %v2335, 0
  %v2347 = vsel %vm506, %v2336, 0
  %2349 = vmatprep.subr.bf16.mxu0 0
  %2350 = vmatpush1.bf16.xpose.msra.mxu0 0
  %2351 = vmatprep.subr.bf16.mxu0 0
  %2352 = vmatpush1.bf16.xpose.msra.mxu0 0
  %2353 = vmatprep.subr.bf16.mxu0 0
  %2354 = vmatpush1.bf16.xpose.msra.mxu0 0
  %2355 = vmatprep.subr.bf16.mxu0 0
  %2356 = vmatpush1.bf16.xpose.msra.mxu0 0
  %2357 = vmatprep.subr.bf16.mxu0 0
  %2358 = vmatpush1.bf16.xpose.msra.mxu0 0
  %2359 = vmatprep.subr.bf16.mxu0 0
  %2360 = vmatpush1.bf16.xpose.msra.mxu0 0
  %2361 = vmatprep.subr.bf16.mxu0 0
  %2362 = vmatpush1.bf16.xpose.msra.mxu0 %v2347
  %2363 = vmatprep.subr.bf16.mxu0 0
  %2364 = vmatpush1.bf16.xpose.msra.mxu0 %v2344
  %2365 = vmatprep.subr.bf16.mxu0 0
  %2366 = vmatpush2.bf16.xpose.msra.mxu0 0
  %2367 = vmatprep.subr.bf16.mxu0 0
  %2368 = vmatpush2.bf16.xpose.msra.mxu0 0
  %2369 = vmatprep.subr.bf16.mxu0 0
  %2370 = vmatpush2.bf16.xpose.msra.mxu0 0
  %2371 = vmatprep.subr.bf16.mxu0 0
  %2372 = vmatpush2.bf16.xpose.msra.mxu0 0
  %2373 = vmatprep.subr.bf16.mxu0 0
  %2374 = vmatpush2.bf16.xpose.msra.mxu0 0
  %2375 = vmatprep.subr.bf16.mxu0 0
  %2376 = vmatpush2.bf16.xpose.msra.mxu0 0
  %2377 = vmatprep.subr.bf16.mxu0 0
  %2378 = vmatpush2.bf16.xpose.msra.mxu0 0
  %2379 = vmatprep.subr.bf16.mxu0 0
  %2380 = vmatpush2.bf16.xpose.msra.mxu0 0
  %2381 = vmatprep.mubr.bf16.mxu0 0
  %2382 = vmatmul.mubr.bf16.gmra.mxu0 %v2338
  %v2383 = vpop.f32.mrf.mxu0
  %v2384 = vadd.f32 0.0, %v2383
  %v2385 = vpop.f32.mrf.mxu0
  %v2386 = vpop.f32.mrf.mxu0
  %v2387 = vadd.f32 0.0, %v2386
  %v2388 = vpop.f32.mrf.mxu0
  %2389 = vmatprep.mubr.bf16.mxu0 0
  %2390 = vmatmul.mubr.bf16.gmra.mxu0 %v2341
  %v2391 = vpop.f32.mrf.mxu0
  %v2392 = vadd.f32 0.0, %v2391
  %v2393 = vpop.f32.mrf.mxu0
  %v2394 = vpop.f32.mrf.mxu0
  %v2395 = vadd.f32 0.0, %v2394
  %v2396 = vpop.f32.mrf.mxu0
  %2397 = vdwg.mxu0
  %v2398 = vmul.f32 %v2384, 0.17677669
  %v2399 = vmul.f32 %v2387, 0.17677669
  %v2400 = vmul.f32 %v2392, 0.17677669
  %v2401 = vmul.f32 %v2395, 0.17677669
  %v2402 = vadd.f32 %v2398, %v130
  %v2403 = vadd.f32 %v2399, %v131
  %v2404 = vadd.f32 %v2400, %v132
  %v2405 = vadd.f32 %v2401, %v133
  %v2406 = vsel %vm506, %v2402, -inf
  %2407 = vmax.xlane.f32.xlu0 %v2406
  %v2408 = vpop.xlane.xlu0 %2407
  %v2409 = vsel %vm506, %v2403, -inf
  %2410 = vmax.xlane.f32.xlu0 %v2409
  %v2411 = vpop.xlane.xlu0 %2410
  %v2412 = vsel %vm506, %v2404, -inf
  %2413 = vmax.xlane.f32.xlu0 %v2412
  %v2414 = vpop.xlane.xlu0 %2413
  %v2415 = vsel %vm506, %v2405, -inf
  %2416 = vmax.xlane.f32.xlu0 %v2415
  %v2417 = vpop.xlane.xlu0 %2416
  %v2418 = vsub.f32 %v2402, %v2408
  %v2419 = vsub.f32 %v2403, %v2411
  %v2420 = vsub.f32 %v2404, %v2414
  %v2421 = vsub.f32 %v2405, %v2417
  %v2422 = vmul.f32 %v2418, 1.442695
  %v2423 = vpow.pop %v2422
  %v2424 = vmul.f32 %v2419, 1.442695
  %v2425 = vpow.pop %v2424
  %v2426 = vmul.f32 %v2420, 1.442695
  %v2427 = vpow.pop %v2426
  %v2428 = vmul.f32 %v2421, 1.442695
  %v2429 = vpow.pop %v2428
  %v2430 = vsel %vm506, %v2423, 0.0
  %2431 = vadd.xlane.f32.xlu0 %v2430
  %v2432 = vpop.xlane.xlu0 %2431
  %v2433 = vsel %vm506, %v2425, 0.0
  %2434 = vadd.xlane.f32.xlu0 %v2433
  %v2435 = vpop.xlane.xlu0 %2434
  %v2436 = vsel %vm506, %v2427, 0.0
  %2437 = vadd.xlane.f32.xlu0 %v2436
  %v2438 = vpop.xlane.xlu0 %2437
  %v2439 = vsel %vm506, %v2429, 0.0
  %2440 = vadd.xlane.f32.xlu0 %v2439
  %v2441 = vpop.xlane.xlu0 %2440
  %v2442 = vrcp.pop %v2432
  %v2443 = vrcp.pop %v2435
  %v2444 = vrcp.pop %v2438
  %v2445 = vrcp.pop %v2441
  %v2446 = vmul.f32 %v2423, %v2442
  %v2447 = vmul.f32 %v2425, %v2443
  %v2448 = vmul.f32 %v2427, %v2444
  %v2449 = vmul.f32 %v2429, %v2445
  %v2450 = vpack.c.bf16 %v2447, %v2446
  %v2451 = vpack.c.bf16 %v2449, %v2448
  %v2452 = vpack.c.bf16 %v2305, %v2302
  %v2453 = vpack.c.bf16 %v2313, %v2310
  %v2455 = vsel %vm506, %v2450, 0
  %v2458 = vsel %vm506, %v2451, 0
  %2460 = vmatprep.subr.bf16.mxu0 0
  %2461 = vmatpush1.bf16.msra.mxu0 0
  %2462 = vmatprep.subr.bf16.mxu0 0
  %2463 = vmatpush1.bf16.msra.mxu0 0
  %2464 = vmatprep.subr.bf16.mxu0 0
  %2465 = vmatpush1.bf16.msra.mxu0 0
  %2466 = vmatprep.subr.bf16.mxu0 0
  %2467 = vmatpush1.bf16.msra.mxu0 0
  %2468 = vmatprep.subr.bf16.mxu0 0
  %2469 = vmatpush1.bf16.msra.mxu0 0
  %2470 = vmatprep.subr.bf16.mxu0 0
  %2471 = vmatpush1.bf16.msra.mxu0 0
  %2472 = vmatprep.subr.bf16.mxu0 0
  %2473 = vmatpush1.bf16.msra.mxu0 %v2453
  %2474 = vmatprep.subr.bf16.mxu0 0
  %2475 = vmatpush1.bf16.msra.mxu0 %v2452
  %2476 = vmatprep.subr.bf16.mxu0 0
  %2477 = vmatpush2.bf16.msra.mxu0 0
  %2478 = vmatprep.subr.bf16.mxu0 0
  %2479 = vmatpush2.bf16.msra.mxu0 0
  %2480 = vmatprep.subr.bf16.mxu0 0
  %2481 = vmatpush2.bf16.msra.mxu0 0
  %2482 = vmatprep.subr.bf16.mxu0 0
  %2483 = vmatpush2.bf16.msra.mxu0 0
  %2484 = vmatprep.subr.bf16.mxu0 0
  %2485 = vmatpush2.bf16.msra.mxu0 0
  %2486 = vmatprep.subr.bf16.mxu0 0
  %2487 = vmatpush2.bf16.msra.mxu0 0
  %2488 = vmatprep.subr.bf16.mxu0 0
  %2489 = vmatpush2.bf16.msra.mxu0 0
  %2490 = vmatprep.subr.bf16.mxu0 0
  %2491 = vmatpush2.bf16.msra.mxu0 0
  %2492 = vmatprep.mubr.bf16.mxu0 0
  %2493 = vmatmul.mubr.bf16.gmra.mxu0 %v2455
  %v2494 = vpop.f32.mrf.mxu0
  %v2495 = vadd.f32 0.0, %v2494
  %v2496 = vpop.f32.mrf.mxu0
  %v2497 = vpop.f32.mrf.mxu0
  %v2498 = vadd.f32 0.0, %v2497
  %v2499 = vpop.f32.mrf.mxu0
  %2500 = vmatprep.mubr.bf16.mxu0 0
  %2501 = vmatmul.mubr.bf16.gmra.mxu0 %v2458
  %v2502 = vpop.f32.mrf.mxu0
  %v2503 = vadd.f32 0.0, %v2502
  %v2504 = vpop.f32.mrf.mxu0
  %v2505 = vpop.f32.mrf.mxu0
  %v2506 = vadd.f32 0.0, %v2505
  %v2507 = vpop.f32.mrf.mxu0
  %2508 = vdwg.mxu0
  %v2509 = vpack.c.bf16 %v2498, %v2495
  %v2510 = vpack.c.bf16 %v2506, %v2503
  %2513 = vrot.lane.b32.xlu0 %v2333, 96
  %v2514 = vpop.permute.xlu0 %2513
  %2515 = vrot.lane.b32.xlu0 %v2334, 96
  %v2516 = vpop.permute.xlu0 %2515
  %2519 = vrot.lane.b32.xlu0 %v2335, 96
  %v2520 = vpop.permute.xlu0 %2519
  %2521 = vrot.lane.b32.xlu0 %v2336, 96
  %v2522 = vpop.permute.xlu0 %2521
  %v2524 = vsel %vm506, %v2514, 0
  %v2527 = vsel %vm506, %v2516, 0
  %v2530 = vsel %vm506, %v2520, 0
  %v2533 = vsel %vm506, %v2522, 0
  %2535 = vmatprep.subr.bf16.mxu0 0
  %2536 = vmatpush1.bf16.xpose.msra.mxu0 0
  %2537 = vmatprep.subr.bf16.mxu0 0
  %2538 = vmatpush1.bf16.xpose.msra.mxu0 0
  %2539 = vmatprep.subr.bf16.mxu0 0
  %2540 = vmatpush1.bf16.xpose.msra.mxu0 0
  %2541 = vmatprep.subr.bf16.mxu0 0
  %2542 = vmatpush1.bf16.xpose.msra.mxu0 0
  %2543 = vmatprep.subr.bf16.mxu0 0
  %2544 = vmatpush1.bf16.xpose.msra.mxu0 0
  %2545 = vmatprep.subr.bf16.mxu0 0
  %2546 = vmatpush1.bf16.xpose.msra.mxu0 0
  %2547 = vmatprep.subr.bf16.mxu0 0
  %2548 = vmatpush1.bf16.xpose.msra.mxu0 %v2533
  %2549 = vmatprep.subr.bf16.mxu0 0
  %2550 = vmatpush1.bf16.xpose.msra.mxu0 %v2530
  %2551 = vmatprep.subr.bf16.mxu0 0
  %2552 = vmatpush2.bf16.xpose.msra.mxu0 0
  %2553 = vmatprep.subr.bf16.mxu0 0
  %2554 = vmatpush2.bf16.xpose.msra.mxu0 0
  %2555 = vmatprep.subr.bf16.mxu0 0
  %2556 = vmatpush2.bf16.xpose.msra.mxu0 0
  %2557 = vmatprep.subr.bf16.mxu0 0
  %2558 = vmatpush2.bf16.xpose.msra.mxu0 0
  %2559 = vmatprep.subr.bf16.mxu0 0
  %2560 = vmatpush2.bf16.xpose.msra.mxu0 0
  %2561 = vmatprep.subr.bf16.mxu0 0
  %2562 = vmatpush2.bf16.xpose.msra.mxu0 0
  %2563 = vmatprep.subr.bf16.mxu0 0
  %2564 = vmatpush2.bf16.xpose.msra.mxu0 0
  %2565 = vmatprep.subr.bf16.mxu0 0
  %2566 = vmatpush2.bf16.xpose.msra.mxu0 0
  %2567 = vmatprep.mubr.bf16.mxu0 0
  %2568 = vmatmul.mubr.bf16.gmra.mxu0 %v2524
  %v2569 = vpop.f32.mrf.mxu0
  %v2570 = vadd.f32 0.0, %v2569
  %v2571 = vpop.f32.mrf.mxu0
  %v2572 = vpop.f32.mrf.mxu0
  %v2573 = vadd.f32 0.0, %v2572
  %v2574 = vpop.f32.mrf.mxu0
  %2575 = vmatprep.mubr.bf16.mxu0 0
  %2576 = vmatmul.mubr.bf16.gmra.mxu0 %v2527
  %v2577 = vpop.f32.mrf.mxu0
  %v2578 = vadd.f32 0.0, %v2577
  %v2579 = vpop.f32.mrf.mxu0
  %v2580 = vpop.f32.mrf.mxu0
  %v2581 = vadd.f32 0.0, %v2580
  %v2582 = vpop.f32.mrf.mxu0
  %2583 = vdwg.mxu0
  %v2584 = vmul.f32 %v2570, 0.17677669
  %v2585 = vmul.f32 %v2573, 0.17677669
  %v2586 = vmul.f32 %v2578, 0.17677669
  %v2587 = vmul.f32 %v2581, 0.17677669
  %v2588 = vadd.f32 %v2584, %v130
  %v2589 = vadd.f32 %v2585, %v131
  %v2590 = vadd.f32 %v2586, %v132
  %v2591 = vadd.f32 %v2587, %v133
  %v2592 = vsel %vm506, %v2588, -inf
  %2593 = vmax.xlane.f32.xlu0 %v2592
  %v2594 = vpop.xlane.xlu0 %2593
  %v2595 = vsel %vm506, %v2589, -inf
  %2596 = vmax.xlane.f32.xlu0 %v2595
  %v2597 = vpop.xlane.xlu0 %2596
  %v2598 = vsel %vm506, %v2590, -inf
  %2599 = vmax.xlane.f32.xlu0 %v2598
  %v2600 = vpop.xlane.xlu0 %2599
  %v2601 = vsel %vm506, %v2591, -inf
  %2602 = vmax.xlane.f32.xlu0 %v2601
  %v2603 = vpop.xlane.xlu0 %2602
  %v2604 = vsub.f32 %v2588, %v2594
  %v2605 = vsub.f32 %v2589, %v2597
  %v2606 = vsub.f32 %v2590, %v2600
  %v2607 = vsub.f32 %v2591, %v2603
  %v2608 = vmul.f32 %v2604, 1.442695
  %v2609 = vpow.pop %v2608
  %v2610 = vmul.f32 %v2605, 1.442695
  %v2611 = vpow.pop %v2610
  %v2612 = vmul.f32 %v2606, 1.442695
  %v2613 = vpow.pop %v2612
  %v2614 = vmul.f32 %v2607, 1.442695
  %v2615 = vpow.pop %v2614
  %v2616 = vsel %vm506, %v2609, 0.0
  %2617 = vadd.xlane.f32.xlu0 %v2616
  %v2618 = vpop.xlane.xlu0 %2617
  %v2619 = vsel %vm506, %v2611, 0.0
  %2620 = vadd.xlane.f32.xlu0 %v2619
  %v2621 = vpop.xlane.xlu0 %2620
  %v2622 = vsel %vm506, %v2613, 0.0
  %2623 = vadd.xlane.f32.xlu0 %v2622
  %v2624 = vpop.xlane.xlu0 %2623
  %v2625 = vsel %vm506, %v2615, 0.0
  %2626 = vadd.xlane.f32.xlu0 %v2625
  %v2627 = vpop.xlane.xlu0 %2626
  %v2628 = vrcp.pop %v2618
  %v2629 = vrcp.pop %v2621
  %v2630 = vrcp.pop %v2624
  %v2631 = vrcp.pop %v2627
  %v2632 = vmul.f32 %v2609, %v2628
  %v2633 = vmul.f32 %v2611, %v2629
  %v2634 = vmul.f32 %v2613, %v2630
  %v2635 = vmul.f32 %v2615, %v2631
  %v2636 = vpack.c.bf16 %v2633, %v2632
  %v2637 = vpack.c.bf16 %v2635, %v2634
  %2640 = vrot.lane.b32.xlu0 %v2452, 96
  %v2641 = vpop.permute.xlu0 %2640
  %2642 = vrot.lane.b32.xlu0 %v2453, 96
  %v2643 = vpop.permute.xlu0 %2642
  %v2647 = vsel %vm506, %v2636, 0
  %v2650 = vsel %vm506, %v2637, 0
  %2652 = vmatprep.subr.bf16.mxu0 0
  %2653 = vmatpush1.bf16.msra.mxu0 0
  %2654 = vmatprep.subr.bf16.mxu0 0
  %2655 = vmatpush1.bf16.msra.mxu0 0
  %2656 = vmatprep.subr.bf16.mxu0 0
  %2657 = vmatpush1.bf16.msra.mxu0 0
  %2658 = vmatprep.subr.bf16.mxu0 0
  %2659 = vmatpush1.bf16.msra.mxu0 0
  %2660 = vmatprep.subr.bf16.mxu0 0
  %2661 = vmatpush1.bf16.msra.mxu0 0
  %2662 = vmatprep.subr.bf16.mxu0 0
  %2663 = vmatpush1.bf16.msra.mxu0 0
  %2664 = vmatprep.subr.bf16.mxu0 0
  %2665 = vmatpush1.bf16.msra.mxu0 %v2643
  %2666 = vmatprep.subr.bf16.mxu0 0
  %2667 = vmatpush1.bf16.msra.mxu0 %v2641
  %2668 = vmatprep.subr.bf16.mxu0 0
  %2669 = vmatpush2.bf16.msra.mxu0 0
  %2670 = vmatprep.subr.bf16.mxu0 0
  %2671 = vmatpush2.bf16.msra.mxu0 0
  %2672 = vmatprep.subr.bf16.mxu0 0
  %2673 = vmatpush2.bf16.msra.mxu0 0
  %2674 = vmatprep.subr.bf16.mxu0 0
  %2675 = vmatpush2.bf16.msra.mxu0 0
  %2676 = vmatprep.subr.bf16.mxu0 0
  %2677 = vmatpush2.bf16.msra.mxu0 0
  %2678 = vmatprep.subr.bf16.mxu0 0
  %2679 = vmatpush2.bf16.msra.mxu0 0
  %2680 = vmatprep.subr.bf16.mxu0 0
  %2681 = vmatpush2.bf16.msra.mxu0 0
  %2682 = vmatprep.subr.bf16.mxu0 0
  %2683 = vmatpush2.bf16.msra.mxu0 0
  %2684 = vmatprep.mubr.bf16.mxu0 0
  %2685 = vmatmul.mubr.bf16.gmra.mxu0 %v2647
  %v2686 = vpop.f32.mrf.mxu0
  %v2687 = vadd.f32 0.0, %v2686
  %v2688 = vpop.f32.mrf.mxu0
  %v2689 = vpop.f32.mrf.mxu0
  %v2690 = vadd.f32 0.0, %v2689
  %v2691 = vpop.f32.mrf.mxu0
  %2692 = vmatprep.mubr.bf16.mxu0 0
  %2693 = vmatmul.mubr.bf16.gmra.mxu0 %v2650
  %v2694 = vpop.f32.mrf.mxu0
  %v2695 = vadd.f32 0.0, %v2694
  %v2696 = vpop.f32.mrf.mxu0
  %v2697 = vpop.f32.mrf.mxu0
  %v2698 = vadd.f32 0.0, %v2697
  %v2699 = vpop.f32.mrf.mxu0
  %2700 = vdwg.mxu0
  %v2701 = vpack.c.bf16 %v2690, %v2687
  %v2702 = vpack.c.bf16 %v2698, %v2695
  %v2707 = vunpack.c.l.b16 %v2321
  %v2708 = vunpack.c.l.b16 %v2322
  %v2709 = vunpack.c.l.b16 %v2323
  %v2710 = vunpack.c.l.b16 %v2324
  %v2711 = vpack.c.b16 %v2708, %v2707
  %v2712 = vpack.c.b16 %v2710, %v2709
  %v2716 = vsel %vm506, %v2701, 0
  %v2719 = vsel %vm506, %v2702, 0
  %2721 = vmatprep.subr.bf16.mxu0 0
  %2722 = vmatpush1.bf16.msra.mxu0 0
  %2723 = vmatprep.subr.bf16.mxu0 0
  %2724 = vmatpush1.bf16.msra.mxu0 0
  %2725 = vmatprep.subr.bf16.mxu0 0
  %2726 = vmatpush1.bf16.msra.mxu0 0
  %2727 = vmatprep.subr.bf16.mxu0 0
  %2728 = vmatpush1.bf16.msra.mxu0 0
  %2729 = vmatprep.subr.bf16.mxu0 0
  %2730 = vmatpush1.bf16.msra.mxu0 0
  %2731 = vmatprep.subr.bf16.mxu0 0
  %2732 = vmatpush1.bf16.msra.mxu0 0
  %2733 = vmatprep.subr.bf16.mxu0 0
  %2734 = vmatpush1.bf16.msra.mxu0 %v2712
  %2735 = vmatprep.subr.bf16.mxu0 0
  %2736 = vmatpush1.bf16.msra.mxu0 %v2711
  %2737 = vmatprep.subr.bf16.mxu0 0
  %2738 = vmatpush2.bf16.msra.mxu0 0
  %2739 = vmatprep.subr.bf16.mxu0 0
  %2740 = vmatpush2.bf16.msra.mxu0 0
  %2741 = vmatprep.subr.bf16.mxu0 0
  %2742 = vmatpush2.bf16.msra.mxu0 0
  %2743 = vmatprep.subr.bf16.mxu0 0
  %2744 = vmatpush2.bf16.msra.mxu0 0
  %2745 = vmatprep.subr.bf16.mxu0 0
  %2746 = vmatpush2.bf16.msra.mxu0 0
  %2747 = vmatprep.subr.bf16.mxu0 0
  %2748 = vmatpush2.bf16.msra.mxu0 0
  %2749 = vmatprep.subr.bf16.mxu0 0
  %2750 = vmatpush2.bf16.msra.mxu0 0
  %2751 = vmatprep.subr.bf16.mxu0 0
  %2752 = vmatpush2.bf16.msra.mxu0 0
  %2753 = vmatprep.mubr.bf16.mxu0 0
  %2754 = vmatmul.mubr.bf16.gmra.mxu0 %v2716
  %v2755 = vpop.f32.mrf.mxu0
  %v2756 = vadd.f32 0.0, %v2755
  %v2757 = vpop.f32.mrf.mxu0
  %v2758 = vpop.f32.mrf.mxu0
  %v2759 = vadd.f32 0.0, %v2758
  %v2760 = vpop.f32.mrf.mxu0
  %2761 = vmatprep.mubr.bf16.mxu0 0
  %2762 = vmatmul.mubr.bf16.gmra.mxu0 %v2719
  %v2763 = vpop.f32.mrf.mxu0
  %v2764 = vadd.f32 0.0, %v2763
  %v2765 = vpop.f32.mrf.mxu0
  %v2766 = vpop.f32.mrf.mxu0
  %v2767 = vadd.f32 0.0, %v2766
  %v2768 = vpop.f32.mrf.mxu0
  %2769 = vdwg.mxu0
  %v2774 = vunpack.c.l.b16 %v2317
  %v2775 = vunpack.c.l.b16 %v2318
  %v2776 = vunpack.c.l.b16 %v2319
  %v2777 = vunpack.c.l.b16 %v2320
  %v2778 = vpack.c.b16 %v2775, %v2774
  %v2779 = vpack.c.b16 %v2777, %v2776
  %v2783 = vsel %vm506, %v2509, 0
  %v2786 = vsel %vm506, %v2510, 0
  %2788 = vmatprep.subr.bf16.mxu0 0
  %2789 = vmatpush1.bf16.msra.mxu0 0
  %2790 = vmatprep.subr.bf16.mxu0 0
  %2791 = vmatpush1.bf16.msra.mxu0 0
  %2792 = vmatprep.subr.bf16.mxu0 0
  %2793 = vmatpush1.bf16.msra.mxu0 0
  %2794 = vmatprep.subr.bf16.mxu0 0
  %2795 = vmatpush1.bf16.msra.mxu0 0
  %2796 = vmatprep.subr.bf16.mxu0 0
  %2797 = vmatpush1.bf16.msra.mxu0 0
  %2798 = vmatprep.subr.bf16.mxu0 0
  %2799 = vmatpush1.bf16.msra.mxu0 0
  %2800 = vmatprep.subr.bf16.mxu0 0
  %2801 = vmatpush1.bf16.msra.mxu0 %v2779
  %2802 = vmatprep.subr.bf16.mxu0 0
  %2803 = vmatpush1.bf16.msra.mxu0 %v2778
  %2804 = vmatprep.subr.bf16.mxu0 0
  %2805 = vmatpush2.bf16.msra.mxu0 0
  %2806 = vmatprep.subr.bf16.mxu0 0
  %2807 = vmatpush2.bf16.msra.mxu0 0
  %2808 = vmatprep.subr.bf16.mxu0 0
  %2809 = vmatpush2.bf16.msra.mxu0 0
  %2810 = vmatprep.subr.bf16.mxu0 0
  %2811 = vmatpush2.bf16.msra.mxu0 0
  %2812 = vmatprep.subr.bf16.mxu0 0
  %2813 = vmatpush2.bf16.msra.mxu0 0
  %2814 = vmatprep.subr.bf16.mxu0 0
  %2815 = vmatpush2.bf16.msra.mxu0 0
  %2816 = vmatprep.subr.bf16.mxu0 0
  %2817 = vmatpush2.bf16.msra.mxu0 0
  %2818 = vmatprep.subr.bf16.mxu0 0
  %2819 = vmatpush2.bf16.msra.mxu0 0
  %2820 = vmatprep.mubr.bf16.mxu0 0
  %2821 = vmatmul.mubr.bf16.gmra.mxu0 %v2783
  %v2822 = vpop.f32.mrf.mxu0
  %v2823 = vadd.f32 %v2756, %v2822
  %v2824 = vpop.f32.mrf.mxu0
  %v2825 = vpop.f32.mrf.mxu0
  %v2826 = vadd.f32 %v2759, %v2825
  %v2827 = vpop.f32.mrf.mxu0
  %2828 = vmatprep.mubr.bf16.mxu0 0
  %2829 = vmatmul.mubr.bf16.gmra.mxu0 %v2786
  %v2830 = vpop.f32.mrf.mxu0
  %v2831 = vadd.f32 %v2764, %v2830
  %v2832 = vpop.f32.mrf.mxu0
  %v2833 = vpop.f32.mrf.mxu0
  %v2834 = vadd.f32 %v2767, %v2833
  %v2835 = vpop.f32.mrf.mxu0
  %2836 = vdwg.mxu0
  %2837 = vrot.lane.b32.xlu0 %v2333, 64
  %v2838 = vpop.permute.xlu0 %2837
  %2839 = vrot.lane.b32.xlu0 %v2334, 64
  %v2840 = vpop.permute.xlu0 %2839
  %2841 = vrot.lane.b32.xlu0 %v2335, 64
  %v2842 = vpop.permute.xlu0 %2841
  %2843 = vrot.lane.b32.xlu0 %v2336, 64
  %v2844 = vpop.permute.xlu0 %2843
  %v2846 = vsel %vm506, %v2838, 0
  %v2849 = vsel %vm506, %v2840, 0
  %v2852 = vsel %vm506, %v2842, 0
  %v2855 = vsel %vm506, %v2844, 0
  %2857 = vmatprep.subr.bf16.mxu0 0
  %2858 = vmatpush1.bf16.xpose.msra.mxu0 0
  %2859 = vmatprep.subr.bf16.mxu0 0
  %2860 = vmatpush1.bf16.xpose.msra.mxu0 0
  %2861 = vmatprep.subr.bf16.mxu0 0
  %2862 = vmatpush1.bf16.xpose.msra.mxu0 0
  %2863 = vmatprep.subr.bf16.mxu0 0
  %2864 = vmatpush1.bf16.xpose.msra.mxu0 0
  %2865 = vmatprep.subr.bf16.mxu0 0
  %2866 = vmatpush1.bf16.xpose.msra.mxu0 0
  %2867 = vmatprep.subr.bf16.mxu0 0
  %2868 = vmatpush1.bf16.xpose.msra.mxu0 0
  %2869 = vmatprep.subr.bf16.mxu0 0
  %2870 = vmatpush1.bf16.xpose.msra.mxu0 %v2855
  %2871 = vmatprep.subr.bf16.mxu0 0
  %2872 = vmatpush1.bf16.xpose.msra.mxu0 %v2852
  %2873 = vmatprep.subr.bf16.mxu0 0
  %2874 = vmatpush2.bf16.xpose.msra.mxu0 0
  %2875 = vmatprep.subr.bf16.mxu0 0
  %2876 = vmatpush2.bf16.xpose.msra.mxu0 0
  %2877 = vmatprep.subr.bf16.mxu0 0
  %2878 = vmatpush2.bf16.xpose.msra.mxu0 0
  %2879 = vmatprep.subr.bf16.mxu0 0
  %2880 = vmatpush2.bf16.xpose.msra.mxu0 0
  %2881 = vmatprep.subr.bf16.mxu0 0
  %2882 = vmatpush2.bf16.xpose.msra.mxu0 0
  %2883 = vmatprep.subr.bf16.mxu0 0
  %2884 = vmatpush2.bf16.xpose.msra.mxu0 0
  %2885 = vmatprep.subr.bf16.mxu0 0
  %2886 = vmatpush2.bf16.xpose.msra.mxu0 0
  %2887 = vmatprep.subr.bf16.mxu0 0
  %2888 = vmatpush2.bf16.xpose.msra.mxu0 0
  %2889 = vmatprep.mubr.bf16.mxu0 0
  %2890 = vmatmul.mubr.bf16.gmra.mxu0 %v2846
  %v2891 = vpop.f32.mrf.mxu0
  %v2892 = vadd.f32 0.0, %v2891
  %v2893 = vpop.f32.mrf.mxu0
  %v2894 = vpop.f32.mrf.mxu0
  %v2895 = vadd.f32 0.0, %v2894
  %v2896 = vpop.f32.mrf.mxu0
  %2897 = vmatprep.mubr.bf16.mxu0 0
  %2898 = vmatmul.mubr.bf16.gmra.mxu0 %v2849
  %v2899 = vpop.f32.mrf.mxu0
  %v2900 = vadd.f32 0.0, %v2899
  %v2901 = vpop.f32.mrf.mxu0
  %v2902 = vpop.f32.mrf.mxu0
  %v2903 = vadd.f32 0.0, %v2902
  %v2904 = vpop.f32.mrf.mxu0
  %2905 = vdwg.mxu0
  %v2906 = vmul.f32 %v2892, 0.17677669
  %v2907 = vmul.f32 %v2895, 0.17677669
  %v2908 = vmul.f32 %v2900, 0.17677669
  %v2909 = vmul.f32 %v2903, 0.17677669
  %v2910 = vadd.f32 %v2906, %v130
  %v2911 = vadd.f32 %v2907, %v131
  %v2912 = vadd.f32 %v2908, %v132
  %v2913 = vadd.f32 %v2909, %v133
  %v2914 = vsel %vm506, %v2910, -inf
  %2915 = vmax.xlane.f32.xlu0 %v2914
  %v2916 = vpop.xlane.xlu0 %2915
  %v2917 = vsel %vm506, %v2911, -inf
  %2918 = vmax.xlane.f32.xlu0 %v2917
  %v2919 = vpop.xlane.xlu0 %2918
  %v2920 = vsel %vm506, %v2912, -inf
  %2921 = vmax.xlane.f32.xlu0 %v2920
  %v2922 = vpop.xlane.xlu0 %2921
  %v2923 = vsel %vm506, %v2913, -inf
  %2924 = vmax.xlane.f32.xlu0 %v2923
  %v2925 = vpop.xlane.xlu0 %2924
  %v2926 = vsub.f32 %v2910, %v2916
  %v2927 = vsub.f32 %v2911, %v2919
  %v2928 = vsub.f32 %v2912, %v2922
  %v2929 = vsub.f32 %v2913, %v2925
  %v2930 = vmul.f32 %v2926, 1.442695
  %v2931 = vpow.pop %v2930
  %v2932 = vmul.f32 %v2927, 1.442695
  %v2933 = vpow.pop %v2932
  %v2934 = vmul.f32 %v2928, 1.442695
  %v2935 = vpow.pop %v2934
  %v2936 = vmul.f32 %v2929, 1.442695
  %v2937 = vpow.pop %v2936
  %v2938 = vsel %vm506, %v2931, 0.0
  %2939 = vadd.xlane.f32.xlu0 %v2938
  %v2940 = vpop.xlane.xlu0 %2939
  %v2941 = vsel %vm506, %v2933, 0.0
  %2942 = vadd.xlane.f32.xlu0 %v2941
  %v2943 = vpop.xlane.xlu0 %2942
  %v2944 = vsel %vm506, %v2935, 0.0
  %2945 = vadd.xlane.f32.xlu0 %v2944
  %v2946 = vpop.xlane.xlu0 %2945
  %v2947 = vsel %vm506, %v2937, 0.0
  %2948 = vadd.xlane.f32.xlu0 %v2947
  %v2949 = vpop.xlane.xlu0 %2948
  %v2950 = vrcp.pop %v2940
  %v2951 = vrcp.pop %v2943
  %v2952 = vrcp.pop %v2946
  %v2953 = vrcp.pop %v2949
  %v2954 = vmul.f32 %v2931, %v2950
  %v2955 = vmul.f32 %v2933, %v2951
  %v2956 = vmul.f32 %v2935, %v2952
  %v2957 = vmul.f32 %v2937, %v2953
  %v2958 = vpack.c.bf16 %v2955, %v2954
  %v2959 = vpack.c.bf16 %v2957, %v2956
  %2960 = vrot.lane.b32.xlu0 %v2452, 64
  %v2961 = vpop.permute.xlu0 %2960
  %2962 = vrot.lane.b32.xlu0 %v2453, 64
  %v2963 = vpop.permute.xlu0 %2962
  %v2967 = vsel %vm506, %v2958, 0
  %v2970 = vsel %vm506, %v2959, 0
  %2972 = vmatprep.subr.bf16.mxu0 0
  %2973 = vmatpush1.bf16.msra.mxu0 0
  %2974 = vmatprep.subr.bf16.mxu0 0
  %2975 = vmatpush1.bf16.msra.mxu0 0
  %2976 = vmatprep.subr.bf16.mxu0 0
  %2977 = vmatpush1.bf16.msra.mxu0 0
  %2978 = vmatprep.subr.bf16.mxu0 0
  %2979 = vmatpush1.bf16.msra.mxu0 0
  %2980 = vmatprep.subr.bf16.mxu0 0
  %2981 = vmatpush1.bf16.msra.mxu0 0
  %2982 = vmatprep.subr.bf16.mxu0 0
  %2983 = vmatpush1.bf16.msra.mxu0 0
  %2984 = vmatprep.subr.bf16.mxu0 0
  %2985 = vmatpush1.bf16.msra.mxu0 %v2963
  %2986 = vmatprep.subr.bf16.mxu0 0
  %2987 = vmatpush1.bf16.msra.mxu0 %v2961
  %2988 = vmatprep.subr.bf16.mxu0 0
  %2989 = vmatpush2.bf16.msra.mxu0 0
  %2990 = vmatprep.subr.bf16.mxu0 0
  %2991 = vmatpush2.bf16.msra.mxu0 0
  %2992 = vmatprep.subr.bf16.mxu0 0
  %2993 = vmatpush2.bf16.msra.mxu0 0
  %2994 = vmatprep.subr.bf16.mxu0 0
  %2995 = vmatpush2.bf16.msra.mxu0 0
  %2996 = vmatprep.subr.bf16.mxu0 0
  %2997 = vmatpush2.bf16.msra.mxu0 0
  %2998 = vmatprep.subr.bf16.mxu0 0
  %2999 = vmatpush2.bf16.msra.mxu0 0
  %3000 = vmatprep.subr.bf16.mxu0 0
  %3001 = vmatpush2.bf16.msra.mxu0 0
  %3002 = vmatprep.subr.bf16.mxu0 0
  %3003 = vmatpush2.bf16.msra.mxu0 0
  %3004 = vmatprep.mubr.bf16.mxu0 0
  %3005 = vmatmul.mubr.bf16.gmra.mxu0 %v2967
  %v3006 = vpop.f32.mrf.mxu0
  %v3007 = vadd.f32 0.0, %v3006
  %v3008 = vpop.f32.mrf.mxu0
  %v3009 = vpop.f32.mrf.mxu0
  %v3010 = vadd.f32 0.0, %v3009
  %v3011 = vpop.f32.mrf.mxu0
  %3012 = vmatprep.mubr.bf16.mxu0 0
  %3013 = vmatmul.mubr.bf16.gmra.mxu0 %v2970
  %v3014 = vpop.f32.mrf.mxu0
  %v3015 = vadd.f32 0.0, %v3014
  %v3016 = vpop.f32.mrf.mxu0
  %v3017 = vpop.f32.mrf.mxu0
  %v3018 = vadd.f32 0.0, %v3017
  %v3019 = vpop.f32.mrf.mxu0
  %3020 = vdwg.mxu0
  %v3021 = vpack.c.bf16 %v3010, %v3007
  %v3022 = vpack.c.bf16 %v3018, %v3015
  %v3027 = vunpack.c.l.b16 %v2325
  %v3028 = vunpack.c.l.b16 %v2326
  %v3029 = vunpack.c.l.b16 %v2327
  %v3030 = vunpack.c.l.b16 %v2328
  %v3031 = vpack.c.b16 %v3028, %v3027
  %v3032 = vpack.c.b16 %v3030, %v3029
  %v3036 = vsel %vm506, %v3021, 0
  %v3039 = vsel %vm506, %v3022, 0
  %3041 = vmatprep.subr.bf16.mxu0 0
  %3042 = vmatpush1.bf16.msra.mxu0 0
  %3043 = vmatprep.subr.bf16.mxu0 0
  %3044 = vmatpush1.bf16.msra.mxu0 0
  %3045 = vmatprep.subr.bf16.mxu0 0
  %3046 = vmatpush1.bf16.msra.mxu0 0
  %3047 = vmatprep.subr.bf16.mxu0 0
  %3048 = vmatpush1.bf16.msra.mxu0 0
  %3049 = vmatprep.subr.bf16.mxu0 0
  %3050 = vmatpush1.bf16.msra.mxu0 0
  %3051 = vmatprep.subr.bf16.mxu0 0
  %3052 = vmatpush1.bf16.msra.mxu0 0
  %3053 = vmatprep.subr.bf16.mxu0 0
  %3054 = vmatpush1.bf16.msra.mxu0 %v3032
  %3055 = vmatprep.subr.bf16.mxu0 0
  %3056 = vmatpush1.bf16.msra.mxu0 %v3031
  %3057 = vmatprep.subr.bf16.mxu0 0
  %3058 = vmatpush2.bf16.msra.mxu0 0
  %3059 = vmatprep.subr.bf16.mxu0 0
  %3060 = vmatpush2.bf16.msra.mxu0 0
  %3061 = vmatprep.subr.bf16.mxu0 0
  %3062 = vmatpush2.bf16.msra.mxu0 0
  %3063 = vmatprep.subr.bf16.mxu0 0
  %3064 = vmatpush2.bf16.msra.mxu0 0
  %3065 = vmatprep.subr.bf16.mxu0 0
  %3066 = vmatpush2.bf16.msra.mxu0 0
  %3067 = vmatprep.subr.bf16.mxu0 0
  %3068 = vmatpush2.bf16.msra.mxu0 0
  %3069 = vmatprep.subr.bf16.mxu0 0
  %3070 = vmatpush2.bf16.msra.mxu0 0
  %3071 = vmatprep.subr.bf16.mxu0 0
  %3072 = vmatpush2.bf16.msra.mxu0 0
  %3073 = vmatprep.mubr.bf16.mxu0 0
  %3074 = vmatmul.mubr.bf16.gmra.mxu0 %v3036
  %v3075 = vpop.f32.mrf.mxu0
  %v3076 = vadd.f32 0.0, %v3075
  %v3077 = vpop.f32.mrf.mxu0
  %v3078 = vpop.f32.mrf.mxu0
  %v3079 = vadd.f32 0.0, %v3078
  %v3080 = vpop.f32.mrf.mxu0
  %3081 = vmatprep.mubr.bf16.mxu0 0
  %3082 = vmatmul.mubr.bf16.gmra.mxu0 %v3039
  %v3083 = vpop.f32.mrf.mxu0
  %v3084 = vadd.f32 0.0, %v3083
  %v3085 = vpop.f32.mrf.mxu0
  %v3086 = vpop.f32.mrf.mxu0
  %v3087 = vadd.f32 0.0, %v3086
  %v3088 = vpop.f32.mrf.mxu0
  %3089 = vdwg.mxu0
  %v3090 = vadd.f32 %v2823, %v3076
  %v3091 = vadd.f32 %v2826, %v3079
  %v3092 = vadd.f32 %v2831, %v3084
  %v3093 = vadd.f32 %v2834, %v3087
  %3094 = vrot.lane.b32.xlu0 %v2333, 32
  %v3095 = vpop.permute.xlu0 %3094
  %3096 = vrot.lane.b32.xlu0 %v2334, 32
  %v3097 = vpop.permute.xlu0 %3096
  %3098 = vrot.lane.b32.xlu0 %v2335, 32
  %v3099 = vpop.permute.xlu0 %3098
  %3100 = vrot.lane.b32.xlu0 %v2336, 32
  %v3101 = vpop.permute.xlu0 %3100
  %v3103 = vsel %vm506, %v3095, 0
  %v3106 = vsel %vm506, %v3097, 0
  %v3109 = vsel %vm506, %v3099, 0
  %v3112 = vsel %vm506, %v3101, 0
  %3114 = vmatprep.subr.bf16.mxu0 0
  %3115 = vmatpush1.bf16.xpose.msra.mxu0 0
  %3116 = vmatprep.subr.bf16.mxu0 0
  %3117 = vmatpush1.bf16.xpose.msra.mxu0 0
  %3118 = vmatprep.subr.bf16.mxu0 0
  %3119 = vmatpush1.bf16.xpose.msra.mxu0 0
  %3120 = vmatprep.subr.bf16.mxu0 0
  %3121 = vmatpush1.bf16.xpose.msra.mxu0 0
  %3122 = vmatprep.subr.bf16.mxu0 0
  %3123 = vmatpush1.bf16.xpose.msra.mxu0 0
  %3124 = vmatprep.subr.bf16.mxu0 0
  %3125 = vmatpush1.bf16.xpose.msra.mxu0 0
  %3126 = vmatprep.subr.bf16.mxu0 0
  %3127 = vmatpush1.bf16.xpose.msra.mxu0 %v3112
  %3128 = vmatprep.subr.bf16.mxu0 0
  %3129 = vmatpush1.bf16.xpose.msra.mxu0 %v3109
  %3130 = vmatprep.subr.bf16.mxu0 0
  %3131 = vmatpush2.bf16.xpose.msra.mxu0 0
  %3132 = vmatprep.subr.bf16.mxu0 0
  %3133 = vmatpush2.bf16.xpose.msra.mxu0 0
  %3134 = vmatprep.subr.bf16.mxu0 0
  %3135 = vmatpush2.bf16.xpose.msra.mxu0 0
  %3136 = vmatprep.subr.bf16.mxu0 0
  %3137 = vmatpush2.bf16.xpose.msra.mxu0 0
  %3138 = vmatprep.subr.bf16.mxu0 0
  %3139 = vmatpush2.bf16.xpose.msra.mxu0 0
  %3140 = vmatprep.subr.bf16.mxu0 0
  %3141 = vmatpush2.bf16.xpose.msra.mxu0 0
  %3142 = vmatprep.subr.bf16.mxu0 0
  %3143 = vmatpush2.bf16.xpose.msra.mxu0 0
  %3144 = vmatprep.subr.bf16.mxu0 0
  %3145 = vmatpush2.bf16.xpose.msra.mxu0 0
  %3146 = vmatprep.mubr.bf16.mxu0 0
  %3147 = vmatmul.mubr.bf16.gmra.mxu0 %v3103
  %v3148 = vpop.f32.mrf.mxu0
  %v3149 = vadd.f32 0.0, %v3148
  %v3150 = vpop.f32.mrf.mxu0
  %v3151 = vpop.f32.mrf.mxu0
  %v3152 = vadd.f32 0.0, %v3151
  %v3153 = vpop.f32.mrf.mxu0
  %3154 = vmatprep.mubr.bf16.mxu0 0
  %3155 = vmatmul.mubr.bf16.gmra.mxu0 %v3106
  %v3156 = vpop.f32.mrf.mxu0
  %v3157 = vadd.f32 0.0, %v3156
  %v3158 = vpop.f32.mrf.mxu0
  %v3159 = vpop.f32.mrf.mxu0
  %v3160 = vadd.f32 0.0, %v3159
  %v3161 = vpop.f32.mrf.mxu0
  %3162 = vdwg.mxu0
  %v3163 = vmul.f32 %v3149, 0.17677669
  %v3164 = vmul.f32 %v3152, 0.17677669
  %v3165 = vmul.f32 %v3157, 0.17677669
  %v3166 = vmul.f32 %v3160, 0.17677669
  %v3167 = vadd.f32 %v3163, %v130
  %v3168 = vadd.f32 %v3164, %v131
  %v3169 = vadd.f32 %v3165, %v132
  %v3170 = vadd.f32 %v3166, %v133
  %v3171 = vsel %vm506, %v3167, -inf
  %3172 = vmax.xlane.f32.xlu0 %v3171
  %v3173 = vpop.xlane.xlu0 %3172
  %v3174 = vsel %vm506, %v3168, -inf
  %3175 = vmax.xlane.f32.xlu0 %v3174
  %v3176 = vpop.xlane.xlu0 %3175
  %v3177 = vsel %vm506, %v3169, -inf
  %3178 = vmax.xlane.f32.xlu0 %v3177
  %v3179 = vpop.xlane.xlu0 %3178
  %v3180 = vsel %vm506, %v3170, -inf
  %3181 = vmax.xlane.f32.xlu0 %v3180
  %v3182 = vpop.xlane.xlu0 %3181
  %v3183 = vsub.f32 %v3167, %v3173
  %v3184 = vsub.f32 %v3168, %v3176
  %v3185 = vsub.f32 %v3169, %v3179
  %v3186 = vsub.f32 %v3170, %v3182
  %v3187 = vmul.f32 %v3183, 1.442695
  %v3188 = vpow.pop %v3187
  %v3189 = vmul.f32 %v3184, 1.442695
  %v3190 = vpow.pop %v3189
  %v3191 = vmul.f32 %v3185, 1.442695
  %v3192 = vpow.pop %v3191
  %v3193 = vmul.f32 %v3186, 1.442695
  %v3194 = vpow.pop %v3193
  %v3195 = vsel %vm506, %v3188, 0.0
  %3196 = vadd.xlane.f32.xlu0 %v3195
  %v3197 = vpop.xlane.xlu0 %3196
  %v3198 = vsel %vm506, %v3190, 0.0
  %3199 = vadd.xlane.f32.xlu0 %v3198
  %v3200 = vpop.xlane.xlu0 %3199
  %v3201 = vsel %vm506, %v3192, 0.0
  %3202 = vadd.xlane.f32.xlu0 %v3201
  %v3203 = vpop.xlane.xlu0 %3202
  %v3204 = vsel %vm506, %v3194, 0.0
  %3205 = vadd.xlane.f32.xlu0 %v3204
  %v3206 = vpop.xlane.xlu0 %3205
  %v3207 = vrcp.pop %v3197
  %v3208 = vrcp.pop %v3200
  %v3209 = vrcp.pop %v3203
  %v3210 = vrcp.pop %v3206
  %v3211 = vmul.f32 %v3188, %v3207
  %v3212 = vmul.f32 %v3190, %v3208
  %v3213 = vmul.f32 %v3192, %v3209
  %v3214 = vmul.f32 %v3194, %v3210
  %v3215 = vpack.c.bf16 %v3212, %v3211
  %v3216 = vpack.c.bf16 %v3214, %v3213
  %3217 = vrot.lane.b32.xlu0 %v2452, 32
  %v3218 = vpop.permute.xlu0 %3217
  %3219 = vrot.lane.b32.xlu0 %v2453, 32
  %v3220 = vpop.permute.xlu0 %3219
  %v3224 = vsel %vm506, %v3215, 0
  %v3227 = vsel %vm506, %v3216, 0
  %3229 = vmatprep.subr.bf16.mxu0 0
  %3230 = vmatpush1.bf16.msra.mxu0 0
  %3231 = vmatprep.subr.bf16.mxu0 0
  %3232 = vmatpush1.bf16.msra.mxu0 0
  %3233 = vmatprep.subr.bf16.mxu0 0
  %3234 = vmatpush1.bf16.msra.mxu0 0
  %3235 = vmatprep.subr.bf16.mxu0 0
  %3236 = vmatpush1.bf16.msra.mxu0 0
  %3237 = vmatprep.subr.bf16.mxu0 0
  %3238 = vmatpush1.bf16.msra.mxu0 0
  %3239 = vmatprep.subr.bf16.mxu0 0
  %3240 = vmatpush1.bf16.msra.mxu0 0
  %3241 = vmatprep.subr.bf16.mxu0 0
  %3242 = vmatpush1.bf16.msra.mxu0 %v3220
  %3243 = vmatprep.subr.bf16.mxu0 0
  %3244 = vmatpush1.bf16.msra.mxu0 %v3218
  %3245 = vmatprep.subr.bf16.mxu0 0
  %3246 = vmatpush2.bf16.msra.mxu0 0
  %3247 = vmatprep.subr.bf16.mxu0 0
  %3248 = vmatpush2.bf16.msra.mxu0 0
  %3249 = vmatprep.subr.bf16.mxu0 0
  %3250 = vmatpush2.bf16.msra.mxu0 0
  %3251 = vmatprep.subr.bf16.mxu0 0
  %3252 = vmatpush2.bf16.msra.mxu0 0
  %3253 = vmatprep.subr.bf16.mxu0 0
  %3254 = vmatpush2.bf16.msra.mxu0 0
  %3255 = vmatprep.subr.bf16.mxu0 0
  %3256 = vmatpush2.bf16.msra.mxu0 0
  %3257 = vmatprep.subr.bf16.mxu0 0
  %3258 = vmatpush2.bf16.msra.mxu0 0
  %3259 = vmatprep.subr.bf16.mxu0 0
  %3260 = vmatpush2.bf16.msra.mxu0 0
  %3261 = vmatprep.mubr.bf16.mxu0 0
  %3262 = vmatmul.mubr.bf16.gmra.mxu0 %v3224
  %v3263 = vpop.f32.mrf.mxu0
  %v3264 = vadd.f32 0.0, %v3263
  %v3265 = vpop.f32.mrf.mxu0
  %v3266 = vpop.f32.mrf.mxu0
  %v3267 = vadd.f32 0.0, %v3266
  %v3268 = vpop.f32.mrf.mxu0
  %3269 = vmatprep.mubr.bf16.mxu0 0
  %3270 = vmatmul.mubr.bf16.gmra.mxu0 %v3227
  %v3271 = vpop.f32.mrf.mxu0
  %v3272 = vadd.f32 0.0, %v3271
  %v3273 = vpop.f32.mrf.mxu0
  %v3274 = vpop.f32.mrf.mxu0
  %v3275 = vadd.f32 0.0, %v3274
  %v3276 = vpop.f32.mrf.mxu0
  %3277 = vdwg.mxu0
  %v3278 = vpack.c.bf16 %v3267, %v3264
  %v3279 = vpack.c.bf16 %v3275, %v3272
  %v3284 = vunpack.c.l.b16 %v2329
  %v3285 = vunpack.c.l.b16 %v2330
  %v3286 = vunpack.c.l.b16 %v2331
  %v3287 = vunpack.c.l.b16 %v2332
  %v3288 = vpack.c.b16 %v3285, %v3284
  %v3289 = vpack.c.b16 %v3287, %v3286
  %v3293 = vsel %vm506, %v3278, 0
  %v3296 = vsel %vm506, %v3279, 0
  %3298 = vmatprep.subr.bf16.mxu0 0
  %3299 = vmatpush1.bf16.msra.mxu0 0
  %3300 = vmatprep.subr.bf16.mxu0 0
  %3301 = vmatpush1.bf16.msra.mxu0 0
  %3302 = vmatprep.subr.bf16.mxu0 0
  %3303 = vmatpush1.bf16.msra.mxu0 0
  %3304 = vmatprep.subr.bf16.mxu0 0
  %3305 = vmatpush1.bf16.msra.mxu0 0
  %3306 = vmatprep.subr.bf16.mxu0 0
  %3307 = vmatpush1.bf16.msra.mxu0 0
  %3308 = vmatprep.subr.bf16.mxu0 0
  %3309 = vmatpush1.bf16.msra.mxu0 0
  %3310 = vmatprep.subr.bf16.mxu0 0
  %3311 = vmatpush1.bf16.msra.mxu0 %v3289
  %3312 = vmatprep.subr.bf16.mxu0 0
  %3313 = vmatpush1.bf16.msra.mxu0 %v3288
  %3314 = vmatprep.subr.bf16.mxu0 0
  %3315 = vmatpush2.bf16.msra.mxu0 0
  %3316 = vmatprep.subr.bf16.mxu0 0
  %3317 = vmatpush2.bf16.msra.mxu0 0
  %3318 = vmatprep.subr.bf16.mxu0 0
  %3319 = vmatpush2.bf16.msra.mxu0 0
  %3320 = vmatprep.subr.bf16.mxu0 0
  %3321 = vmatpush2.bf16.msra.mxu0 0
  %3322 = vmatprep.subr.bf16.mxu0 0
  %3323 = vmatpush2.bf16.msra.mxu0 0
  %3324 = vmatprep.subr.bf16.mxu0 0
  %3325 = vmatpush2.bf16.msra.mxu0 0
  %3326 = vmatprep.subr.bf16.mxu0 0
  %3327 = vmatpush2.bf16.msra.mxu0 0
  %3328 = vmatprep.subr.bf16.mxu0 0
  %3329 = vmatpush2.bf16.msra.mxu0 0
  %3330 = vmatprep.mubr.bf16.mxu0 0
  %3331 = vmatmul.mubr.bf16.gmra.mxu0 %v3293
  %v3332 = vpop.f32.mrf.mxu0
  %v3333 = vadd.f32 0.0, %v3332
  %v3334 = vpop.f32.mrf.mxu0
  %v3335 = vpop.f32.mrf.mxu0
  %v3336 = vadd.f32 0.0, %v3335
  %v3337 = vpop.f32.mrf.mxu0
  %3338 = vmatprep.mubr.bf16.mxu0 0
  %3339 = vmatmul.mubr.bf16.gmra.mxu0 %v3296
  %v3340 = vpop.f32.mrf.mxu0
  %v3341 = vadd.f32 0.0, %v3340
  %v3342 = vpop.f32.mrf.mxu0
  %v3343 = vpop.f32.mrf.mxu0
  %v3344 = vadd.f32 0.0, %v3343
  %v3345 = vpop.f32.mrf.mxu0
  %3346 = vdwg.mxu0
  %v3347 = vadd.f32 %v3090, %v3333
  %v3348 = vadd.f32 %v3091, %v3336
  %v3349 = vadd.f32 %v3092, %v3341
  %v3350 = vadd.f32 %v3093, %v3344
  %v3351 = vadd.f32 %v1961, %v3347
  %v3352 = vadd.f32 %v1962, %v3348
  %v3353 = vadd.f32 %v1963, %v3349
  %v3354 = vadd.f32 %v1964, %v3350
  %s3355 = scalar_lea.vmem %s6, 1
  %v3356 = vld [vmem:[%s3355] sm:$0x1]
  %v3358 = vlaneseq
  %v3359 = vshrl.u32 %v3358, 7
  %v3360 = vsub.s32 0, %v3359
  %v3361 = vrot.slane %v3356, %v3360
  %v3363 = vadd.f32 %v3351, %v3361
  %v3364 = vadd.f32 %v3352, %v3361
  %v3365 = vadd.f32 %v3353, %v3361
  %v3366 = vadd.f32 %v3354, %v3361
  %s3367 = scalar_lea.vmem %s7, 1
  %v3368 = vld [vmem:[%s3367] sm:$0x1]
  %s3369 = scalar_lea.vmem %s8, 1
  %v3370 = vld [vmem:[%s3369] sm:$0x1]
  %3371 = vadd.xlane.f32.xlu0 %v3363
  %v3372 = vpop.xlane.xlu0 %3371
  %3373 = vadd.xlane.f32.xlu0 %v3364
  %v3374 = vpop.xlane.xlu0 %3373
  %3375 = vadd.xlane.f32.xlu0 %v3365
  %v3376 = vpop.xlane.xlu0 %3375
  %3377 = vadd.xlane.f32.xlu0 %v3366
  %v3378 = vpop.xlane.xlu0 %3377
  %v3379 = vmul.f32 %v3372, %v148
  %v3380 = vmul.f32 %v3374, %v148
  %v3381 = vmul.f32 %v3376, %v148
  %v3382 = vmul.f32 %v3378, %v148
  %v3383 = vsub.f32 %v3363, %v3379
  %v3384 = vsub.f32 %v3364, %v3380
  %v3385 = vsub.f32 %v3365, %v3381
  %v3386 = vsub.f32 %v3366, %v3382
  %v3387 = vmul.f32 %v3383, %v3383
  %v3388 = vmul.f32 %v3384, %v3384
  %v3389 = vmul.f32 %v3385, %v3385
  %v3390 = vmul.f32 %v3386, %v3386
  %3391 = vadd.xlane.f32.xlu0 %v3387
  %v3392 = vpop.xlane.xlu0 %3391
  %3393 = vadd.xlane.f32.xlu0 %v3388
  %v3394 = vpop.xlane.xlu0 %3393
  %3395 = vadd.xlane.f32.xlu0 %v3389
  %v3396 = vpop.xlane.xlu0 %3395
  %3397 = vadd.xlane.f32.xlu0 %v3390
  %v3398 = vpop.xlane.xlu0 %3397
  %v3399 = vmul.f32 %v3392, %v148
  %v3400 = vmul.f32 %v3394, %v148
  %v3401 = vmul.f32 %v3396, %v148
  %v3402 = vmul.f32 %v3398, %v148
  %v3403 = vadd.f32 %v3399, 1e-05
  %v3404 = vadd.f32 %v3400, 1e-05
  %v3405 = vadd.f32 %v3401, 1e-05
  %v3406 = vadd.f32 %v3402, 1e-05
  %v3407 = vrsqrt.pop %v3403
  %v3408 = vrsqrt.pop %v3404
  %v3409 = vrsqrt.pop %v3405
  %v3410 = vrsqrt.pop %v3406
  %v3411 = vmul.f32 %v3383, %v3407
  %v3412 = vmul.f32 %v3384, %v3408
  %v3413 = vmul.f32 %v3385, %v3409
  %v3414 = vmul.f32 %v3386, %v3410
  %v3416 = vlaneseq
  %v3417 = vshrl.u32 %v3416, 7
  %v3418 = vsub.s32 0, %v3417
  %v3419 = vrot.slane %v3368, %v3418
  %v3421 = vmul.f32 %v3411, %v3419
  %v3422 = vmul.f32 %v3412, %v3419
  %v3423 = vmul.f32 %v3413, %v3419
  %v3424 = vmul.f32 %v3414, %v3419
  %v3426 = vlaneseq
  %v3427 = vshrl.u32 %v3426, 7
  %v3428 = vsub.s32 0, %v3427
  %v3429 = vrot.slane %v3370, %v3428
  %v3431 = vadd.f32 %v3421, %v3429
  %v3432 = vadd.f32 %v3422, %v3429
  %v3433 = vadd.f32 %v3423, %v3429
  %v3434 = vadd.f32 %v3424, %v3429
  %v3435 = vpack.c.bf16 %v3432, %v3431
  %v3436 = vpack.c.bf16 %v3434, %v3433
  %s3437 = scalar_lea.vmem %s9, 128
  %v3438 = vld [vmem:[%s3437] sm:$0xff]
  %v3439 = vld [vmem:[%s3437 + $0x8] sm:$0xff]
  %v3440 = vld [vmem:[%s3437 + $0x10] sm:$0xff]
  %v3441 = vld [vmem:[%s3437 + $0x18] sm:$0xff]
  %v3442 = vld [vmem:[%s3437 + $0x20] sm:$0xff]
  %v3443 = vld [vmem:[%s3437 + $0x28] sm:$0xff]
  %v3444 = vld [vmem:[%s3437 + $0x30] sm:$0xff]
  %v3445 = vld [vmem:[%s3437 + $0x38] sm:$0xff]
  %v3446 = vld [vmem:[%s3437 + $0x40] sm:$0xff]
  %v3447 = vld [vmem:[%s3437 + $0x48] sm:$0xff]
  %v3448 = vld [vmem:[%s3437 + $0x50] sm:$0xff]
  %v3449 = vld [vmem:[%s3437 + $0x58] sm:$0xff]
  %v3450 = vld [vmem:[%s3437 + $0x60] sm:$0xff]
  %v3451 = vld [vmem:[%s3437 + $0x68] sm:$0xff]
  %v3452 = vld [vmem:[%s3437 + $0x70] sm:$0xff]
  %v3453 = vld [vmem:[%s3437 + $0x78] sm:$0xff]
  %s3454 = scalar_lea.vmem %s10, 2
  %v3455 = vld [vmem:[%s3454] sm:$0x3]
  %v3457 = vlaneseq
  %v3458 = vshrl.u32 %v3457, 7
  %v3459 = vsub.s32 0, %v3458
  %v3460 = vrot.slane %v3455, %v3459
  %v3461 = vlaneseq
  %v3462 = vshrl.u32 %v3461, 7
  %v3463 = vsub.s32 1, %v3462
  %v3464 = vrot.slane %v3455, %v3463
  %v3483 = vunpack.c.l.b16 %v3438
  %v3484 = vunpack.c.h.b16 %v3438
  %v3485 = vunpack.c.l.b16 %v3439
  %v3486 = vunpack.c.h.b16 %v3439
  %v3487 = vunpack.c.l.b16 %v3440
  %v3488 = vunpack.c.h.b16 %v3440
  %v3489 = vunpack.c.l.b16 %v3441
  %v3490 = vunpack.c.h.b16 %v3441
  %v3491 = vunpack.c.l.b16 %v3442
  %v3492 = vunpack.c.h.b16 %v3442
  %v3493 = vunpack.c.l.b16 %v3443
  %v3494 = vunpack.c.h.b16 %v3443
  %v3495 = vunpack.c.l.b16 %v3444
  %v3496 = vunpack.c.h.b16 %v3444
  %v3497 = vunpack.c.l.b16 %v3445
  %v3498 = vunpack.c.h.b16 %v3445
  %v3499 = vunpack.c.l.b16 %v3446
  %v3500 = vunpack.c.h.b16 %v3446
  %v3501 = vunpack.c.l.b16 %v3447
  %v3502 = vunpack.c.h.b16 %v3447
  %v3503 = vunpack.c.l.b16 %v3448
  %v3504 = vunpack.c.h.b16 %v3448
  %v3505 = vunpack.c.l.b16 %v3449
  %v3506 = vunpack.c.h.b16 %v3449
  %v3507 = vunpack.c.l.b16 %v3450
  %v3508 = vunpack.c.h.b16 %v3450
  %v3509 = vunpack.c.l.b16 %v3451
  %v3510 = vunpack.c.h.b16 %v3451
  %v3511 = vunpack.c.l.b16 %v3452
  %v3512 = vunpack.c.h.b16 %v3452
  %v3513 = vunpack.c.l.b16 %v3453
  %v3514 = vunpack.c.h.b16 %v3453
  %v3515 = vpack.c.b16 %v3485, %v3483
  %v3516 = vpack.c.b16 %v3486, %v3484
  %v3517 = vpack.c.b16 %v3489, %v3487
  %v3518 = vpack.c.b16 %v3490, %v3488
  %v3519 = vpack.c.b16 %v3493, %v3491
  %v3520 = vpack.c.b16 %v3494, %v3492
  %v3521 = vpack.c.b16 %v3497, %v3495
  %v3522 = vpack.c.b16 %v3498, %v3496
  %v3523 = vpack.c.b16 %v3501, %v3499
  %v3524 = vpack.c.b16 %v3502, %v3500
  %v3525 = vpack.c.b16 %v3505, %v3503
  %v3526 = vpack.c.b16 %v3506, %v3504
  %v3527 = vpack.c.b16 %v3509, %v3507
  %v3528 = vpack.c.b16 %v3510, %v3508
  %v3529 = vpack.c.b16 %v3513, %v3511
  %v3530 = vpack.c.b16 %v3514, %v3512
  %3547 = vmatprep.subr.bf16.mxu0 %v3530
  %3548 = vmatpush1.bf16.msra.mxu0 %v3529
  %3549 = vmatprep.subr.bf16.mxu0 %v3528
  %3550 = vmatpush1.bf16.msra.mxu0 %v3527
  %3551 = vmatprep.subr.bf16.mxu0 %v3526
  %3552 = vmatpush1.bf16.msra.mxu0 %v3525
  %3553 = vmatprep.subr.bf16.mxu0 %v3524
  %3554 = vmatpush1.bf16.msra.mxu0 %v3523
  %3555 = vmatprep.subr.bf16.mxu0 %v3522
  %3556 = vmatpush1.bf16.msra.mxu0 %v3521
  %3557 = vmatprep.subr.bf16.mxu0 %v3520
  %3558 = vmatpush1.bf16.msra.mxu0 %v3519
  %3559 = vmatprep.subr.bf16.mxu0 %v3518
  %3560 = vmatpush1.bf16.msra.mxu0 %v3517
  %3561 = vmatprep.subr.bf16.mxu0 %v3516
  %3562 = vmatpush1.bf16.msra.mxu0 %v3515
  %3563 = vmatprep.subr.bf16.mxu0 0
  %3564 = vmatpush2.bf16.msra.mxu0 0
  %3565 = vmatprep.subr.bf16.mxu0 0
  %3566 = vmatpush2.bf16.msra.mxu0 0
  %3567 = vmatprep.subr.bf16.mxu0 0
  %3568 = vmatpush2.bf16.msra.mxu0 0
  %3569 = vmatprep.subr.bf16.mxu0 0
  %3570 = vmatpush2.bf16.msra.mxu0 0
  %3571 = vmatprep.subr.bf16.mxu0 0
  %3572 = vmatpush2.bf16.msra.mxu0 0
  %3573 = vmatprep.subr.bf16.mxu0 0
  %3574 = vmatpush2.bf16.msra.mxu0 0
  %3575 = vmatprep.subr.bf16.mxu0 0
  %3576 = vmatpush2.bf16.msra.mxu0 0
  %3577 = vmatprep.subr.bf16.mxu0 0
  %3578 = vmatpush2.bf16.msra.mxu0 0
  %3579 = vmatprep.mubr.bf16.mxu0 0
  %3580 = vmatmul.mubr.bf16.gmra.mxu0 %v3435
  %v3581 = vpop.f32.mrf.mxu0
  %v3582 = vadd.f32 %v3460, %v3581
  %v3583 = vpop.f32.mrf.mxu0
  %v3584 = vadd.f32 %v3464, %v3583
  %v3585 = vpop.f32.mrf.mxu0
  %v3586 = vadd.f32 %v3460, %v3585
  %v3587 = vpop.f32.mrf.mxu0
  %v3588 = vadd.f32 %v3464, %v3587
  %3589 = vmatprep.mubr.bf16.mxu0 0
  %3590 = vmatmul.mubr.bf16.gmra.mxu0 %v3436
  %v3591 = vpop.f32.mrf.mxu0
  %v3592 = vadd.f32 %v3460, %v3591
  %v3593 = vpop.f32.mrf.mxu0
  %v3594 = vadd.f32 %v3464, %v3593
  %v3595 = vpop.f32.mrf.mxu0
  %v3596 = vadd.f32 %v3460, %v3595
  %v3597 = vpop.f32.mrf.mxu0
  %v3598 = vadd.f32 %v3464, %v3597
  %3599 = vdwg.mxu0
  %v3600 = vmax.f32 %v3582, 0.0
  %v3601 = vmax.f32 %v3584, 0.0
  %v3602 = vmax.f32 %v3586, 0.0
  %v3603 = vmax.f32 %v3588, 0.0
  %v3604 = vmax.f32 %v3592, 0.0
  %v3605 = vmax.f32 %v3594, 0.0
  %v3606 = vmax.f32 %v3596, 0.0
  %v3607 = vmax.f32 %v3598, 0.0
  %v3608 = vpack.c.bf16 %v3602, %v3600
  %v3609 = vpack.c.bf16 %v3603, %v3601
  %v3610 = vpack.c.bf16 %v3606, %v3604
  %v3611 = vpack.c.bf16 %v3607, %v3605
  %s3612 = scalar_lea.vmem %s11, 128
  %v3613 = vld [vmem:[%s3612] sm:$0xf]
  %v3614 = vld [vmem:[%s3612 + $0x4] sm:$0xf]
  %v3615 = vld [vmem:[%s3612 + $0x8] sm:$0xf]
  %v3616 = vld [vmem:[%s3612 + $0xc] sm:$0xf]
  %v3617 = vld [vmem:[%s3612 + $0x10] sm:$0xf]
  %v3618 = vld [vmem:[%s3612 + $0x14] sm:$0xf]
  %v3619 = vld [vmem:[%s3612 + $0x18] sm:$0xf]
  %v3620 = vld [vmem:[%s3612 + $0x1c] sm:$0xf]
  %v3621 = vld [vmem:[%s3612 + $0x20] sm:$0xf]
  %v3622 = vld [vmem:[%s3612 + $0x24] sm:$0xf]
  %v3623 = vld [vmem:[%s3612 + $0x28] sm:$0xf]
  %v3624 = vld [vmem:[%s3612 + $0x2c] sm:$0xf]
  %v3625 = vld [vmem:[%s3612 + $0x30] sm:$0xf]
  %v3626 = vld [vmem:[%s3612 + $0x34] sm:$0xf]
  %v3627 = vld [vmem:[%s3612 + $0x38] sm:$0xf]
  %v3628 = vld [vmem:[%s3612 + $0x3c] sm:$0xf]
  %v3629 = vld [vmem:[%s3612 + $0x40] sm:$0xf]
  %v3630 = vld [vmem:[%s3612 + $0x44] sm:$0xf]
  %v3631 = vld [vmem:[%s3612 + $0x48] sm:$0xf]
  %v3632 = vld [vmem:[%s3612 + $0x4c] sm:$0xf]
  %v3633 = vld [vmem:[%s3612 + $0x50] sm:$0xf]
  %v3634 = vld [vmem:[%s3612 + $0x54] sm:$0xf]
  %v3635 = vld [vmem:[%s3612 + $0x58] sm:$0xf]
  %v3636 = vld [vmem:[%s3612 + $0x5c] sm:$0xf]
  %v3637 = vld [vmem:[%s3612 + $0x60] sm:$0xf]
  %v3638 = vld [vmem:[%s3612 + $0x64] sm:$0xf]
  %v3639 = vld [vmem:[%s3612 + $0x68] sm:$0xf]
  %v3640 = vld [vmem:[%s3612 + $0x6c] sm:$0xf]
  %v3641 = vld [vmem:[%s3612 + $0x70] sm:$0xf]
  %v3642 = vld [vmem:[%s3612 + $0x74] sm:$0xf]
  %v3643 = vld [vmem:[%s3612 + $0x78] sm:$0xf]
  %v3644 = vld [vmem:[%s3612 + $0x7c] sm:$0xf]
  %s3645 = scalar_lea.vmem %s12, 1
  %v3646 = vld [vmem:[%s3645] sm:$0x1]
  %v3648 = vlaneseq
  %v3649 = vshrl.u32 %v3648, 7
  %v3650 = vsub.s32 0, %v3649
  %v3651 = vrot.slane %v3646, %v3650
  %v3685 = vunpack.c.l.b16 %v3613
  %v3686 = vunpack.c.l.b16 %v3614
  %v3687 = vunpack.c.l.b16 %v3615
  %v3688 = vunpack.c.l.b16 %v3616
  %v3689 = vunpack.c.l.b16 %v3617
  %v3690 = vunpack.c.l.b16 %v3618
  %v3691 = vunpack.c.l.b16 %v3619
  %v3692 = vunpack.c.l.b16 %v3620
  %v3693 = vunpack.c.l.b16 %v3621
  %v3694 = vunpack.c.l.b16 %v3622
  %v3695 = vunpack.c.l.b16 %v3623
  %v3696 = vunpack.c.l.b16 %v3624
  %v3697 = vunpack.c.l.b16 %v3625
  %v3698 = vunpack.c.l.b16 %v3626
  %v3699 = vunpack.c.l.b16 %v3627
  %v3700 = vunpack.c.l.b16 %v3628
  %v3701 = vunpack.c.l.b16 %v3629
  %v3702 = vunpack.c.l.b16 %v3630
  %v3703 = vunpack.c.l.b16 %v3631
  %v3704 = vunpack.c.l.b16 %v3632
  %v3705 = vunpack.c.l.b16 %v3633
  %v3706 = vunpack.c.l.b16 %v3634
  %v3707 = vunpack.c.l.b16 %v3635
  %v3708 = vunpack.c.l.b16 %v3636
  %v3709 = vunpack.c.l.b16 %v3637
  %v3710 = vunpack.c.l.b16 %v3638
  %v3711 = vunpack.c.l.b16 %v3639
  %v3712 = vunpack.c.l.b16 %v3640
  %v3713 = vunpack.c.l.b16 %v3641
  %v3714 = vunpack.c.l.b16 %v3642
  %v3715 = vunpack.c.l.b16 %v3643
  %v3716 = vunpack.c.l.b16 %v3644
  %v3717 = vpack.c.b16 %v3686, %v3685
  %v3718 = vpack.c.b16 %v3688, %v3687
  %v3719 = vpack.c.b16 %v3690, %v3689
  %v3720 = vpack.c.b16 %v3692, %v3691
  %v3721 = vpack.c.b16 %v3694, %v3693
  %v3722 = vpack.c.b16 %v3696, %v3695
  %v3723 = vpack.c.b16 %v3698, %v3697
  %v3724 = vpack.c.b16 %v3700, %v3699
  %v3725 = vpack.c.b16 %v3702, %v3701
  %v3726 = vpack.c.b16 %v3704, %v3703
  %v3727 = vpack.c.b16 %v3706, %v3705
  %v3728 = vpack.c.b16 %v3708, %v3707
  %v3729 = vpack.c.b16 %v3710, %v3709
  %v3730 = vpack.c.b16 %v3712, %v3711
  %v3731 = vpack.c.b16 %v3714, %v3713
  %v3732 = vpack.c.b16 %v3716, %v3715
  %3749 = vmatprep.subr.bf16.mxu0 0
  %3750 = vmatpush1.bf16.msra.mxu0 %v3724
  %3751 = vmatprep.subr.bf16.mxu0 0
  %3752 = vmatpush1.bf16.msra.mxu0 %v3723
  %3753 = vmatprep.subr.bf16.mxu0 0
  %3754 = vmatpush1.bf16.msra.mxu0 %v3722
  %3755 = vmatprep.subr.bf16.mxu0 0
  %3756 = vmatpush1.bf16.msra.mxu0 %v3721
  %3757 = vmatprep.subr.bf16.mxu0 0
  %3758 = vmatpush1.bf16.msra.mxu0 %v3720
  %3759 = vmatprep.subr.bf16.mxu0 0
  %3760 = vmatpush1.bf16.msra.mxu0 %v3719
  %3761 = vmatprep.subr.bf16.mxu0 0
  %3762 = vmatpush1.bf16.msra.mxu0 %v3718
  %3763 = vmatprep.subr.bf16.mxu0 0
  %3764 = vmatpush1.bf16.msra.mxu0 %v3717
  %3765 = vmatprep.subr.bf16.mxu0 0
  %3766 = vmatpush2.bf16.msra.mxu0 %v3732
  %3767 = vmatprep.subr.bf16.mxu0 0
  %3768 = vmatpush2.bf16.msra.mxu0 %v3731
  %3769 = vmatprep.subr.bf16.mxu0 0
  %3770 = vmatpush2.bf16.msra.mxu0 %v3730
  %3771 = vmatprep.subr.bf16.mxu0 0
  %3772 = vmatpush2.bf16.msra.mxu0 %v3729
  %3773 = vmatprep.subr.bf16.mxu0 0
  %3774 = vmatpush2.bf16.msra.mxu0 %v3728
  %3775 = vmatprep.subr.bf16.mxu0 0
  %3776 = vmatpush2.bf16.msra.mxu0 %v3727
  %3777 = vmatprep.subr.bf16.mxu0 0
  %3778 = vmatpush2.bf16.msra.mxu0 %v3726
  %3779 = vmatprep.subr.bf16.mxu0 0
  %3780 = vmatpush2.bf16.msra.mxu0 %v3725
  %3781 = vmatprep.mubr.bf16.mxu0 %v3609
  %3782 = vmatmul.mubr.bf16.gmra.mxu0 %v3608
  %v3783 = vpop.f32.mrf.mxu0
  %v3784 = vadd.f32 %v3651, %v3783
  %v3785 = vpop.f32.mrf.mxu0
  %v3786 = vpop.f32.mrf.mxu0
  %v3787 = vadd.f32 %v3651, %v3786
  %v3788 = vpop.f32.mrf.mxu0
  %3789 = vmatprep.mubr.bf16.mxu0 %v3611
  %3790 = vmatmul.mubr.bf16.gmra.mxu0 %v3610
  %v3791 = vpop.f32.mrf.mxu0
  %v3792 = vadd.f32 %v3651, %v3791
  %v3793 = vpop.f32.mrf.mxu0
  %v3794 = vpop.f32.mrf.mxu0
  %v3795 = vadd.f32 %v3651, %v3794
  %v3796 = vpop.f32.mrf.mxu0
  %3797 = vdwg.mxu0
  %v3798 = vadd.f32 %v3363, %v3784
  %v3799 = vadd.f32 %v3364, %v3787
  %v3800 = vadd.f32 %v3365, %v3792
  %v3801 = vadd.f32 %v3366, %v3795
  %v3802 = vpack.c.bf16 %v3799, %v3798
  %v3803 = vpack.c.bf16 %v3801, %v3800
  %v3804 = vld [vmem:[%s13] sm:$0xff]
  %v3805 = vld [vmem:[%s13 + $0x8] sm:$0xff]
  %v3806 = vld [vmem:[%s13 + $0x10] sm:$0xff]
  %v3807 = vld [vmem:[%s13 + $0x18] sm:$0xff]
  %v3808 = vld [vmem:[%s13 + $0x20] sm:$0xff]
  %v3809 = vld [vmem:[%s13 + $0x28] sm:$0xff]
  %v3810 = vld [vmem:[%s13 + $0x30] sm:$0xff]
  %v3811 = vld [vmem:[%s13 + $0x38] sm:$0xff]
  %v3812 = vld [vmem:[%s13 + $0x40] sm:$0xff]
  %v3813 = vld [vmem:[%s13 + $0x48] sm:$0xff]
  %v3814 = vld [vmem:[%s13 + $0x50] sm:$0xff]
  %v3815 = vld [vmem:[%s13 + $0x58] sm:$0xff]
  %v3816 = vld [vmem:[%s13 + $0x60] sm:$0xff]
  %v3817 = vld [vmem:[%s13 + $0x68] sm:$0xff]
  %v3818 = vld [vmem:[%s13 + $0x70] sm:$0xff]
  %v3819 = vld [vmem:[%s13 + $0x78] sm:$0xff]
  %v3820 = vld [vmem:[%s14] sm:$0x3]
  %v3822 = vlaneseq
  %v3823 = vshrl.u32 %v3822, 7
  %v3824 = vsub.s32 0, %v3823
  %v3825 = vrot.slane %v3820, %v3824
  %v3826 = vlaneseq
  %v3827 = vshrl.u32 %v3826, 7
  %v3828 = vsub.s32 1, %v3827
  %v3829 = vrot.slane %v3820, %v3828
  %v3848 = vunpack.c.l.b16 %v3804
  %v3849 = vunpack.c.h.b16 %v3804
  %v3850 = vunpack.c.l.b16 %v3805
  %v3851 = vunpack.c.h.b16 %v3805
  %v3852 = vunpack.c.l.b16 %v3806
  %v3853 = vunpack.c.h.b16 %v3806
  %v3854 = vunpack.c.l.b16 %v3807
  %v3855 = vunpack.c.h.b16 %v3807
  %v3856 = vunpack.c.l.b16 %v3808
  %v3857 = vunpack.c.h.b16 %v3808
  %v3858 = vunpack.c.l.b16 %v3809
  %v3859 = vunpack.c.h.b16 %v3809
  %v3860 = vunpack.c.l.b16 %v3810
  %v3861 = vunpack.c.h.b16 %v3810
  %v3862 = vunpack.c.l.b16 %v3811
  %v3863 = vunpack.c.h.b16 %v3811
  %v3864 = vunpack.c.l.b16 %v3812
  %v3865 = vunpack.c.h.b16 %v3812
  %v3866 = vunpack.c.l.b16 %v3813
  %v3867 = vunpack.c.h.b16 %v3813
  %v3868 = vunpack.c.l.b16 %v3814
  %v3869 = vunpack.c.h.b16 %v3814
  %v3870 = vunpack.c.l.b16 %v3815
  %v3871 = vunpack.c.h.b16 %v3815
  %v3872 = vunpack.c.l.b16 %v3816
  %v3873 = vunpack.c.h.b16 %v3816
  %v3874 = vunpack.c.l.b16 %v3817
  %v3875 = vunpack.c.h.b16 %v3817
  %v3876 = vunpack.c.l.b16 %v3818
  %v3877 = vunpack.c.h.b16 %v3818
  %v3878 = vunpack.c.l.b16 %v3819
  %v3879 = vunpack.c.h.b16 %v3819
  %v3880 = vpack.c.b16 %v3850, %v3848
  %v3881 = vpack.c.b16 %v3851, %v3849
  %v3882 = vpack.c.b16 %v3854, %v3852
  %v3883 = vpack.c.b16 %v3855, %v3853
  %v3884 = vpack.c.b16 %v3858, %v3856
  %v3885 = vpack.c.b16 %v3859, %v3857
  %v3886 = vpack.c.b16 %v3862, %v3860
  %v3887 = vpack.c.b16 %v3863, %v3861
  %v3888 = vpack.c.b16 %v3866, %v3864
  %v3889 = vpack.c.b16 %v3867, %v3865
  %v3890 = vpack.c.b16 %v3870, %v3868
  %v3891 = vpack.c.b16 %v3871, %v3869
  %v3892 = vpack.c.b16 %v3874, %v3872
  %v3893 = vpack.c.b16 %v3875, %v3873
  %v3894 = vpack.c.b16 %v3878, %v3876
  %v3895 = vpack.c.b16 %v3879, %v3877
  %3912 = vmatprep.subr.bf16.mxu0 %v3895
  %3913 = vmatpush1.bf16.msra.mxu0 %v3894
  %3914 = vmatprep.subr.bf16.mxu0 %v3893
  %3915 = vmatpush1.bf16.msra.mxu0 %v3892
  %3916 = vmatprep.subr.bf16.mxu0 %v3891
  %3917 = vmatpush1.bf16.msra.mxu0 %v3890
  %3918 = vmatprep.subr.bf16.mxu0 %v3889
  %3919 = vmatpush1.bf16.msra.mxu0 %v3888
  %3920 = vmatprep.subr.bf16.mxu0 %v3887
  %3921 = vmatpush1.bf16.msra.mxu0 %v3886
  %3922 = vmatprep.subr.bf16.mxu0 %v3885
  %3923 = vmatpush1.bf16.msra.mxu0 %v3884
  %3924 = vmatprep.subr.bf16.mxu0 %v3883
  %3925 = vmatpush1.bf16.msra.mxu0 %v3882
  %3926 = vmatprep.subr.bf16.mxu0 %v3881
  %3927 = vmatpush1.bf16.msra.mxu0 %v3880
  %3928 = vmatprep.subr.bf16.mxu0 0
  %3929 = vmatpush2.bf16.msra.mxu0 0
  %3930 = vmatprep.subr.bf16.mxu0 0
  %3931 = vmatpush2.bf16.msra.mxu0 0
  %3932 = vmatprep.subr.bf16.mxu0 0
  %3933 = vmatpush2.bf16.msra.mxu0 0
  %3934 = vmatprep.subr.bf16.mxu0 0
  %3935 = vmatpush2.bf16.msra.mxu0 0
  %3936 = vmatprep.subr.bf16.mxu0 0
  %3937 = vmatpush2.bf16.msra.mxu0 0
  %3938 = vmatprep.subr.bf16.mxu0 0
  %3939 = vmatpush2.bf16.msra.mxu0 0
  %3940 = vmatprep.subr.bf16.mxu0 0
  %3941 = vmatpush2.bf16.msra.mxu0 0
  %3942 = vmatprep.subr.bf16.mxu0 0
  %3943 = vmatpush2.bf16.msra.mxu0 0
  %3944 = vmatprep.mubr.bf16.mxu0 0
  %3945 = vmatmul.mubr.bf16.gmra.mxu0 %v3802
  %v3946 = vpop.f32.mrf.mxu0
  %v3947 = vadd.f32 %v3825, %v3946
  %v3948 = vpop.f32.mrf.mxu0
  %v3949 = vadd.f32 %v3829, %v3948
  %v3950 = vpop.f32.mrf.mxu0
  %v3951 = vadd.f32 %v3825, %v3950
  %v3952 = vpop.f32.mrf.mxu0
  %v3953 = vadd.f32 %v3829, %v3952
  %3954 = vmatprep.mubr.bf16.mxu0 0
  %3955 = vmatmul.mubr.bf16.gmra.mxu0 %v3803
  %v3956 = vpop.f32.mrf.mxu0
  %v3957 = vadd.f32 %v3825, %v3956
  %v3958 = vpop.f32.mrf.mxu0
  %v3959 = vadd.f32 %v3829, %v3958
  %v3960 = vpop.f32.mrf.mxu0
  %v3961 = vadd.f32 %v3825, %v3960
  %v3962 = vpop.f32.mrf.mxu0
  %v3963 = vadd.f32 %v3829, %v3962
  %3964 = vdwg.mxu0
  %3965 = vst [vmem:[%s15] sm:$0xff] %v3947
  %3966 = vst [vmem:[%s15 + $0x8] sm:$0xff] %v3949
  %3967 = vst [vmem:[%s15 + $0x10] sm:$0xff] %v3951
  %3968 = vst [vmem:[%s15 + $0x18] sm:$0xff] %v3953
  %3969 = vst [vmem:[%s15 + $0x20] sm:$0xff] %v3957
  %3970 = vst [vmem:[%s15 + $0x28] sm:$0xff] %v3959
  %3971 = vst [vmem:[%s15 + $0x30] sm:$0xff] %v3961
  %3972 = vst [vmem:[%s15 + $0x38] sm:$0xff] %v3963
  // Predicated region
  $region62: #{torch_lm_forward.1} parent=0 // pred_check
    _
  $region63: #{torch_lm_forward.1} parent=0 // pred_check_branch
    %3974 = sbr.rel (0) target = $region65
  $region64: #{torch_lm_forward.1} parent=0 // pred_region
    _
  $region65: #{torch_lm_forward.1} parent=0 // pred_fallthru
    _
  // Predicated region
  $region66: #{torch_lm_forward.1} parent=0 // pred_check
    _
  $region67: #{torch_lm_forward.1} parent=0 // pred_check_branch
    %3976 = sbr.rel (0) target = $region69
  $region68: #{torch_lm_forward.1} parent=0 // pred_region
    _
  $region69: #{torch_lm_forward.1} parent=0 // pred_fallthru
    _

</llo_original>
